<compile_context>
chip_gen: v6e
topology: v6e:2x2x1
jax: 0.10.0
libtpu: 0.0.40
codegen_flags: <defaults>
</compile_context>

<pallas_src>
import functools
import math

import jax
import jax.numpy as jnp
from jax.experimental import pallas as pl
from jax.experimental.pallas import tpu as pltpu


# ----------------------------------------------------------------------------
# Fused Pallas kernel
# ----------------------------------------------------------------------------
def _fused_kernel(x_ref, s_ref,
                  w_enc_ref, w_sin_ref, b_cat_ref,
                  w_gi_ref, b_gi_ref, w_gh_ref, b_gh_ref,
                  w_dec_ref, b_dec_ref,
                  w_sout_ref, b_sout_ref,
                  dec_ref, xlat_ref, hseq_ref, sout_ref,
                  *, B, Tp1, HP):
    """Whole forward pass on padded (128-lane) feature layouts.

    Lane layout of the padded hidden buffer: [0:L) latent, [L:L+M) sensor,
    [L+M:128) zero.  All padded weight rows/cols are zero so padded lanes stay
    exactly zero through the GRU recurrence and never leak into real outputs.
    """
    T = Tp1 - 1

    # 1) image encode + sensor-in projection, written to disjoint lane ranges
    #    of one padded buffer (this *is* torch.cat((x_in_lat, s_in), dim=2)).
    cat_flat = (
        jnp.dot(x_ref[...], w_enc_ref[...], preferred_element_type=jnp.float32)
        + jnp.dot(s_ref[...], w_sin_ref[...], preferred_element_type=jnp.float32)
        + b_cat_ref[...]
    )                                                      # (B*(T+1), HP)
    xlat_ref[...] = cat_flat                               # -> x_in_lat (lanes [0:L))

    cat = cat_flat.reshape(B, Tp1, HP)

    # 2) GRU.  Hoist the input-side gate projections for all timesteps out of
    #    the recurrence (one matmul), fuse the hidden-side gates into one
    #    (HP, 3*HP) matmul per step.  Gate blocks are [r | z | n] (PyTorch order).
    gi_all = (
        jnp.dot(cat_flat, w_gi_ref[...], preferred_element_type=jnp.float32)
        + b_gi_ref[...]
    ).reshape(B, Tp1, 3 * HP)

    w_gh = w_gh_ref[...]
    b_gh = b_gh_ref[...]

    h = cat[:, 0, :]                                       # h_0 (h_0_latent=True path)
    hs = []
    for t in range(T):                                     # static unroll (T is small)
        gi = gi_all[:, t, :]                               # (B, 3*HP)
        gh = jnp.dot(h, w_gh, preferred_element_type=jnp.float32) + b_gh
        r = jax.nn.sigmoid(gi[:, 0 * HP:1 * HP] + gh[:, 0 * HP:1 * HP])
        z = jax.nn.sigmoid(gi[:, 1 * HP:2 * HP] + gh[:, 1 * HP:2 * HP])
        n = jnp.tanh(gi[:, 2 * HP:3 * HP] + r * gh[:, 2 * HP:3 * HP])
        h = (1.0 - z) * n + z * h
        hs.append(h)

    # concat_out rows in (batch-major, time-minor) order: row = b*T + t
    hseq = jnp.stack(hs, axis=1).reshape(B * T, HP)        # (B*T, HP)
    hseq_ref[...] = hseq                                   # -> x_out_lat (lanes [0:L))

    # 3) sensor output head (reads sensor lanes, writes lanes [0:M))
    sout_ref[...] = (
        jnp.dot(hseq, w_sout_ref[...], preferred_element_type=jnp.float32)
        + b_sout_ref[...]
    )

    # 4) merged decode: AE reconstruction rows + predicted-latent rows share
    #    one matmul against the decoder weight (rows >= L of w_dec_p are zero,
    #    so the sensor lanes are ignored, matching concat_out[:, :, :-M]).
    dec_in = jnp.concatenate([cat_flat, hseq], axis=0)     # (N1 + N2, HP)
    dec_ref[...] = (
        jnp.dot(dec_in, w_dec_ref[...], preferred_element_type=jnp.float32)
        + b_dec_ref[...]
    )


def _full_spec(shape):
    zeros = (0,) * len(shape)
    return pl.BlockSpec(shape, lambda i, z=zeros: z)


# ----------------------------------------------------------------------------
# Parameter construction (deterministic, PyTorch-style uniform init)
# ----------------------------------------------------------------------------
def _uniform(key, shape, fan_in):
    bound = 1.0 / math.sqrt(fan_in)
    return jax.random.uniform(key, shape, jnp.float32, -bound, bound)


def init_params(key, *, latent_size, sensor_size, img_feat):
    """Logical (unpadded) weights, stored pre-transposed as (in, out)."""
    hidden = latent_size + sensor_size
    ks = iter(jax.random.split(key, 32))
    p = {}
    # fc_sensor_in / fc_sensor_out : Linear(M, M)
    p["w_sin_t"] = _uniform(next(ks), (sensor_size, sensor_size), sensor_size)
    p["b_sin"] = _uniform(next(ks), (1, sensor_size), sensor_size)
    p["w_sout_t"] = _uniform(next(ks), (sensor_size, sensor_size), sensor_size)
    p["b_sout"] = _uniform(next(ks), (1, sensor_size), sensor_size)
    # synthetic linear autoencoder: encode (C*H*W -> L), decode (L -> C*H*W)
    p["w_enc_t"] = _uniform(next(ks), (img_feat, latent_size), img_feat)
    p["b_enc"] = _uniform(next(ks), (1, latent_size), img_feat)
    p["w_dec_t"] = _uniform(next(ks), (latent_size, img_feat), latent_size)
    p["b_dec"] = _uniform(next(ks), (1, img_feat), latent_size)
    # GRU (num_layers=1, input_size == hidden_size == L + M), gate order r,z,n
    gru_p = []
    for _ in range(6):                       # w_ir^T, w_iz^T, w_in^T, w_hr^T, w_hz^T, w_hn^T
        gru_p.append(_uniform(next(ks), (hidden, hidden), hidden))
    for _ in range(6):                       # b_ir, b_iz, b_in, b_hr, b_hz, b_hn
        gru_p.append(_uniform(next(ks), (1, hidden), hidden))
    p["gru"] = tuple(gru_p)
    return p


def pack_params(p, *, latent_size, sensor_size, img_feat):
    """Pad / fuse the logical weights into the 128-lane layout the kernel uses.

    Done once at setup so the per-call forward has zero packing glue.
    """
    L, M = latent_size, sensor_size
    H = L + M
    hp = max(128, ((H + 127) // 128) * 128)

    # concat projection: encoder -> lanes [0:L), fc_sensor_in -> lanes [L:H)
    w_enc_p = jnp.zeros((img_feat, hp), jnp.float32).at[:, :L].set(p["w_enc_t"])
    w_sin_p = jnp.zeros((M, hp), jnp.float32).at[:, L:H].set(p["w_sin_t"])
    b_cat_p = (jnp.zeros((1, hp), jnp.float32)
               .at[:, :L].set(p["b_enc"])
               .at[:, L:H].set(p["b_sin"]))

    # GRU fused gates, blocks [r | z | n], each hp lanes wide
    (w_ir, w_iz, w_in, w_hr, w_hz, w_hn,
     b_ir, b_iz, b_in, b_hr, b_hz, b_hn) = p["gru"]

    def fuse_gates(ws, bs):
        w = jnp.zeros((hp, 3 * hp), jnp.float32)
        b = jnp.zeros((1, 3 * hp), jnp.float32)
        for g, (wg, bg) in enumerate(zip(ws, bs)):
            w = w.at[:H, g * hp:g * hp + H].set(wg)
            b = b.at[:, g * hp:g * hp + H].set(bg)
        return w, b

    w_gi_p, b_gi_p = fuse_gates((w_ir, w_iz, w_in), (b_ir, b_iz, b_in))
    w_gh_p, b_gh_p = fuse_gates((w_hr, w_hz, w_hn), (b_hr, b_hz, b_hn))

    # decoder: only the latent rows are non-zero (sensor lanes ignored)
    w_dec_p = jnp.zeros((hp, img_feat), jnp.float32).at[:L, :].set(p["w_dec_t"])
    # fc_sensor_out: reads lanes [L:H), writes lanes [0:M)
    w_sout_p = jnp.zeros((hp, hp), jnp.float32).at[L:H, :M].set(p["w_sout_t"])
    b_sout_p = jnp.zeros((1, hp), jnp.float32).at[:, :M].set(p["b_sout"])

    return dict(w_enc_p=w_enc_p, w_sin_p=w_sin_p, b_cat_p=b_cat_p,
                w_gi_p=w_gi_p, b_gi_p=b_gi_p, w_gh_p=w_gh_p, b_gh_p=b_gh_p,
                w_dec_p=w_dec_p, b_dec=p["b_dec"],
                w_sout_p=w_sout_p, b_sout_p=b_sout_p)


# ----------------------------------------------------------------------------
# Forward pass (matches SimpleLatentSensorPredictionNet.forward, GRU path)
# ----------------------------------------------------------------------------
@functools.partial(jax.jit, static_argnames=("latent_size", "sensor_size"))
def forward(packed, x_in, s_in, *, latent_size, sensor_size):
    B, Tp1, C, H, W = x_in.shape
    M = s_in.shape[2]
    L = latent_size
    T = Tp1 - 1
    img_feat = C * H * W
    N1, N2 = B * Tp1, B * T
    HP = packed["w_enc_p"].shape[1]

    x_flat = x_in.reshape(N1, img_feat).astype(jnp.float32)   # rows = b*(T+1)+t
    s_flat = s_in.reshape(N1, M).astype(jnp.float32)

    in_arrays = (x_flat, s_flat,
                 packed["w_enc_p"], packed["w_sin_p"], packed["b_cat_p"],
                 packed["w_gi_p"], packed["b_gi_p"],
                 packed["w_gh_p"], packed["b_gh_p"],
                 packed["w_dec_p"], packed["b_dec"],
                 packed["w_sout_p"], packed["b_sout_p"])
    out_shapes = (
        jax.ShapeDtypeStruct((N1 + N2, img_feat), jnp.float32),  # merged decode
        jax.ShapeDtypeStruct((N1, HP), jnp.float32),             # concat_in (padded)
        jax.ShapeDtypeStruct((N2, HP), jnp.float32),             # concat_out (padded)
        jax.ShapeDtypeStruct((N2, HP), jnp.float32),             # s_out (padded)
    )

    dec, xlat, hseq, sout = pl.pallas_call(
        functools.partial(_fused_kernel, B=B, Tp1=Tp1, HP=HP),
        out_shape=out_shapes,
        grid=(1,),
        in_specs=[_full_spec(a.shape) for a in in_arrays],
        out_specs=tuple(_full_spec(s.shape) for s in out_shapes),
        compiler_params=pltpu.CompilerParams(
            dimension_semantics=("arbitrary",)),
    )(*in_arrays)

    # cheap lane/row slices back to logical shapes
    x_out_ae = dec[:N1].reshape(N1, C, H, W)        # flat, as in the reference code
    x_out = dec[N1:].reshape(B, T, C, H, W)
    x_in_lat = xlat[:, :L].reshape(B, Tp1, L)
    x_out_lat = hseq[:, :L].reshape(B, T, L)
    s_out = sout[:, :M].reshape(B, T, M)
    return x_out, x_out_ae, x_out_lat, x_in_lat, s_out


# ----------------------------------------------------------------------------
# Pure-JAX reference (mirrors the PyTorch module) for a built-in sanity check
# ----------------------------------------------------------------------------
def forward_reference(params, x_in, s_in, *, latent_size, sensor_size):
    B, Tp1, C, H, W = x_in.shape
    M = s_in.shape[2]
    T = Tp1 - 1
    img_feat = C * H * W

    s_proj = (jnp.dot(s_in.reshape(-1, M), params["w_sin_t"])
              + params["b_sin"]).reshape(B, Tp1, M)
    x_lat = jnp.dot(x_in.reshape(-1, img_feat), params["w_enc_t"]) + params["b_enc"]
    x_out_ae = (jnp.dot(x_lat, params["w_dec_t"])
                + params["b_dec"]).reshape(B * Tp1, C, H, W)
    x_in_lat = x_lat.reshape(B, Tp1, latent_size)
    cat = jnp.concatenate([x_in_lat, s_proj], axis=2)

    (w_ir, w_iz, w_in, w_hr, w_hz, w_hn,
     b_ir, b_iz, b_in, b_hr, b_hz, b_hn) = params["gru"]
    h = cat[:, 0, :]
    outs = []
    for t in range(T):
        x_t = cat[:, t, :]
        r = jax.nn.sigmoid(jnp.dot(x_t, w_ir) + b_ir + jnp.dot(h, w_hr) + b_hr)
        z = jax.nn.sigmoid(jnp.dot(x_t, w_iz) + b_iz + jnp.dot(h, w_hz) + b_hz)
        n = jnp.tanh(jnp.dot(x_t, w_in) + b_in + r * (jnp.dot(h, w_hn) + b_hn))
        h = (1.0 - z) * n + z * h
        outs.append(h)
    co = jnp.stack(outs, axis=1)                                  # (B, T, L+M)

    s_out = (jnp.dot(co[:, :, -sensor_size:].reshape(-1, M), params["w_sout_t"])
             + params["b_sout"]).reshape(B, T, M)
    x_out_lat = co[:, :, :latent_size]
    x_out = (jnp.dot(x_out_lat.reshape(-1, latent_size), params["w_dec_t"])
             + params["b_dec"]).reshape(B, T, C, H, W)
    return x_out, x_out_ae, x_out_lat, x_in_lat, s_out


# ----------------------------------------------------------------------------
if __name__ == "__main__":
    # small config consistent with the module
    B, Tp1, C, H, W = 2, 6, 3, 16, 16          # seq length 5, one predicted frame
    LATENT = 32                                 # config['image_latent_size']
    SENSORS = 4                                 # len(config['sensor_fields'])
    T = Tp1 - 1

    key = jax.random.PRNGKey(0)
    k_x, k_s, k_p = jax.random.split(key, 3)
    x_in = jax.random.normal(k_x, (B, Tp1, C, H, W), jnp.float32)
    s_in = jax.random.normal(k_s, (B, Tp1, SENSORS), jnp.float32)

    params = init_params(k_p, latent_size=LATENT, sensor_size=SENSORS,
                         img_feat=C * H * W)
    packed = pack_params(params, latent_size=LATENT, sensor_size=SENSORS,
                         img_feat=C * H * W)

    outs = forward(packed, x_in, s_in, latent_size=LATENT, sensor_size=SENSORS)
    outs = jax.block_until_ready(outs)

    x_out, x_out_ae, x_out_lat, x_in_lat, s_out = outs
    assert x_out.shape == (B, T, C, H, W)
    assert x_out_ae.shape == (B * Tp1, C, H, W)
    assert x_out_lat.shape == (B, T, LATENT)
    assert x_in_lat.shape == (B, Tp1, LATENT)
    assert s_out.shape == (B, T, SENSORS)
    for o in outs:
        assert bool(jnp.all(jnp.isfinite(o)))

    # numerical check against a plain-JAX reference of the PyTorch forward
    refs = forward_reference(params, x_in, s_in,
                             latent_size=LATENT, sensor_size=SENSORS)
    for got, want in zip(outs, refs):
        assert got.shape == want.shape
        assert jnp.allclose(got, want, atol=2e-2, rtol=2e-2), \
            float(jnp.max(jnp.abs(got - want)))

    print("KERNEL_OK")
</pallas_src>

<mosaic_0001>
module attributes {stable_mosaic.version = 11 : i64} {
  func.func @_fused_kernel(%arg0: i32, %arg1: memref<12x768xf32, #tpu.memory_space<vmem>>, %arg2: memref<12x4xf32, #tpu.memory_space<vmem>>, %arg3: memref<768x128xf32, #tpu.memory_space<vmem>>, %arg4: memref<4x128xf32, #tpu.memory_space<vmem>>, %arg5: memref<1x128xf32, #tpu.memory_space<vmem>>, %arg6: memref<128x384xf32, #tpu.memory_space<vmem>>, %arg7: memref<1x384xf32, #tpu.memory_space<vmem>>, %arg8: memref<128x384xf32, #tpu.memory_space<vmem>>, %arg9: memref<1x384xf32, #tpu.memory_space<vmem>>, %arg10: memref<128x768xf32, #tpu.memory_space<vmem>>, %arg11: memref<1x768xf32, #tpu.memory_space<vmem>>, %arg12: memref<128x128xf32, #tpu.memory_space<vmem>>, %arg13: memref<1x128xf32, #tpu.memory_space<vmem>>, %arg14: memref<22x768xf32, #tpu.memory_space<vmem>>, %arg15: memref<12x128xf32, #tpu.memory_space<vmem>>, %arg16: memref<10x128xf32, #tpu.memory_space<vmem>>, %arg17: memref<10x128xf32, #tpu.memory_space<vmem>>) attributes {dimension_semantics = [#tpu.dimension_semantics<arbitrary>], iteration_bounds = array<i64: 1>, scalar_prefetch = 0 : i64, scratch_operands = 0 : i64, tpu.core_type = #tpu.core_type<tc>, window_params = [{pipeline_mode = #tpu.pipeline_mode<synchronous>, transform_indices = @transform_0, window_bounds = array<i64: 12, 768>}, {pipeline_mode = #tpu.pipeline_mode<synchronous>, transform_indices = @transform_1, window_bounds = array<i64: 12, 4>}, {pipeline_mode = #tpu.pipeline_mode<synchronous>, transform_indices = @transform_2, window_bounds = array<i64: 768, 128>}, {pipeline_mode = #tpu.pipeline_mode<synchronous>, transform_indices = @transform_3, window_bounds = array<i64: 4, 128>}, {pipeline_mode = #tpu.pipeline_mode<synchronous>, transform_indices = @transform_4, window_bounds = array<i64: 1, 128>}, {pipeline_mode = #tpu.pipeline_mode<synchronous>, transform_indices = @transform_5, window_bounds = array<i64: 128, 384>}, {pipeline_mode = #tpu.pipeline_mode<synchronous>, transform_indices = @transform_6, window_bounds = array<i64: 1, 384>}, {pipeline_mode = #tpu.pipeline_mode<synchronous>, transform_indices = @transform_7, window_bounds = array<i64: 128, 384>}, {pipeline_mode = #tpu.pipeline_mode<synchronous>, transform_indices = @transform_8, window_bounds = array<i64: 1, 384>}, {pipeline_mode = #tpu.pipeline_mode<synchronous>, transform_indices = @transform_9, window_bounds = array<i64: 128, 768>}, {pipeline_mode = #tpu.pipeline_mode<synchronous>, transform_indices = @transform_10, window_bounds = array<i64: 1, 768>}, {pipeline_mode = #tpu.pipeline_mode<synchronous>, transform_indices = @transform_11, window_bounds = array<i64: 128, 128>}, {pipeline_mode = #tpu.pipeline_mode<synchronous>, transform_indices = @transform_12, window_bounds = array<i64: 1, 128>}, {pipeline_mode = #tpu.pipeline_mode<synchronous>, transform_indices = @transform_13, window_bounds = array<i64: 22, 768>}, {pipeline_mode = #tpu.pipeline_mode<synchronous>, transform_indices = @transform_14, window_bounds = array<i64: 12, 128>}, {pipeline_mode = #tpu.pipeline_mode<synchronous>, transform_indices = @transform_15, window_bounds = array<i64: 10, 128>}, {pipeline_mode = #tpu.pipeline_mode<synchronous>, transform_indices = @transform_16, window_bounds = array<i64: 10, 128>}]} {
    %c0 = arith.constant 0 : index
    %c0_0 = arith.constant 0 : index
    %0 = vector.load %arg1[%c0, %c0_0] : memref<12x768xf32, #tpu.memory_space<vmem>>, vector<12x768xf32>
    %c0_1 = arith.constant 0 : index
    %c0_2 = arith.constant 0 : index
    %1 = vector.load %arg3[%c0_1, %c0_2] : memref<768x128xf32, #tpu.memory_space<vmem>>, vector<768x128xf32>
    %cst = arith.constant dense<0.000000e+00> : vector<12x128xf32>
    %2 = tpu.matmul %0, %1, %cst {dimension_numbers = #tpu.dot_dimension_numbers<[1], [0], [0], [1], [0, 0, 1, 1], [], []>} : vector<12x768xf32>, vector<768x128xf32>, vector<12x128xf32> -> vector<12x128xf32>
    %c0_3 = arith.constant 0 : index
    %c0_4 = arith.constant 0 : index
    %3 = vector.load %arg2[%c0_3, %c0_4] : memref<12x4xf32, #tpu.memory_space<vmem>>, vector<12x4xf32>
    %c0_5 = arith.constant 0 : index
    %c0_6 = arith.constant 0 : index
    %4 = vector.load %arg4[%c0_5, %c0_6] : memref<4x128xf32, #tpu.memory_space<vmem>>, vector<4x128xf32>
    %cst_7 = arith.constant dense<0.000000e+00> : vector<12x128xf32>
    %5 = tpu.matmul %3, %4, %cst_7 {dimension_numbers = #tpu.dot_dimension_numbers<[1], [0], [0], [1], [0, 0, 1, 1], [], []>} : vector<12x4xf32>, vector<4x128xf32>, vector<12x128xf32> -> vector<12x128xf32>
    %6 = arith.addf %2, %5 : vector<12x128xf32>
    %c0_8 = arith.constant 0 : index
    %c0_9 = arith.constant 0 : index
    %7 = vector.load %arg5[%c0_8, %c0_9] : memref<1x128xf32, #tpu.memory_space<vmem>>, vector<1x128xf32>
    %8 = vector.broadcast %7 : vector<1x128xf32> to vector<12x128xf32>
    %9 = arith.addf %6, %8 : vector<12x128xf32>
    %c0_10 = arith.constant 0 : index
    %c0_11 = arith.constant 0 : index
    %10 = vector.load %arg15[%c0_10, %c0_11] : memref<12x128xf32, #tpu.memory_space<vmem>>, vector<12x128xf32>
    tpu.vector_store %arg15[%c0_10, %c0_11], %9 {strides = array<i32>} : memref<12x128xf32, #tpu.memory_space<vmem>>, vector<12x128xf32>,
    %11 = vector.shape_cast %9 : vector<12x128xf32> to vector<2x6x128xf32>
    %c0_12 = arith.constant 0 : index
    %c0_13 = arith.constant 0 : index
    %12 = vector.load %arg6[%c0_12, %c0_13] : memref<128x384xf32, #tpu.memory_space<vmem>>, vector<128x384xf32>
    %cst_14 = arith.constant dense<0.000000e+00> : vector<12x384xf32>
    %13 = tpu.matmul %9, %12, %cst_14 {dimension_numbers = #tpu.dot_dimension_numbers<[1], [0], [0], [1], [0, 0, 1, 1], [], []>} : vector<12x128xf32>, vector<128x384xf32>, vector<12x384xf32> -> vector<12x384xf32>
    %c0_15 = arith.constant 0 : index
    %c0_16 = arith.constant 0 : index
    %14 = vector.load %arg7[%c0_15, %c0_16] : memref<1x384xf32, #tpu.memory_space<vmem>>, vector<1x384xf32>
    %15 = vector.broadcast %14 : vector<1x384xf32> to vector<12x384xf32>
    %16 = arith.addf %13, %15 : vector<12x384xf32>
    %17 = vector.shape_cast %16 : vector<12x384xf32> to vector<2x6x384xf32>
    %c0_17 = arith.constant 0 : index
    %c0_18 = arith.constant 0 : index
    %18 = vector.load %arg8[%c0_17, %c0_18] : memref<128x384xf32, #tpu.memory_space<vmem>>, vector<128x384xf32>
    %c0_19 = arith.constant 0 : index
    %c0_20 = arith.constant 0 : index
    %19 = vector.load %arg9[%c0_19, %c0_20] : memref<1x384xf32, #tpu.memory_space<vmem>>, vector<1x384xf32>
    %20 = vector.extract_strided_slice %11 {offsets = [0, 0, 0], sizes = [2, 1, 128], strides = [1, 1, 1]} : vector<2x6x128xf32> to vector<2x1x128xf32>
    %21 = vector.shape_cast %20 : vector<2x1x128xf32> to vector<2x128xf32>
    %22 = vector.extract_strided_slice %17 {offsets = [0, 0, 0], sizes = [2, 1, 384], strides = [1, 1, 1]} : vector<2x6x384xf32> to vector<2x1x384xf32>
    %23 = vector.shape_cast %22 : vector<2x1x384xf32> to vector<2x384xf32>
    %cst_21 = arith.constant dense<0.000000e+00> : vector<2x384xf32>
    %24 = tpu.matmul %21, %18, %cst_21 {dimension_numbers = #tpu.dot_dimension_numbers<[1], [0], [0], [1], [0, 0, 1, 1], [], []>} : vector<2x128xf32>, vector<128x384xf32>, vector<2x384xf32> -> vector<2x384xf32>
    %25 = vector.broadcast %19 : vector<1x384xf32> to vector<2x384xf32>
    %26 = arith.addf %24, %25 : vector<2x384xf32>
    %27 = vector.extract_strided_slice %23 {offsets = [0, 0], sizes = [2, 128], strides = [1, 1]} : vector<2x384xf32> to vector<2x128xf32>
    %28 = vector.extract_strided_slice %26 {offsets = [0, 0], sizes = [2, 128], strides = [1, 1]} : vector<2x384xf32> to vector<2x128xf32>
    %29 = arith.addf %27, %28 : vector<2x128xf32>
    %30 = arith.negf %29 : vector<2x128xf32>
    %31 = math.exp %30 : vector<2x128xf32>
    %cst_22 = arith.constant 1.000000e+00 : f32
    %32 = vector.broadcast %cst_22 : f32 to vector<2x128xf32>
    %33 = arith.addf %32, %31 : vector<2x128xf32>
    %34 = arith.divf %32, %33 : vector<2x128xf32>
    %35 = vector.extract_strided_slice %23 {offsets = [0, 128], sizes = [2, 128], strides = [1, 1]} : vector<2x384xf32> to vector<2x128xf32>
    %36 = vector.extract_strided_slice %26 {offsets = [0, 128], sizes = [2, 128], strides = [1, 1]} : vector<2x384xf32> to vector<2x128xf32>
    %37 = arith.addf %35, %36 : vector<2x128xf32>
    %38 = arith.negf %37 : vector<2x128xf32>
    %39 = math.exp %38 : vector<2x128xf32>
    %cst_23 = arith.constant 1.000000e+00 : f32
    %40 = vector.broadcast %cst_23 : f32 to vector<2x128xf32>
    %41 = arith.addf %40, %39 : vector<2x128xf32>
    %42 = arith.divf %40, %41 : vector<2x128xf32>
    %43 = vector.extract_strided_slice %23 {offsets = [0, 256], sizes = [2, 128], strides = [1, 1]} : vector<2x384xf32> to vector<2x128xf32>
    %44 = vector.extract_strided_slice %26 {offsets = [0, 256], sizes = [2, 128], strides = [1, 1]} : vector<2x384xf32> to vector<2x128xf32>
    %45 = arith.mulf %34, %44 : vector<2x128xf32>
    %46 = arith.addf %43, %45 : vector<2x128xf32>
    %47 = math.tanh %46 : vector<2x128xf32>
    %cst_24 = arith.constant 1.000000e+00 : f32
    %48 = vector.broadcast %cst_24 : f32 to vector<2x128xf32>
    %49 = arith.subf %48, %42 : vector<2x128xf32>
    %50 = arith.mulf %49, %47 : vector<2x128xf32>
    %51 = arith.mulf %42, %21 : vector<2x128xf32>
    %52 = arith.addf %50, %51 : vector<2x128xf32>
    %53 = vector.extract_strided_slice %17 {offsets = [0, 1, 0], sizes = [2, 1, 384], strides = [1, 1, 1]} : vector<2x6x384xf32> to vector<2x1x384xf32>
    %54 = vector.shape_cast %53 : vector<2x1x384xf32> to vector<2x384xf32>
    %cst_25 = arith.constant dense<0.000000e+00> : vector<2x384xf32>
    %55 = tpu.matmul %52, %18, %cst_25 {dimension_numbers = #tpu.dot_dimension_numbers<[1], [0], [0], [1], [0, 0, 1, 1], [], []>} : vector<2x128xf32>, vector<128x384xf32>, vector<2x384xf32> -> vector<2x384xf32>
    %56 = vector.broadcast %19 : vector<1x384xf32> to vector<2x384xf32>
    %57 = arith.addf %55, %56 : vector<2x384xf32>
    %58 = vector.extract_strided_slice %54 {offsets = [0, 0], sizes = [2, 128], strides = [1, 1]} : vector<2x384xf32> to vector<2x128xf32>
    %59 = vector.extract_strided_slice %57 {offsets = [0, 0], sizes = [2, 128], strides = [1, 1]} : vector<2x384xf32> to vector<2x128xf32>
    %60 = arith.addf %58, %59 : vector<2x128xf32>
    %61 = arith.negf %60 : vector<2x128xf32>
    %62 = math.exp %61 : vector<2x128xf32>
    %cst_26 = arith.constant 1.000000e+00 : f32
    %63 = vector.broadcast %cst_26 : f32 to vector<2x128xf32>
    %64 = arith.addf %63, %62 : vector<2x128xf32>
    %65 = arith.divf %63, %64 : vector<2x128xf32>
    %66 = vector.extract_strided_slice %54 {offsets = [0, 128], sizes = [2, 128], strides = [1, 1]} : vector<2x384xf32> to vector<2x128xf32>
    %67 = vector.extract_strided_slice %57 {offsets = [0, 128], sizes = [2, 128], strides = [1, 1]} : vector<2x384xf32> to vector<2x128xf32>
    %68 = arith.addf %66, %67 : vector<2x128xf32>
    %69 = arith.negf %68 : vector<2x128xf32>
    %70 = math.exp %69 : vector<2x128xf32>
    %cst_27 = arith.constant 1.000000e+00 : f32
    %71 = vector.broadcast %cst_27 : f32 to vector<2x128xf32>
    %72 = arith.addf %71, %70 : vector<2x128xf32>
    %73 = arith.divf %71, %72 : vector<2x128xf32>
    %74 = vector.extract_strided_slice %54 {offsets = [0, 256], sizes = [2, 128], strides = [1, 1]} : vector<2x384xf32> to vector<2x128xf32>
    %75 = vector.extract_strided_slice %57 {offsets = [0, 256], sizes = [2, 128], strides = [1, 1]} : vector<2x384xf32> to vector<2x128xf32>
    %76 = arith.mulf %65, %75 : vector<2x128xf32>
    %77 = arith.addf %74, %76 : vector<2x128xf32>
    %78 = math.tanh %77 : vector<2x128xf32>
    %cst_28 = arith.constant 1.000000e+00 : f32
    %79 = vector.broadcast %cst_28 : f32 to vector<2x128xf32>
    %80 = arith.subf %79, %73 : vector<2x128xf32>
    %81 = arith.mulf %80, %78 : vector<2x128xf32>
    %82 = arith.mulf %73, %52 : vector<2x128xf32>
    %83 = arith.addf %81, %82 : vector<2x128xf32>
    %84 = vector.extract_strided_slice %17 {offsets = [0, 2, 0], sizes = [2, 1, 384], strides = [1, 1, 1]} : vector<2x6x384xf32> to vector<2x1x384xf32>
    %85 = vector.shape_cast %84 : vector<2x1x384xf32> to vector<2x384xf32>
    %cst_29 = arith.constant dense<0.000000e+00> : vector<2x384xf32>
    %86 = tpu.matmul %83, %18, %cst_29 {dimension_numbers = #tpu.dot_dimension_numbers<[1], [0], [0], [1], [0, 0, 1, 1], [], []>} : vector<2x128xf32>, vector<128x384xf32>, vector<2x384xf32> -> vector<2x384xf32>
    %87 = vector.broadcast %19 : vector<1x384xf32> to vector<2x384xf32>
    %88 = arith.addf %86, %87 : vector<2x384xf32>
    %89 = vector.extract_strided_slice %85 {offsets = [0, 0], sizes = [2, 128], strides = [1, 1]} : vector<2x384xf32> to vector<2x128xf32>
    %90 = vector.extract_strided_slice %88 {offsets = [0, 0], sizes = [2, 128], strides = [1, 1]} : vector<2x384xf32> to vector<2x128xf32>
    %91 = arith.addf %89, %90 : vector<2x128xf32>
    %92 = arith.negf %91 : vector<2x128xf32>
    %93 = math.exp %92 : vector<2x128xf32>
    %cst_30 = arith.constant 1.000000e+00 : f32
    %94 = vector.broadcast %cst_30 : f32 to vector<2x128xf32>
    %95 = arith.addf %94, %93 : vector<2x128xf32>
    %96 = arith.divf %94, %95 : vector<2x128xf32>
    %97 = vector.extract_strided_slice %85 {offsets = [0, 128], sizes = [2, 128], strides = [1, 1]} : vector<2x384xf32> to vector<2x128xf32>
    %98 = vector.extract_strided_slice %88 {offsets = [0, 128], sizes = [2, 128], strides = [1, 1]} : vector<2x384xf32> to vector<2x128xf32>
    %99 = arith.addf %97, %98 : vector<2x128xf32>
    %100 = arith.negf %99 : vector<2x128xf32>
    %101 = math.exp %100 : vector<2x128xf32>
    %cst_31 = arith.constant 1.000000e+00 : f32
    %102 = vector.broadcast %cst_31 : f32 to vector<2x128xf32>
    %103 = arith.addf %102, %101 : vector<2x128xf32>
    %104 = arith.divf %102, %103 : vector<2x128xf32>
    %105 = vector.extract_strided_slice %85 {offsets = [0, 256], sizes = [2, 128], strides = [1, 1]} : vector<2x384xf32> to vector<2x128xf32>
    %106 = vector.extract_strided_slice %88 {offsets = [0, 256], sizes = [2, 128], strides = [1, 1]} : vector<2x384xf32> to vector<2x128xf32>
    %107 = arith.mulf %96, %106 : vector<2x128xf32>
    %108 = arith.addf %105, %107 : vector<2x128xf32>
    %109 = math.tanh %108 : vector<2x128xf32>
    %cst_32 = arith.constant 1.000000e+00 : f32
    %110 = vector.broadcast %cst_32 : f32 to vector<2x128xf32>
    %111 = arith.subf %110, %104 : vector<2x128xf32>
    %112 = arith.mulf %111, %109 : vector<2x128xf32>
    %113 = arith.mulf %104, %83 : vector<2x128xf32>
    %114 = arith.addf %112, %113 : vector<2x128xf32>
    %115 = vector.extract_strided_slice %17 {offsets = [0, 3, 0], sizes = [2, 1, 384], strides = [1, 1, 1]} : vector<2x6x384xf32> to vector<2x1x384xf32>
    %116 = vector.shape_cast %115 : vector<2x1x384xf32> to vector<2x384xf32>
    %cst_33 = arith.constant dense<0.000000e+00> : vector<2x384xf32>
    %117 = tpu.matmul %114, %18, %cst_33 {dimension_numbers = #tpu.dot_dimension_numbers<[1], [0], [0], [1], [0, 0, 1, 1], [], []>} : vector<2x128xf32>, vector<128x384xf32>, vector<2x384xf32> -> vector<2x384xf32>
    %118 = vector.broadcast %19 : vector<1x384xf32> to vector<2x384xf32>
    %119 = arith.addf %117, %118 : vector<2x384xf32>
    %120 = vector.extract_strided_slice %116 {offsets = [0, 0], sizes = [2, 128], strides = [1, 1]} : vector<2x384xf32> to vector<2x128xf32>
    %121 = vector.extract_strided_slice %119 {offsets = [0, 0], sizes = [2, 128], strides = [1, 1]} : vector<2x384xf32> to vector<2x128xf32>
    %122 = arith.addf %120, %121 : vector<2x128xf32>
    %123 = arith.negf %122 : vector<2x128xf32>
    %124 = math.exp %123 : vector<2x128xf32>
    %cst_34 = arith.constant 1.000000e+00 : f32
    %125 = vector.broadcast %cst_34 : f32 to vector<2x128xf32>
    %126 = arith.addf %125, %124 : vector<2x128xf32>
    %127 = arith.divf %125, %126 : vector<2x128xf32>
    %128 = vector.extract_strided_slice %116 {offsets = [0, 128], sizes = [2, 128], strides = [1, 1]} : vector<2x384xf32> to vector<2x128xf32>
    %129 = vector.extract_strided_slice %119 {offsets = [0, 128], sizes = [2, 128], strides = [1, 1]} : vector<2x384xf32> to vector<2x128xf32>
    %130 = arith.addf %128, %129 : vector<2x128xf32>
    %131 = arith.negf %130 : vector<2x128xf32>
    %132 = math.exp %131 : vector<2x128xf32>
    %cst_35 = arith.constant 1.000000e+00 : f32
    %133 = vector.broadcast %cst_35 : f32 to vector<2x128xf32>
    %134 = arith.addf %133, %132 : vector<2x128xf32>
    %135 = arith.divf %133, %134 : vector<2x128xf32>
    %136 = vector.extract_strided_slice %116 {offsets = [0, 256], sizes = [2, 128], strides = [1, 1]} : vector<2x384xf32> to vector<2x128xf32>
    %137 = vector.extract_strided_slice %119 {offsets = [0, 256], sizes = [2, 128], strides = [1, 1]} : vector<2x384xf32> to vector<2x128xf32>
    %138 = arith.mulf %127, %137 : vector<2x128xf32>
    %139 = arith.addf %136, %138 : vector<2x128xf32>
    %140 = math.tanh %139 : vector<2x128xf32>
    %cst_36 = arith.constant 1.000000e+00 : f32
    %141 = vector.broadcast %cst_36 : f32 to vector<2x128xf32>
    %142 = arith.subf %141, %135 : vector<2x128xf32>
    %143 = arith.mulf %142, %140 : vector<2x128xf32>
    %144 = arith.mulf %135, %114 : vector<2x128xf32>
    %145 = arith.addf %143, %144 : vector<2x128xf32>
    %146 = vector.extract_strided_slice %17 {offsets = [0, 4, 0], sizes = [2, 1, 384], strides = [1, 1, 1]} : vector<2x6x384xf32> to vector<2x1x384xf32>
    %147 = vector.shape_cast %146 : vector<2x1x384xf32> to vector<2x384xf32>
    %cst_37 = arith.constant dense<0.000000e+00> : vector<2x384xf32>
    %148 = tpu.matmul %145, %18, %cst_37 {dimension_numbers = #tpu.dot_dimension_numbers<[1], [0], [0], [1], [0, 0, 1, 1], [], []>} : vector<2x128xf32>, vector<128x384xf32>, vector<2x384xf32> -> vector<2x384xf32>
    %149 = vector.broadcast %19 : vector<1x384xf32> to vector<2x384xf32>
    %150 = arith.addf %148, %149 : vector<2x384xf32>
    %151 = vector.extract_strided_slice %147 {offsets = [0, 0], sizes = [2, 128], strides = [1, 1]} : vector<2x384xf32> to vector<2x128xf32>
    %152 = vector.extract_strided_slice %150 {offsets = [0, 0], sizes = [2, 128], strides = [1, 1]} : vector<2x384xf32> to vector<2x128xf32>
    %153 = arith.addf %151, %152 : vector<2x128xf32>
    %154 = arith.negf %153 : vector<2x128xf32>
    %155 = math.exp %154 : vector<2x128xf32>
    %cst_38 = arith.constant 1.000000e+00 : f32
    %156 = vector.broadcast %cst_38 : f32 to vector<2x128xf32>
    %157 = arith.addf %156, %155 : vector<2x128xf32>
    %158 = arith.divf %156, %157 : vector<2x128xf32>
    %159 = vector.extract_strided_slice %147 {offsets = [0, 128], sizes = [2, 128], strides = [1, 1]} : vector<2x384xf32> to vector<2x128xf32>
    %160 = vector.extract_strided_slice %150 {offsets = [0, 128], sizes = [2, 128], strides = [1, 1]} : vector<2x384xf32> to vector<2x128xf32>
    %161 = arith.addf %159, %160 : vector<2x128xf32>
    %162 = arith.negf %161 : vector<2x128xf32>
    %163 = math.exp %162 : vector<2x128xf32>
    %cst_39 = arith.constant 1.000000e+00 : f32
    %164 = vector.broadcast %cst_39 : f32 to vector<2x128xf32>
    %165 = arith.addf %164, %163 : vector<2x128xf32>
    %166 = arith.divf %164, %165 : vector<2x128xf32>
    %167 = vector.extract_strided_slice %147 {offsets = [0, 256], sizes = [2, 128], strides = [1, 1]} : vector<2x384xf32> to vector<2x128xf32>
    %168 = vector.extract_strided_slice %150 {offsets = [0, 256], sizes = [2, 128], strides = [1, 1]} : vector<2x384xf32> to vector<2x128xf32>
    %169 = arith.mulf %158, %168 : vector<2x128xf32>
    %170 = arith.addf %167, %169 : vector<2x128xf32>
    %171 = math.tanh %170 : vector<2x128xf32>
    %cst_40 = arith.constant 1.000000e+00 : f32
    %172 = vector.broadcast %cst_40 : f32 to vector<2x128xf32>
    %173 = arith.subf %172, %166 : vector<2x128xf32>
    %174 = arith.mulf %173, %171 : vector<2x128xf32>
    %175 = arith.mulf %166, %145 : vector<2x128xf32>
    %176 = arith.addf %174, %175 : vector<2x128xf32>
    %177 = vector.shape_cast %52 : vector<2x128xf32> to vector<2x1x128xf32>
    %178 = vector.shape_cast %83 : vector<2x128xf32> to vector<2x1x128xf32>
    %179 = vector.shape_cast %114 : vector<2x128xf32> to vector<2x1x128xf32>
    %180 = vector.shape_cast %145 : vector<2x128xf32> to vector<2x1x128xf32>
    %181 = vector.shape_cast %176 : vector<2x128xf32> to vector<2x1x128xf32>
    %182 = tpu.concatenate %177, %178, %179, %180, %181 in 1 : vector<2x1x128xf32>, vector<2x1x128xf32>, vector<2x1x128xf32>, vector<2x1x128xf32>, vector<2x1x128xf32> -> vector<2x5x128xf32>
    %183 = vector.shape_cast %182 : vector<2x5x128xf32> to vector<10x128xf32>
    %c0_41 = arith.constant 0 : index
    %c0_42 = arith.constant 0 : index
    %184 = vector.load %arg16[%c0_41, %c0_42] : memref<10x128xf32, #tpu.memory_space<vmem>>, vector<10x128xf32>
    tpu.vector_store %arg16[%c0_41, %c0_42], %183 {strides = array<i32>} : memref<10x128xf32, #tpu.memory_space<vmem>>, vector<10x128xf32>,
    %c0_43 = arith.constant 0 : index
    %c0_44 = arith.constant 0 : index
    %185 = vector.load %arg12[%c0_43, %c0_44] : memref<128x128xf32, #tpu.memory_space<vmem>>, vector<128x128xf32>
    %cst_45 = arith.constant dense<0.000000e+00> : vector<10x128xf32>
    %186 = tpu.matmul %183, %185, %cst_45 {dimension_numbers = #tpu.dot_dimension_numbers<[1], [0], [0], [1], [0, 0, 1, 1], [], []>} : vector<10x128xf32>, vector<128x128xf32>, vector<10x128xf32> -> vector<10x128xf32>
    %c0_46 = arith.constant 0 : index
    %c0_47 = arith.constant 0 : index
    %187 = vector.load %arg13[%c0_46, %c0_47] : memref<1x128xf32, #tpu.memory_space<vmem>>, vector<1x128xf32>
    %188 = vector.broadcast %187 : vector<1x128xf32> to vector<10x128xf32>
    %189 = arith.addf %186, %188 : vector<10x128xf32>
    %c0_48 = arith.constant 0 : index
    %c0_49 = arith.constant 0 : index
    %190 = vector.load %arg17[%c0_48, %c0_49] : memref<10x128xf32, #tpu.memory_space<vmem>>, vector<10x128xf32>
    tpu.vector_store %arg17[%c0_48, %c0_49], %189 {strides = array<i32>} : memref<10x128xf32, #tpu.memory_space<vmem>>, vector<10x128xf32>,
    %191 = tpu.concatenate %9, %183 in 0 : vector<12x128xf32>, vector<10x128xf32> -> vector<22x128xf32>
    %c0_50 = arith.constant 0 : index
    %c0_51 = arith.constant 0 : index
    %192 = vector.load %arg10[%c0_50, %c0_51] : memref<128x768xf32, #tpu.memory_space<vmem>>, vector<128x768xf32>
    %cst_52 = arith.constant dense<0.000000e+00> : vector<22x768xf32>
    %193 = tpu.matmul %191, %192, %cst_52 {dimension_numbers = #tpu.dot_dimension_numbers<[1], [0], [0], [1], [0, 0, 1, 1], [], []>} : vector<22x128xf32>, vector<128x768xf32>, vector<22x768xf32> -> vector<22x768xf32>
    %c0_53 = arith.constant 0 : index
    %c0_54 = arith.constant 0 : index
    %194 = vector.load %arg11[%c0_53, %c0_54] : memref<1x768xf32, #tpu.memory_space<vmem>>, vector<1x768xf32>
    %195 = vector.broadcast %194 : vector<1x768xf32> to vector<22x768xf32>
    %196 = arith.addf %193, %195 : vector<22x768xf32>
    %c0_55 = arith.constant 0 : index
    %c0_56 = arith.constant 0 : index
    %197 = vector.load %arg14[%c0_55, %c0_56] : memref<22x768xf32, #tpu.memory_space<vmem>>, vector<22x768xf32>
    tpu.vector_store %arg14[%c0_55, %c0_56], %196 {strides = array<i32>} : memref<22x768xf32, #tpu.memory_space<vmem>>, vector<22x768xf32>,
    return
  }
  func.func @transform_0(%arg0: i32) -> (i32, i32) {
    %c0_i32 = arith.constant 0 : i32
    %c0_i32_0 = arith.constant 0 : i32
    %c0_i32_1 = arith.constant 0 : i32
    return %c0_i32, %c0_i32_0 : i32, i32
  }
  func.func @transform_1(%arg0: i32) -> (i32, i32) {
    %c0_i32 = arith.constant 0 : i32
    %c0_i32_0 = arith.constant 0 : i32
    %c0_i32_1 = arith.constant 0 : i32
    return %c0_i32, %c0_i32_0 : i32, i32
  }
  func.func @transform_2(%arg0: i32) -> (i32, i32) {
    %c0_i32 = arith.constant 0 : i32
    %c0_i32_0 = arith.constant 0 : i32
    %c0_i32_1 = arith.constant 0 : i32
    return %c0_i32, %c0_i32_0 : i32, i32
  }
  func.func @transform_3(%arg0: i32) -> (i32, i32) {
    %c0_i32 = arith.constant 0 : i32
    %c0_i32_0 = arith.constant 0 : i32
    %c0_i32_1 = arith.constant 0 : i32
    return %c0_i32, %c0_i32_0 : i32, i32
  }
  func.func @transform_4(%arg0: i32) -> (i32, i32) {
    %c0_i32 = arith.constant 0 : i32
    %c0_i32_0 = arith.constant 0 : i32
    %c0_i32_1 = arith.constant 0 : i32
    return %c0_i32, %c0_i32_0 : i32, i32
  }
  func.func @transform_5(%arg0: i32) -> (i32, i32) {
    %c0_i32 = arith.constant 0 : i32
    %c0_i32_0 = arith.constant 0 : i32
    %c0_i32_1 = arith.constant 0 : i32
    return %c0_i32, %c0_i32_0 : i32, i32
  }
  func.func @transform_6(%arg0: i32) -> (i32, i32) {
    %c0_i32 = arith.constant 0 : i32
    %c0_i32_0 = arith.constant 0 : i32
    %c0_i32_1 = arith.constant 0 : i32
    return %c0_i32, %c0_i32_0 : i32, i32
  }
  func.func @transform_7(%arg0: i32) -> (i32, i32) {
    %c0_i32 = arith.constant 0 : i32
    %c0_i32_0 = arith.constant 0 : i32
    %c0_i32_1 = arith.constant 0 : i32
    return %c0_i32, %c0_i32_0 : i32, i32
  }
  func.func @transform_8(%arg0: i32) -> (i32, i32) {
    %c0_i32 = arith.constant 0 : i32
    %c0_i32_0 = arith.constant 0 : i32
    %c0_i32_1 = arith.constant 0 : i32
    return %c0_i32, %c0_i32_0 : i32, i32
  }
  func.func @transform_9(%arg0: i32) -> (i32, i32) {
    %c0_i32 = arith.constant 0 : i32
    %c0_i32_0 = arith.constant 0 : i32
    %c0_i32_1 = arith.constant 0 : i32
    return %c0_i32, %c0_i32_0 : i32, i32
  }
  func.func @transform_10(%arg0: i32) -> (i32, i32) {
    %c0_i32 = arith.constant 0 : i32
    %c0_i32_0 = arith.constant 0 : i32
    %c0_i32_1 = arith.constant 0 : i32
    return %c0_i32, %c0_i32_0 : i32, i32
  }
  func.func @transform_11(%arg0: i32) -> (i32, i32) {
    %c0_i32 = arith.constant 0 : i32
    %c0_i32_0 = arith.constant 0 : i32
    %c0_i32_1 = arith.constant 0 : i32
    return %c0_i32, %c0_i32_0 : i32, i32
  }
  func.func @transform_12(%arg0: i32) -> (i32, i32) {
    %c0_i32 = arith.constant 0 : i32
    %c0_i32_0 = arith.constant 0 : i32
    %c0_i32_1 = arith.constant 0 : i32
    return %c0_i32, %c0_i32_0 : i32, i32
  }
  func.func @transform_13(%arg0: i32) -> (i32, i32) {
    %c0_i32 = arith.constant 0 : i32
    %c0_i32_0 = arith.constant 0 : i32
    %c0_i32_1 = arith.constant 0 : i32
    return %c0_i32, %c0_i32_0 : i32, i32
  }
  func.func @transform_14(%arg0: i32) -> (i32, i32) {
    %c0_i32 = arith.constant 0 : i32
    %c0_i32_0 = arith.constant 0 : i32
    %c0_i32_1 = arith.constant 0 : i32
    return %c0_i32, %c0_i32_0 : i32, i32
  }
  func.func @transform_15(%arg0: i32) -> (i32, i32) {
    %c0_i32 = arith.constant 0 : i32
    %c0_i32_0 = arith.constant 0 : i32
    %c0_i32_1 = arith.constant 0 : i32
    return %c0_i32, %c0_i32_0 : i32, i32
  }
  func.func @transform_16(%arg0: i32) -> (i32, i32) {
    %c0_i32 = arith.constant 0 : i32
    %c0_i32_0 = arith.constant 0 : i32
    %c0_i32_1 = arith.constant 0 : i32
    return %c0_i32, %c0_i32_0 : i32, i32
  }
}

</mosaic_0001>

<llo_original>
// kernel: forward.1
$region0: #{forward.1}
  #allocation0 [shape = 'u32[]', space=smem, size = 0x4, offset = 0x4, fixed_abs, tag = 'smem constant byte address 0x4 - core index']
  #allocation1 [shape = 'u32[144,128]{1,0:T(1,128)}', space=vmem, size = 0x12000, scoped, tag = 'internal scratch']
  %s0 = inlined_call_operand.vmem [shape: f32[12,768], index: 0, kind: input, shape index: {}]
  %s1 = inlined_call_operand.vmem [shape: f32[12,4], index: 1, kind: input, shape index: {}]
  %s2 = inlined_call_operand.hbm [shape: f32[768,128], index: 2, kind: input, shape index: {}]
  %s3 = inlined_call_operand.vmem [shape: f32[4,128], index: 3, kind: input, shape index: {}]
  %s4 = inlined_call_operand.vmem [shape: f32[1,128], index: 4, kind: input, shape index: {}]
  %s5 = inlined_call_operand.vmem [shape: f32[128,384], index: 5, kind: input, shape index: {}]
  %s6 = inlined_call_operand.vmem [shape: f32[1,384], index: 6, kind: input, shape index: {}]
  %s7 = inlined_call_operand.hbm [shape: f32[128,384], index: 7, kind: input, shape index: {}]
  %s8 = inlined_call_operand.vmem [shape: f32[1,384], index: 8, kind: input, shape index: {}]
  %s9 = inlined_call_operand.hbm [shape: f32[128,768], index: 9, kind: input, shape index: {}]
  %s10 = inlined_call_operand.vmem [shape: f32[1,768], index: 10, kind: input, shape index: {}]
  %s11 = inlined_call_operand.vmem [shape: f32[128,128], index: 11, kind: input, shape index: {}]
  %s12 = inlined_call_operand.vmem [shape: f32[1,128], index: 12, kind: input, shape index: {}]
  %s13 = inlined_call_operand.vmem [shape: f32[22,768], index: 13, kind: output, shape index: {0}]
  %s14 = inlined_call_operand.vmem [shape: f32[12,128], index: 14, kind: output, shape index: {1}]
  %s15 = inlined_call_operand.vmem [shape: f32[10,128], index: 15, kind: output, shape index: {2}]
  %s16 = inlined_call_operand.vmem [shape: f32[10,128], index: 16, kind: output, shape index: {3}]
  %17 = xla_tuple %s13, %s14, %s15, %s16
  %s18 = sld [smem:[#allocation0]]
  $region98: #{forward.1} parent=0
    _
  %s20 = ssub.s32 1, %s18
  %s21 = scalar_select 0, %s20, %s18
  $region1: #{forward.1} parent=0
    #allocation2 [shape = 'u8[393216]{0}', space=vmem, size = 0x60000, scoped, tag = 'input window, operand 2, single buffered']
    #allocation3 [shape = 's32[1]{0}', space=sflag, size = 0x4, scoped, tag = 'scoped memory for forward.1']
    #allocation4 [shape = 'u8[196608]{0}', space=vmem, size = 0x30000, scoped, tag = 'input window, operand 7, single buffered']
    #allocation5 [shape = 's32[1]{0}', space=sflag, size = 0x4, scoped, tag = 'scoped memory for forward.1']
    #allocation6 [shape = 'u8[393216]{0}', space=vmem, size = 0x60000, scoped, tag = 'input window, operand 9, single buffered']
    %22 = vsyncpa [#allocation3], 0
    %23 = vsyncpa [#allocation5], 0
    // Predicated region
    $region2: #{forward.1} parent=1 // pred_check
      _
    $region3: #{forward.1} parent=1 // pred_check_branch
      %25 = sbr.rel (0) target = $region5
    $region4: #{forward.1} parent=1 // pred_region
      _
    $region5: #{forward.1} parent=1 // pred_fallthru
      _
    // Predicated region
    $region6: #{forward.1} parent=1 // pred_check
      _
    $region7: #{forward.1} parent=1 // pred_check_branch
      %27 = sbr.rel (0) target = $region9
    $region8: #{forward.1} parent=1 // pred_region
      _
    $region9: #{forward.1} parent=1 // pred_fallthru
      _
    // Predicated region
    $region10: #{forward.1} parent=1 // pred_check
      _
    $region11: #{forward.1} parent=1 // pred_check_branch
      %29 = sbr.rel (0) target = $region13
    $region12: #{forward.1} parent=1 // pred_region
      %s31 = ssub.s32 12288, 12288
      %32 = vsyncadd [#allocation3], %s31
      %s33 = sshll.u32 [#allocation2], 4
      %s34 = int_to_ptr.vmem [resolvable:$true] %s33
      %39 = dma.hbm_to_vmem [thread:$0]  %s2, 12288, %s34, [#allocation3], 128, 128, 8
    $region13: #{forward.1} parent=1 // pred_fallthru
      _
    // Predicated region
    $region14: #{forward.1} parent=1 // pred_check
      _
    $region15: #{forward.1} parent=1 // pred_check_branch
      %41 = sbr.rel (0) target = $region17
    $region16: #{forward.1} parent=1 // pred_region
      _
    $region17: #{forward.1} parent=1 // pred_fallthru
      _
    // Predicated region
    $region18: #{forward.1} parent=1 // pred_check
      _
    $region19: #{forward.1} parent=1 // pred_check_branch
      %43 = sbr.rel (0) target = $region21
    $region20: #{forward.1} parent=1 // pred_region
      _
    $region21: #{forward.1} parent=1 // pred_fallthru
      _
    // Predicated region
    $region22: #{forward.1} parent=1 // pred_check
      _
    $region23: #{forward.1} parent=1 // pred_check_branch
      %45 = sbr.rel (0) target = $region25
    $region24: #{forward.1} parent=1 // pred_region
      _
    $region25: #{forward.1} parent=1 // pred_fallthru
      _
    // Predicated region
    $region26: #{forward.1} parent=1 // pred_check
      _
    $region27: #{forward.1} parent=1 // pred_check_branch
      %47 = sbr.rel (0) target = $region29
    $region28: #{forward.1} parent=1 // pred_region
      _
    $region29: #{forward.1} parent=1 // pred_fallthru
      _
    // Predicated region
    $region30: #{forward.1} parent=1 // pred_check
      _
    $region31: #{forward.1} parent=1 // pred_check_branch
      %49 = sbr.rel (0) target = $region33
    $region32: #{forward.1} parent=1 // pred_region
      %s51 = ssub.s32 6144, 6144
      %52 = vsyncadd [#allocation5], %s51
      %s53 = sshll.u32 [#allocation4], 4
      %s54 = int_to_ptr.vmem [resolvable:$true] %s53
      %59 = dma.hbm_to_vmem [thread:$0]  %s7, 6144, %s54, [#allocation5], 384, 384, 24
    $region33: #{forward.1} parent=1 // pred_fallthru
      _
    // Predicated region
    $region34: #{forward.1} parent=1 // pred_check
      _
    $region35: #{forward.1} parent=1 // pred_check_branch
      %61 = sbr.rel (0) target = $region37
    $region36: #{forward.1} parent=1 // pred_region
      _
    $region37: #{forward.1} parent=1 // pred_fallthru
      _
    // Predicated region
    $region38: #{forward.1} parent=1 // pred_check
      _
    $region39: #{forward.1} parent=1 // pred_check_branch
      %63 = sbr.rel (0) target = $region41
    $region40: #{forward.1} parent=1 // pred_region
      %s65 = ssub.s32 12288, 12288
      %66 = vsyncadd [#allocation5], %s65
      %s67 = sshll.u32 [#allocation6], 4
      %s68 = int_to_ptr.vmem [resolvable:$true] %s67
      %73 = dma.hbm_to_vmem [thread:$0]  %s9, 12288, %s68, [#allocation5], 768, 768, 48
    $region41: #{forward.1} parent=1 // pred_fallthru
      _
    // Predicated region
    $region42: #{forward.1} parent=1 // pred_check
      _
    $region43: #{forward.1} parent=1 // pred_check_branch
      %75 = sbr.rel (0) target = $region45
    $region44: #{forward.1} parent=1 // pred_region
      _
    $region45: #{forward.1} parent=1 // pred_fallthru
      _
    // Predicated region
    $region46: #{forward.1} parent=1 // pred_check
      _
    $region47: #{forward.1} parent=1 // pred_check_branch
      %77 = sbr.rel (0) target = $region49
    $region48: #{forward.1} parent=1 // pred_region
      _
    $region49: #{forward.1} parent=1 // pred_fallthru
      _
    // Predicated region
    $region50: #{forward.1} parent=1 // pred_check
      _
    $region51: #{forward.1} parent=1 // pred_check_branch
      %79 = sbr.rel (0) target = $region53
    $region52: #{forward.1} parent=1 // pred_region
      _
    $region53: #{forward.1} parent=1 // pred_fallthru
      _
    // Predicated region
    $region54: #{forward.1} parent=1 // pred_check
      _
    $region55: #{forward.1} parent=1 // pred_check_branch
      %81 = sbr.rel (0) target = $region57
    $region56: #{forward.1} parent=1 // pred_region
      %82 = dma.done [#allocation3], 12288
    $region57: #{forward.1} parent=1 // pred_fallthru
      _
    // Predicated region
    $region58: #{forward.1} parent=1 // pred_check
      _
    $region59: #{forward.1} parent=1 // pred_check_branch
      %84 = sbr.rel (0) target = $region61
    $region60: #{forward.1} parent=1 // pred_region
      %85 = dma.done [#allocation5], 6144
    $region61: #{forward.1} parent=1 // pred_fallthru
      _
    // Predicated region
    $region62: #{forward.1} parent=1 // pred_check
      _
    $region63: #{forward.1} parent=1 // pred_check_branch
      %87 = sbr.rel (0) target = $region65
    $region64: #{forward.1} parent=1 // pred_region
      %88 = dma.done [#allocation5], 12288
    $region65: #{forward.1} parent=1 // pred_fallthru
      _
    %v89 = vld [vmem:[%s0] sm:$0xff]
    %v90 = vld [vmem:[%s0 + $0x8] sm:$0xff]
    %v91 = vld [vmem:[%s0 + $0x10] sm:$0xff]
    %v92 = vld [vmem:[%s0 + $0x18] sm:$0xff]
    %v93 = vld [vmem:[%s0 + $0x20] sm:$0xff]
    %v94 = vld [vmem:[%s0 + $0x28] sm:$0xff]
    %v95 = vld [vmem:[%s0 + $0x30] sm:$0xf]
    %v96 = vld [vmem:[%s0 + $0x38] sm:$0xf]
    %v97 = vld [vmem:[%s0 + $0x40] sm:$0xf]
    %v98 = vld [vmem:[%s0 + $0x48] sm:$0xf]
    %v99 = vld [vmem:[%s0 + $0x50] sm:$0xf]
    %v100 = vld [vmem:[%s0 + $0x58] sm:$0xf]
    %v101 = vld [vmem:[#allocation2] sm:$0xff]
    %v102 = vld [vmem:[#allocation2 + $0x8] sm:$0xff]
    %v103 = vld [vmem:[#allocation2 + $0x10] sm:$0xff]
    %v104 = vld [vmem:[#allocation2 + $0x18] sm:$0xff]
    %v105 = vld [vmem:[#allocation2 + $0x20] sm:$0xff]
    %v106 = vld [vmem:[#allocation2 + $0x28] sm:$0xff]
    %v107 = vld [vmem:[#allocation2 + $0x30] sm:$0xff]
    %v108 = vld [vmem:[#allocation2 + $0x38] sm:$0xff]
    %v109 = vld [vmem:[#allocation2 + $0x40] sm:$0xff]
    %v110 = vld [vmem:[#allocation2 + $0x48] sm:$0xff]
    %v111 = vld [vmem:[#allocation2 + $0x50] sm:$0xff]
    %v112 = vld [vmem:[#allocation2 + $0x58] sm:$0xff]
    %v113 = vld [vmem:[#allocation2 + $0x60] sm:$0xff]
    %v114 = vld [vmem:[#allocation2 + $0x68] sm:$0xff]
    %v115 = vld [vmem:[#allocation2 + $0x70] sm:$0xff]
    %v116 = vld [vmem:[#allocation2 + $0x78] sm:$0xff]
    %v117 = vld [vmem:[#allocation2 + $0x80] sm:$0xff]
    %v118 = vld [vmem:[#allocation2 + $0x88] sm:$0xff]
    %v119 = vld [vmem:[#allocation2 + $0x90] sm:$0xff]
    %v120 = vld [vmem:[#allocation2 + $0x98] sm:$0xff]
    %v121 = vld [vmem:[#allocation2 + $0xa0] sm:$0xff]
    %v122 = vld [vmem:[#allocation2 + $0xa8] sm:$0xff]
    %v123 = vld [vmem:[#allocation2 + $0xb0] sm:$0xff]
    %v124 = vld [vmem:[#allocation2 + $0xb8] sm:$0xff]
    %v125 = vld [vmem:[#allocation2 + $0xc0] sm:$0xff]
    %v126 = vld [vmem:[#allocation2 + $0xc8] sm:$0xff]
    %v127 = vld [vmem:[#allocation2 + $0xd0] sm:$0xff]
    %v128 = vld [vmem:[#allocation2 + $0xd8] sm:$0xff]
    %v129 = vld [vmem:[#allocation2 + $0xe0] sm:$0xff]
    %v130 = vld [vmem:[#allocation2 + $0xe8] sm:$0xff]
    %v131 = vld [vmem:[#allocation2 + $0xf0] sm:$0xff]
    %v132 = vld [vmem:[#allocation2 + $0xf8] sm:$0xff]
    %v133 = vld [vmem:[#allocation2 + $0x100] sm:$0xff]
    %v134 = vld [vmem:[#allocation2 + $0x108] sm:$0xff]
    %v135 = vld [vmem:[#allocation2 + $0x110] sm:$0xff]
    %v136 = vld [vmem:[#allocation2 + $0x118] sm:$0xff]
    %v137 = vld [vmem:[#allocation2 + $0x120] sm:$0xff]
    %v138 = vld [vmem:[#allocation2 + $0x128] sm:$0xff]
    %v139 = vld [vmem:[#allocation2 + $0x130] sm:$0xff]
    %v140 = vld [vmem:[#allocation2 + $0x138] sm:$0xff]
    %v141 = vld [vmem:[#allocation2 + $0x140] sm:$0xff]
    %v142 = vld [vmem:[#allocation2 + $0x148] sm:$0xff]
    %v143 = vld [vmem:[#allocation2 + $0x150] sm:$0xff]
    %v144 = vld [vmem:[#allocation2 + $0x158] sm:$0xff]
    %v145 = vld [vmem:[#allocation2 + $0x160] sm:$0xff]
    %v146 = vld [vmem:[#allocation2 + $0x168] sm:$0xff]
    %v147 = vld [vmem:[#allocation2 + $0x170] sm:$0xff]
    %v148 = vld [vmem:[#allocation2 + $0x178] sm:$0xff]
    %v149 = vld [vmem:[#allocation2 + $0x180] sm:$0xff]
    %v150 = vld [vmem:[#allocation2 + $0x188] sm:$0xff]
    %v151 = vld [vmem:[#allocation2 + $0x190] sm:$0xff]
    %v152 = vld [vmem:[#allocation2 + $0x198] sm:$0xff]
    %v153 = vld [vmem:[#allocation2 + $0x1a0] sm:$0xff]
    %v154 = vld [vmem:[#allocation2 + $0x1a8] sm:$0xff]
    %v155 = vld [vmem:[#allocation2 + $0x1b0] sm:$0xff]
    %v156 = vld [vmem:[#allocation2 + $0x1b8] sm:$0xff]
    %v157 = vld [vmem:[#allocation2 + $0x1c0] sm:$0xff]
    %v158 = vld [vmem:[#allocation2 + $0x1c8] sm:$0xff]
    %v159 = vld [vmem:[#allocation2 + $0x1d0] sm:$0xff]
    %v160 = vld [vmem:[#allocation2 + $0x1d8] sm:$0xff]
    %v161 = vld [vmem:[#allocation2 + $0x1e0] sm:$0xff]
    %v162 = vld [vmem:[#allocation2 + $0x1e8] sm:$0xff]
    %v163 = vld [vmem:[#allocation2 + $0x1f0] sm:$0xff]
    %v164 = vld [vmem:[#allocation2 + $0x1f8] sm:$0xff]
    %v165 = vld [vmem:[#allocation2 + $0x200] sm:$0xff]
    %v166 = vld [vmem:[#allocation2 + $0x208] sm:$0xff]
    %v167 = vld [vmem:[#allocation2 + $0x210] sm:$0xff]
    %v168 = vld [vmem:[#allocation2 + $0x218] sm:$0xff]
    %v169 = vld [vmem:[#allocation2 + $0x220] sm:$0xff]
    %v170 = vld [vmem:[#allocation2 + $0x228] sm:$0xff]
    %v171 = vld [vmem:[#allocation2 + $0x230] sm:$0xff]
    %v172 = vld [vmem:[#allocation2 + $0x238] sm:$0xff]
    %v173 = vld [vmem:[#allocation2 + $0x240] sm:$0xff]
    %v174 = vld [vmem:[#allocation2 + $0x248] sm:$0xff]
    %v175 = vld [vmem:[#allocation2 + $0x250] sm:$0xff]
    %v176 = vld [vmem:[#allocation2 + $0x258] sm:$0xff]
    %v177 = vld [vmem:[#allocation2 + $0x260] sm:$0xff]
    %v178 = vld [vmem:[#allocation2 + $0x268] sm:$0xff]
    %v179 = vld [vmem:[#allocation2 + $0x270] sm:$0xff]
    %v180 = vld [vmem:[#allocation2 + $0x278] sm:$0xff]
    %v181 = vld [vmem:[#allocation2 + $0x280] sm:$0xff]
    %v182 = vld [vmem:[#allocation2 + $0x288] sm:$0xff]
    %v183 = vld [vmem:[#allocation2 + $0x290] sm:$0xff]
    %v184 = vld [vmem:[#allocation2 + $0x298] sm:$0xff]
    %v185 = vld [vmem:[#allocation2 + $0x2a0] sm:$0xff]
    %v186 = vld [vmem:[#allocation2 + $0x2a8] sm:$0xff]
    %v187 = vld [vmem:[#allocation2 + $0x2b0] sm:$0xff]
    %v188 = vld [vmem:[#allocation2 + $0x2b8] sm:$0xff]
    %v189 = vld [vmem:[#allocation2 + $0x2c0] sm:$0xff]
    %v190 = vld [vmem:[#allocation2 + $0x2c8] sm:$0xff]
    %v191 = vld [vmem:[#allocation2 + $0x2d0] sm:$0xff]
    %v192 = vld [vmem:[#allocation2 + $0x2d8] sm:$0xff]
    %v193 = vld [vmem:[#allocation2 + $0x2e0] sm:$0xff]
    %v194 = vld [vmem:[#allocation2 + $0x2e8] sm:$0xff]
    %v195 = vld [vmem:[#allocation2 + $0x2f0] sm:$0xff]
    %v196 = vld [vmem:[#allocation2 + $0x2f8] sm:$0xff]
    %v197 = vld [vmem:[%s1] sm:$0xff]
    %v198 = vld [vmem:[%s1 + $0x8] sm:$0xf]
    %v199 = vld [vmem:[%s3] sm:$0xf]
    %vm200 = vcmask 31744
    %v202 = vsel %vm200, %v197, 0
    %v205 = vsel %vm200, %v198, 0
    %vm207 = vcmask 1043456
    %v209 = vsel %vm207, %v199, 0
    %211 = vmatprep.subr.mxu0 0.0
    %212 = vmatpush1.msra.mxu0 0.0
    %213 = vmatprep.subr.mxu0 0.0
    %214 = vmatpush1.msra.mxu0 0.0
    %215 = vmatprep.subr.mxu0 0.0
    %216 = vmatpush1.msra.mxu0 0.0
    %217 = vmatprep.subr.mxu0 0.0
    %218 = vmatpush1.msra.mxu0 0.0
    %219 = vmatprep.subr.mxu0 0.0
    %220 = vmatpush1.msra.mxu0 0.0
    %221 = vmatprep.subr.mxu0 0.0
    %222 = vmatpush1.msra.mxu0 0.0
    %223 = vmatprep.subr.mxu0 0.0
    %224 = vmatpush1.msra.mxu0 0.0
    %225 = vmatprep.subr.mxu0 0.0
    %226 = vmatpush1.msra.mxu0 0.0
    %227 = vmatprep.subr.mxu0 0.0
    %228 = vmatpush1.msra.mxu0 0.0
    %229 = vmatprep.subr.mxu0 0.0
    %230 = vmatpush1.msra.mxu0 0.0
    %231 = vmatprep.subr.mxu0 0.0
    %232 = vmatpush1.msra.mxu0 0.0
    %233 = vmatprep.subr.mxu0 0.0
    %234 = vmatpush1.msra.mxu0 0.0
    %235 = vmatprep.subr.mxu0 0.0
    %236 = vmatpush1.msra.mxu0 0.0
    %237 = vmatprep.subr.mxu0 0.0
    %238 = vmatpush1.msra.mxu0 0.0
    %239 = vmatprep.subr.mxu0 0.0
    %240 = vmatpush1.msra.mxu0 0.0
    %241 = vmatprep.subr.mxu0 0.0
    %242 = vmatpush1.msra.mxu0 %v209
    %243 = vmatprep.subr.mxu0 0.0
    %244 = vmatpush2.msra.mxu0 0.0
    %245 = vmatprep.subr.mxu0 0.0
    %246 = vmatpush2.msra.mxu0 0.0
    %247 = vmatprep.subr.mxu0 0.0
    %248 = vmatpush2.msra.mxu0 0.0
    %249 = vmatprep.subr.mxu0 0.0
    %250 = vmatpush2.msra.mxu0 0.0
    %251 = vmatprep.subr.mxu0 0.0
    %252 = vmatpush2.msra.mxu0 0.0
    %253 = vmatprep.subr.mxu0 0.0
    %254 = vmatpush2.msra.mxu0 0.0
    %255 = vmatprep.subr.mxu0 0.0
    %256 = vmatpush2.msra.mxu0 0.0
    %257 = vmatprep.subr.mxu0 0.0
    %258 = vmatpush2.msra.mxu0 0.0
    %259 = vmatprep.subr.mxu0 0.0
    %260 = vmatpush2.msra.mxu0 0.0
    %261 = vmatprep.subr.mxu0 0.0
    %262 = vmatpush2.msra.mxu0 0.0
    %263 = vmatprep.subr.mxu0 0.0
    %264 = vmatpush2.msra.mxu0 0.0
    %265 = vmatprep.subr.mxu0 0.0
    %266 = vmatpush2.msra.mxu0 0.0
    %267 = vmatprep.subr.mxu0 0.0
    %268 = vmatpush2.msra.mxu0 0.0
    %269 = vmatprep.subr.mxu0 0.0
    %270 = vmatpush2.msra.mxu0 0.0
    %271 = vmatprep.subr.mxu0 0.0
    %272 = vmatpush2.msra.mxu0 0.0
    %273 = vmatprep.subr.mxu0 0.0
    %274 = vmatpush2.msra.mxu0 0.0
    %275 = vmatprep.mubr.f32.mxu0 0.0
    %276 = vmatmul.mubr.f32.gmra.mxu0 %v202
    %v277 = vpop.f32.mrf.mxu0
    %v278 = vadd.f32 0.0, %v277
    %v279 = vpop.f32.mrf.mxu0
    %280 = vmatprep.mubr.f32.mxu0 0.0
    %281 = vmatmul.mubr.f32.gmra.mxu0 %v205
    %v282 = vpop.f32.mrf.mxu0
    %v283 = vadd.f32 0.0, %v282
    %v284 = vpop.f32.mrf.mxu0
    %285 = vdwg.mxu0
    %286 = vmatprep.subr.mxu0 0.0
    %287 = vmatpush1.msra.mxu0 %v116
    %288 = vmatprep.subr.mxu0 0.0
    %289 = vmatpush1.msra.mxu0 %v115
    %290 = vmatprep.subr.mxu0 0.0
    %291 = vmatpush1.msra.mxu0 %v114
    %292 = vmatprep.subr.mxu0 0.0
    %293 = vmatpush1.msra.mxu0 %v113
    %294 = vmatprep.subr.mxu0 0.0
    %295 = vmatpush1.msra.mxu0 %v112
    %296 = vmatprep.subr.mxu0 0.0
    %297 = vmatpush1.msra.mxu0 %v111
    %298 = vmatprep.subr.mxu0 0.0
    %299 = vmatpush1.msra.mxu0 %v110
    %300 = vmatprep.subr.mxu0 0.0
    %301 = vmatpush1.msra.mxu0 %v109
    %302 = vmatprep.subr.mxu0 0.0
    %303 = vmatpush1.msra.mxu0 %v108
    %304 = vmatprep.subr.mxu0 0.0
    %305 = vmatpush1.msra.mxu0 %v107
    %306 = vmatprep.subr.mxu0 0.0
    %307 = vmatpush1.msra.mxu0 %v106
    %308 = vmatprep.subr.mxu0 0.0
    %309 = vmatpush1.msra.mxu0 %v105
    %310 = vmatprep.subr.mxu0 0.0
    %311 = vmatpush1.msra.mxu0 %v104
    %312 = vmatprep.subr.mxu0 0.0
    %313 = vmatpush1.msra.mxu0 %v103
    %314 = vmatprep.subr.mxu0 0.0
    %315 = vmatpush1.msra.mxu0 %v102
    %316 = vmatprep.subr.mxu0 0.0
    %317 = vmatpush1.msra.mxu0 %v101
    %318 = vmatprep.subr.mxu0 0.0
    %319 = vmatpush2.msra.mxu0 %v132
    %320 = vmatprep.subr.mxu0 0.0
    %321 = vmatpush2.msra.mxu0 %v131
    %322 = vmatprep.subr.mxu0 0.0
    %323 = vmatpush2.msra.mxu0 %v130
    %324 = vmatprep.subr.mxu0 0.0
    %325 = vmatpush2.msra.mxu0 %v129
    %326 = vmatprep.subr.mxu0 0.0
    %327 = vmatpush2.msra.mxu0 %v128
    %328 = vmatprep.subr.mxu0 0.0
    %329 = vmatpush2.msra.mxu0 %v127
    %330 = vmatprep.subr.mxu0 0.0
    %331 = vmatpush2.msra.mxu0 %v126
    %332 = vmatprep.subr.mxu0 0.0
    %333 = vmatpush2.msra.mxu0 %v125
    %334 = vmatprep.subr.mxu0 0.0
    %335 = vmatpush2.msra.mxu0 %v124
    %336 = vmatprep.subr.mxu0 0.0
    %337 = vmatpush2.msra.mxu0 %v123
    %338 = vmatprep.subr.mxu0 0.0
    %339 = vmatpush2.msra.mxu0 %v122
    %340 = vmatprep.subr.mxu0 0.0
    %341 = vmatpush2.msra.mxu0 %v121
    %342 = vmatprep.subr.mxu0 0.0
    %343 = vmatpush2.msra.mxu0 %v120
    %344 = vmatprep.subr.mxu0 0.0
    %345 = vmatpush2.msra.mxu0 %v119
    %346 = vmatprep.subr.mxu0 0.0
    %347 = vmatpush2.msra.mxu0 %v118
    %348 = vmatprep.subr.mxu0 0.0
    %349 = vmatpush2.msra.mxu0 %v117
    %350 = vmatprep.mubr.f32.mxu0 %v90
    %351 = vmatmul.mubr.f32.gmra.mxu0 %v89
    %v352 = vpop.f32.mrf.mxu0
    %v353 = vadd.f32 %v278, %v352
    %v354 = vpop.f32.mrf.mxu0
    %355 = vmatprep.mubr.f32.mxu0 %v96
    %356 = vmatmul.mubr.f32.gmra.mxu0 %v95
    %v357 = vpop.f32.mrf.mxu0
    %v358 = vadd.f32 %v283, %v357
    %v359 = vpop.f32.mrf.mxu0
    %360 = vdwg.mxu0
    %361 = vmatprep.subr.mxu0 0.0
    %362 = vmatpush1.msra.mxu0 %v148
    %363 = vmatprep.subr.mxu0 0.0
    %364 = vmatpush1.msra.mxu0 %v147
    %365 = vmatprep.subr.mxu0 0.0
    %366 = vmatpush1.msra.mxu0 %v146
    %367 = vmatprep.subr.mxu0 0.0
    %368 = vmatpush1.msra.mxu0 %v145
    %369 = vmatprep.subr.mxu0 0.0
    %370 = vmatpush1.msra.mxu0 %v144
    %371 = vmatprep.subr.mxu0 0.0
    %372 = vmatpush1.msra.mxu0 %v143
    %373 = vmatprep.subr.mxu0 0.0
    %374 = vmatpush1.msra.mxu0 %v142
    %375 = vmatprep.subr.mxu0 0.0
    %376 = vmatpush1.msra.mxu0 %v141
    %377 = vmatprep.subr.mxu0 0.0
    %378 = vmatpush1.msra.mxu0 %v140
    %379 = vmatprep.subr.mxu0 0.0
    %380 = vmatpush1.msra.mxu0 %v139
    %381 = vmatprep.subr.mxu0 0.0
    %382 = vmatpush1.msra.mxu0 %v138
    %383 = vmatprep.subr.mxu0 0.0
    %384 = vmatpush1.msra.mxu0 %v137
    %385 = vmatprep.subr.mxu0 0.0
    %386 = vmatpush1.msra.mxu0 %v136
    %387 = vmatprep.subr.mxu0 0.0
    %388 = vmatpush1.msra.mxu0 %v135
    %389 = vmatprep.subr.mxu0 0.0
    %390 = vmatpush1.msra.mxu0 %v134
    %391 = vmatprep.subr.mxu0 0.0
    %392 = vmatpush1.msra.mxu0 %v133
    %393 = vmatprep.subr.mxu0 0.0
    %394 = vmatpush2.msra.mxu0 %v164
    %395 = vmatprep.subr.mxu0 0.0
    %396 = vmatpush2.msra.mxu0 %v163
    %397 = vmatprep.subr.mxu0 0.0
    %398 = vmatpush2.msra.mxu0 %v162
    %399 = vmatprep.subr.mxu0 0.0
    %400 = vmatpush2.msra.mxu0 %v161
    %401 = vmatprep.subr.mxu0 0.0
    %402 = vmatpush2.msra.mxu0 %v160
    %403 = vmatprep.subr.mxu0 0.0
    %404 = vmatpush2.msra.mxu0 %v159
    %405 = vmatprep.subr.mxu0 0.0
    %406 = vmatpush2.msra.mxu0 %v158
    %407 = vmatprep.subr.mxu0 0.0
    %408 = vmatpush2.msra.mxu0 %v157
    %409 = vmatprep.subr.mxu0 0.0
    %410 = vmatpush2.msra.mxu0 %v156
    %411 = vmatprep.subr.mxu0 0.0
    %412 = vmatpush2.msra.mxu0 %v155
    %413 = vmatprep.subr.mxu0 0.0
    %414 = vmatpush2.msra.mxu0 %v154
    %415 = vmatprep.subr.mxu0 0.0
    %416 = vmatpush2.msra.mxu0 %v153
    %417 = vmatprep.subr.mxu0 0.0
    %418 = vmatpush2.msra.mxu0 %v152
    %419 = vmatprep.subr.mxu0 0.0
    %420 = vmatpush2.msra.mxu0 %v151
    %421 = vmatprep.subr.mxu0 0.0
    %422 = vmatpush2.msra.mxu0 %v150
    %423 = vmatprep.subr.mxu0 0.0
    %424 = vmatpush2.msra.mxu0 %v149
    %425 = vmatprep.mubr.f32.mxu0 %v92
    %426 = vmatmul.mubr.f32.gmra.mxu0 %v91
    %v427 = vpop.f32.mrf.mxu0
    %v428 = vadd.f32 %v353, %v427
    %v429 = vpop.f32.mrf.mxu0
    %430 = vmatprep.mubr.f32.mxu0 %v98
    %431 = vmatmul.mubr.f32.gmra.mxu0 %v97
    %v432 = vpop.f32.mrf.mxu0
    %v433 = vadd.f32 %v358, %v432
    %v434 = vpop.f32.mrf.mxu0
    %435 = vdwg.mxu0
    %436 = vmatprep.subr.mxu0 0.0
    %437 = vmatpush1.msra.mxu0 %v180
    %438 = vmatprep.subr.mxu0 0.0
    %439 = vmatpush1.msra.mxu0 %v179
    %440 = vmatprep.subr.mxu0 0.0
    %441 = vmatpush1.msra.mxu0 %v178
    %442 = vmatprep.subr.mxu0 0.0
    %443 = vmatpush1.msra.mxu0 %v177
    %444 = vmatprep.subr.mxu0 0.0
    %445 = vmatpush1.msra.mxu0 %v176
    %446 = vmatprep.subr.mxu0 0.0
    %447 = vmatpush1.msra.mxu0 %v175
    %448 = vmatprep.subr.mxu0 0.0
    %449 = vmatpush1.msra.mxu0 %v174
    %450 = vmatprep.subr.mxu0 0.0
    %451 = vmatpush1.msra.mxu0 %v173
    %452 = vmatprep.subr.mxu0 0.0
    %453 = vmatpush1.msra.mxu0 %v172
    %454 = vmatprep.subr.mxu0 0.0
    %455 = vmatpush1.msra.mxu0 %v171
    %456 = vmatprep.subr.mxu0 0.0
    %457 = vmatpush1.msra.mxu0 %v170
    %458 = vmatprep.subr.mxu0 0.0
    %459 = vmatpush1.msra.mxu0 %v169
    %460 = vmatprep.subr.mxu0 0.0
    %461 = vmatpush1.msra.mxu0 %v168
    %462 = vmatprep.subr.mxu0 0.0
    %463 = vmatpush1.msra.mxu0 %v167
    %464 = vmatprep.subr.mxu0 0.0
    %465 = vmatpush1.msra.mxu0 %v166
    %466 = vmatprep.subr.mxu0 0.0
    %467 = vmatpush1.msra.mxu0 %v165
    %468 = vmatprep.subr.mxu0 0.0
    %469 = vmatpush2.msra.mxu0 %v196
    %470 = vmatprep.subr.mxu0 0.0
    %471 = vmatpush2.msra.mxu0 %v195
    %472 = vmatprep.subr.mxu0 0.0
    %473 = vmatpush2.msra.mxu0 %v194
    %474 = vmatprep.subr.mxu0 0.0
    %475 = vmatpush2.msra.mxu0 %v193
    %476 = vmatprep.subr.mxu0 0.0
    %477 = vmatpush2.msra.mxu0 %v192
    %478 = vmatprep.subr.mxu0 0.0
    %479 = vmatpush2.msra.mxu0 %v191
    %480 = vmatprep.subr.mxu0 0.0
    %481 = vmatpush2.msra.mxu0 %v190
    %482 = vmatprep.subr.mxu0 0.0
    %483 = vmatpush2.msra.mxu0 %v189
    %484 = vmatprep.subr.mxu0 0.0
    %485 = vmatpush2.msra.mxu0 %v188
    %486 = vmatprep.subr.mxu0 0.0
    %487 = vmatpush2.msra.mxu0 %v187
    %488 = vmatprep.subr.mxu0 0.0
    %489 = vmatpush2.msra.mxu0 %v186
    %490 = vmatprep.subr.mxu0 0.0
    %491 = vmatpush2.msra.mxu0 %v185
    %492 = vmatprep.subr.mxu0 0.0
    %493 = vmatpush2.msra.mxu0 %v184
    %494 = vmatprep.subr.mxu0 0.0
    %495 = vmatpush2.msra.mxu0 %v183
    %496 = vmatprep.subr.mxu0 0.0
    %497 = vmatpush2.msra.mxu0 %v182
    %498 = vmatprep.subr.mxu0 0.0
    %499 = vmatpush2.msra.mxu0 %v181
    %500 = vmatprep.mubr.f32.mxu0 %v94
    %501 = vmatmul.mubr.f32.gmra.mxu0 %v93
    %v502 = vpop.f32.mrf.mxu0
    %v503 = vadd.f32 %v428, %v502
    %v504 = vpop.f32.mrf.mxu0
    %505 = vmatprep.mubr.f32.mxu0 %v100
    %506 = vmatmul.mubr.f32.gmra.mxu0 %v99
    %v507 = vpop.f32.mrf.mxu0
    %v508 = vadd.f32 %v433, %v507
    %v509 = vpop.f32.mrf.mxu0
    %510 = vdwg.mxu0
    %v511 = vld [vmem:[%s4] sm:$0x1]
    %v513 = vlaneseq
    %v514 = vshrl.u32 %v513, 7
    %v515 = vsub.s32 0, %v514
    %v516 = vrot.slane %v511, %v515
    %v518 = vadd.f32 %v503, %v516
    %v519 = vadd.f32 %v508, %v516
    %520 = vst [vmem:[%s14] sm:$0xff] %v518
    %521 = vst [vmem:[%s14 + $0x8] sm:$0xf] %v519
    %v523 = vcombine.high %v518, %v518
    %v525 = vunpack.c.l.s4 1983009808
    %v526 = vunpack.c.0.s8 %v525
    %v527 = vlaneseq
    %v528 = vshrl.u32 %v527, 7
    %v529 = vsub.s32 %v526, %v528
    %v530 = vrot.slane %v518, %v529
    %v532 = vunpack.c.l.s4 1983009808
    %v533 = vunpack.c.0.s8 %v532
    %v534 = vlaneseq
    %v535 = vshrl.u32 %v534, 7
    %v536 = vsub.s32 %v533, %v535
    %v537 = vrot.slane %v523, %v536
    %v538 = vcombine.high %v537, %v537
    %v541 = vld [vmem:[%s5] sm:$0xff]
    %v542 = vld [vmem:[%s5 + $0x8] sm:$0xff]
    %v543 = vld [vmem:[%s5 + $0x10] sm:$0xff]
    %v544 = vld [vmem:[%s5 + $0x18] sm:$0xff]
    %v545 = vld [vmem:[%s5 + $0x20] sm:$0xff]
    %v546 = vld [vmem:[%s5 + $0x28] sm:$0xff]
    %v547 = vld [vmem:[%s5 + $0x30] sm:$0xff]
    %v548 = vld [vmem:[%s5 + $0x38] sm:$0xff]
    %v549 = vld [vmem:[%s5 + $0x40] sm:$0xff]
    %v550 = vld [vmem:[%s5 + $0x48] sm:$0xff]
    %v551 = vld [vmem:[%s5 + $0x50] sm:$0xff]
    %v552 = vld [vmem:[%s5 + $0x58] sm:$0xff]
    %v553 = vld [vmem:[%s5 + $0x60] sm:$0xff]
    %v554 = vld [vmem:[%s5 + $0x68] sm:$0xff]
    %v555 = vld [vmem:[%s5 + $0x70] sm:$0xff]
    %v556 = vld [vmem:[%s5 + $0x78] sm:$0xff]
    %v557 = vld [vmem:[%s5 + $0x80] sm:$0xff]
    %v558 = vld [vmem:[%s5 + $0x88] sm:$0xff]
    %v559 = vld [vmem:[%s5 + $0x90] sm:$0xff]
    %v560 = vld [vmem:[%s5 + $0x98] sm:$0xff]
    %v561 = vld [vmem:[%s5 + $0xa0] sm:$0xff]
    %v562 = vld [vmem:[%s5 + $0xa8] sm:$0xff]
    %v563 = vld [vmem:[%s5 + $0xb0] sm:$0xff]
    %v564 = vld [vmem:[%s5 + $0xb8] sm:$0xff]
    %v565 = vld [vmem:[%s5 + $0xc0] sm:$0xff]
    %v566 = vld [vmem:[%s5 + $0xc8] sm:$0xff]
    %v567 = vld [vmem:[%s5 + $0xd0] sm:$0xff]
    %v568 = vld [vmem:[%s5 + $0xd8] sm:$0xff]
    %v569 = vld [vmem:[%s5 + $0xe0] sm:$0xff]
    %v570 = vld [vmem:[%s5 + $0xe8] sm:$0xff]
    %v571 = vld [vmem:[%s5 + $0xf0] sm:$0xff]
    %v572 = vld [vmem:[%s5 + $0xf8] sm:$0xff]
    %v573 = vld [vmem:[%s5 + $0x100] sm:$0xff]
    %v574 = vld [vmem:[%s5 + $0x108] sm:$0xff]
    %v575 = vld [vmem:[%s5 + $0x110] sm:$0xff]
    %v576 = vld [vmem:[%s5 + $0x118] sm:$0xff]
    %v577 = vld [vmem:[%s5 + $0x120] sm:$0xff]
    %v578 = vld [vmem:[%s5 + $0x128] sm:$0xff]
    %v579 = vld [vmem:[%s5 + $0x130] sm:$0xff]
    %v580 = vld [vmem:[%s5 + $0x138] sm:$0xff]
    %v581 = vld [vmem:[%s5 + $0x140] sm:$0xff]
    %v582 = vld [vmem:[%s5 + $0x148] sm:$0xff]
    %v583 = vld [vmem:[%s5 + $0x150] sm:$0xff]
    %v584 = vld [vmem:[%s5 + $0x158] sm:$0xff]
    %v585 = vld [vmem:[%s5 + $0x160] sm:$0xff]
    %v586 = vld [vmem:[%s5 + $0x168] sm:$0xff]
    %v587 = vld [vmem:[%s5 + $0x170] sm:$0xff]
    %v588 = vld [vmem:[%s5 + $0x178] sm:$0xff]
    %v589 = vld [vmem:[%s6] sm:$0x7]
    %v591 = vlaneseq
    %v592 = vshrl.u32 %v591, 7
    %v593 = vsub.s32 0, %v592
    %v594 = vrot.slane %v589, %v593
    %v595 = vlaneseq
    %v596 = vshrl.u32 %v595, 7
    %v597 = vsub.s32 1, %v596
    %v598 = vrot.slane %v589, %v597
    %v599 = vlaneseq
    %v600 = vshrl.u32 %v599, 7
    %v601 = vsub.s32 2, %v600
    %v602 = vrot.slane %v589, %v601
    %606 = vmatprep.subr.mxu0 %v587
    %607 = vmatpush1.msra.mxu0 %v586
    %608 = vmatprep.subr.mxu0 %v584
    %609 = vmatpush1.msra.mxu0 %v583
    %610 = vmatprep.subr.mxu0 %v581
    %611 = vmatpush1.msra.mxu0 %v580
    %612 = vmatprep.subr.mxu0 %v578
    %613 = vmatpush1.msra.mxu0 %v577
    %614 = vmatprep.subr.mxu0 %v575
    %615 = vmatpush1.msra.mxu0 %v574
    %616 = vmatprep.subr.mxu0 %v572
    %617 = vmatpush1.msra.mxu0 %v571
    %618 = vmatprep.subr.mxu0 %v569
    %619 = vmatpush1.msra.mxu0 %v568
    %620 = vmatprep.subr.mxu0 %v566
    %621 = vmatpush1.msra.mxu0 %v565
    %622 = vmatprep.subr.mxu0 %v563
    %623 = vmatpush1.msra.mxu0 %v562
    %624 = vmatprep.subr.mxu0 %v560
    %625 = vmatpush1.msra.mxu0 %v559
    %626 = vmatprep.subr.mxu0 %v557
    %627 = vmatpush1.msra.mxu0 %v556
    %628 = vmatprep.subr.mxu0 %v554
    %629 = vmatpush1.msra.mxu0 %v553
    %630 = vmatprep.subr.mxu0 %v551
    %631 = vmatpush1.msra.mxu0 %v550
    %632 = vmatprep.subr.mxu0 %v548
    %633 = vmatpush1.msra.mxu0 %v547
    %634 = vmatprep.subr.mxu0 %v545
    %635 = vmatpush1.msra.mxu0 %v544
    %636 = vmatprep.subr.mxu0 %v542
    %637 = vmatpush1.msra.mxu0 %v541
    %638 = vmatprep.subr.mxu0 0.0
    %639 = vmatpush2.msra.mxu0 0.0
    %640 = vmatprep.subr.mxu0 0.0
    %641 = vmatpush2.msra.mxu0 0.0
    %642 = vmatprep.subr.mxu0 0.0
    %643 = vmatpush2.msra.mxu0 0.0
    %644 = vmatprep.subr.mxu0 0.0
    %645 = vmatpush2.msra.mxu0 0.0
    %646 = vmatprep.subr.mxu0 0.0
    %647 = vmatpush2.msra.mxu0 0.0
    %648 = vmatprep.subr.mxu0 0.0
    %649 = vmatpush2.msra.mxu0 0.0
    %650 = vmatprep.subr.mxu0 0.0
    %651 = vmatpush2.msra.mxu0 0.0
    %652 = vmatprep.subr.mxu0 0.0
    %653 = vmatpush2.msra.mxu0 0.0
    %654 = vmatprep.subr.mxu0 0.0
    %655 = vmatpush2.msra.mxu0 0.0
    %656 = vmatprep.subr.mxu0 0.0
    %657 = vmatpush2.msra.mxu0 0.0
    %658 = vmatprep.subr.mxu0 0.0
    %659 = vmatpush2.msra.mxu0 0.0
    %660 = vmatprep.subr.mxu0 0.0
    %661 = vmatpush2.msra.mxu0 0.0
    %662 = vmatprep.subr.mxu0 0.0
    %663 = vmatpush2.msra.mxu0 0.0
    %664 = vmatprep.subr.mxu0 0.0
    %665 = vmatpush2.msra.mxu0 0.0
    %666 = vmatprep.subr.mxu0 0.0
    %667 = vmatpush2.msra.mxu0 0.0
    %668 = vmatprep.subr.mxu0 0.0
    %669 = vmatpush2.msra.mxu0 0.0
    %670 = vmatprep.mubr.f32.mxu0 0.0
    %671 = vmatmul.mubr.f32.gmra.mxu0 %v518
    %v672 = vpop.f32.mrf.mxu0
    %v673 = vadd.f32 %v594, %v672
    %v674 = vpop.f32.mrf.mxu0
    %v675 = vadd.f32 %v598, %v674
    %676 = vmatprep.mubr.f32.mxu0 0.0
    %677 = vmatmul.mubr.f32.gmra.mxu0 %v519
    %v678 = vpop.f32.mrf.mxu0
    %v679 = vadd.f32 %v594, %v678
    %v680 = vpop.f32.mrf.mxu0
    %v681 = vadd.f32 %v598, %v680
    %682 = vdwg.mxu0
    %683 = vmatprep.subr.mxu0 0.0
    %684 = vmatpush1.msra.mxu0 %v588
    %685 = vmatprep.subr.mxu0 0.0
    %686 = vmatpush1.msra.mxu0 %v585
    %687 = vmatprep.subr.mxu0 0.0
    %688 = vmatpush1.msra.mxu0 %v582
    %689 = vmatprep.subr.mxu0 0.0
    %690 = vmatpush1.msra.mxu0 %v579
    %691 = vmatprep.subr.mxu0 0.0
    %692 = vmatpush1.msra.mxu0 %v576
    %693 = vmatprep.subr.mxu0 0.0
    %694 = vmatpush1.msra.mxu0 %v573
    %695 = vmatprep.subr.mxu0 0.0
    %696 = vmatpush1.msra.mxu0 %v570
    %697 = vmatprep.subr.mxu0 0.0
    %698 = vmatpush1.msra.mxu0 %v567
    %699 = vmatprep.subr.mxu0 0.0
    %700 = vmatpush1.msra.mxu0 %v564
    %701 = vmatprep.subr.mxu0 0.0
    %702 = vmatpush1.msra.mxu0 %v561
    %703 = vmatprep.subr.mxu0 0.0
    %704 = vmatpush1.msra.mxu0 %v558
    %705 = vmatprep.subr.mxu0 0.0
    %706 = vmatpush1.msra.mxu0 %v555
    %707 = vmatprep.subr.mxu0 0.0
    %708 = vmatpush1.msra.mxu0 %v552
    %709 = vmatprep.subr.mxu0 0.0
    %710 = vmatpush1.msra.mxu0 %v549
    %711 = vmatprep.subr.mxu0 0.0
    %712 = vmatpush1.msra.mxu0 %v546
    %713 = vmatprep.subr.mxu0 0.0
    %714 = vmatpush1.msra.mxu0 %v543
    %715 = vmatprep.subr.mxu0 0.0
    %716 = vmatpush2.msra.mxu0 0.0
    %717 = vmatprep.subr.mxu0 0.0
    %718 = vmatpush2.msra.mxu0 0.0
    %719 = vmatprep.subr.mxu0 0.0
    %720 = vmatpush2.msra.mxu0 0.0
    %721 = vmatprep.subr.mxu0 0.0
    %722 = vmatpush2.msra.mxu0 0.0
    %723 = vmatprep.subr.mxu0 0.0
    %724 = vmatpush2.msra.mxu0 0.0
    %725 = vmatprep.subr.mxu0 0.0
    %726 = vmatpush2.msra.mxu0 0.0
    %727 = vmatprep.subr.mxu0 0.0
    %728 = vmatpush2.msra.mxu0 0.0
    %729 = vmatprep.subr.mxu0 0.0
    %730 = vmatpush2.msra.mxu0 0.0
    %731 = vmatprep.subr.mxu0 0.0
    %732 = vmatpush2.msra.mxu0 0.0
    %733 = vmatprep.subr.mxu0 0.0
    %734 = vmatpush2.msra.mxu0 0.0
    %735 = vmatprep.subr.mxu0 0.0
    %736 = vmatpush2.msra.mxu0 0.0
    %737 = vmatprep.subr.mxu0 0.0
    %738 = vmatpush2.msra.mxu0 0.0
    %739 = vmatprep.subr.mxu0 0.0
    %740 = vmatpush2.msra.mxu0 0.0
    %741 = vmatprep.subr.mxu0 0.0
    %742 = vmatpush2.msra.mxu0 0.0
    %743 = vmatprep.subr.mxu0 0.0
    %744 = vmatpush2.msra.mxu0 0.0
    %745 = vmatprep.subr.mxu0 0.0
    %746 = vmatpush2.msra.mxu0 0.0
    %747 = vmatprep.mubr.f32.mxu0 0.0
    %748 = vmatmul.mubr.f32.gmra.mxu0 %v518
    %v749 = vpop.f32.mrf.mxu0
    %v750 = vadd.f32 %v602, %v749
    %v751 = vpop.f32.mrf.mxu0
    %752 = vmatprep.mubr.f32.mxu0 0.0
    %753 = vmatmul.mubr.f32.gmra.mxu0 %v519
    %v754 = vpop.f32.mrf.mxu0
    %v755 = vadd.f32 %v602, %v754
    %v756 = vpop.f32.mrf.mxu0
    %757 = vdwg.mxu0
    %v764 = vcombine.low %v673, %v675
    %v765 = vcombine.high %v673, %v675
    %v766 = vcombine.high %v750, %v750
    %v768 = vunpack.c.l.s4 1983009808
    %v769 = vunpack.c.0.s8 %v768
    %v770 = vlaneseq
    %v771 = vshrl.u32 %v770, 7
    %v772 = vsub.s32 %v769, %v771
    %v773 = vrot.slane %v764, %v772
    %v775 = vunpack.c.l.s4 1983009808
    %v776 = vunpack.c.0.s8 %v775
    %v777 = vlaneseq
    %v778 = vshrl.u32 %v777, 7
    %v779 = vsub.s32 %v776, %v778
    %v780 = vrot.slane %v765, %v779
    %v782 = vunpack.c.l.s4 1983009808
    %v783 = vunpack.c.0.s8 %v782
    %v784 = vlaneseq
    %v785 = vshrl.u32 %v784, 7
    %v786 = vsub.s32 %v783, %v785
    %v787 = vrot.slane %v750, %v786
    %v789 = vunpack.c.l.s4 1983009808
    %v790 = vunpack.c.0.s8 %v789
    %v791 = vlaneseq
    %v792 = vshrl.u32 %v791, 7
    %v793 = vsub.s32 %v790, %v792
    %v794 = vrot.slane %v766, %v793
    %v795 = vcombine.low %v773, %v787
    %v796 = vcombine.high %v773, %v787
    %v797 = vcombine.low %v780, %v794
    %v798 = vcombine.high %v780, %v794
    %v799 = vcombine.low %v679, %v681
    %v801 = vunpack.c.l.s4 1983009808
    %v802 = vunpack.c.0.s8 %v801
    %v803 = vlaneseq
    %v804 = vshrl.u32 %v803, 7
    %v805 = vsub.s32 %v802, %v804
    %v806 = vrot.slane %v799, %v805
    %v808 = vunpack.c.l.s4 1983009808
    %v809 = vunpack.c.0.s8 %v808
    %v810 = vlaneseq
    %v811 = vshrl.u32 %v810, 7
    %v812 = vsub.s32 %v809, %v811
    %v813 = vrot.slane %v755, %v812
    %v814 = vcombine.low %v806, %v813
    %v815 = vcombine.high %v806, %v813
    %v822 = vld [vmem:[#allocation4] sm:$0xff]
    %v823 = vld [vmem:[#allocation4 + $0x8] sm:$0xff]
    %v824 = vld [vmem:[#allocation4 + $0x10] sm:$0xff]
    %v825 = vld [vmem:[#allocation4 + $0x18] sm:$0xff]
    %v826 = vld [vmem:[#allocation4 + $0x20] sm:$0xff]
    %v827 = vld [vmem:[#allocation4 + $0x28] sm:$0xff]
    %v828 = vld [vmem:[#allocation4 + $0x30] sm:$0xff]
    %v829 = vld [vmem:[#allocation4 + $0x38] sm:$0xff]
    %v830 = vld [vmem:[#allocation4 + $0x40] sm:$0xff]
    %v831 = vld [vmem:[#allocation4 + $0x48] sm:$0xff]
    %v832 = vld [vmem:[#allocation4 + $0x50] sm:$0xff]
    %v833 = vld [vmem:[#allocation4 + $0x58] sm:$0xff]
    %v834 = vld [vmem:[#allocation4 + $0x60] sm:$0xff]
    %v835 = vld [vmem:[#allocation4 + $0x68] sm:$0xff]
    %v836 = vld [vmem:[#allocation4 + $0x70] sm:$0xff]
    %v837 = vld [vmem:[#allocation4 + $0x78] sm:$0xff]
    %v838 = vld [vmem:[#allocation4 + $0x80] sm:$0xff]
    %v839 = vld [vmem:[#allocation4 + $0x88] sm:$0xff]
    %v840 = vld [vmem:[#allocation4 + $0x90] sm:$0xff]
    %v841 = vld [vmem:[#allocation4 + $0x98] sm:$0xff]
    %v842 = vld [vmem:[#allocation4 + $0xa0] sm:$0xff]
    %v843 = vld [vmem:[#allocation4 + $0xa8] sm:$0xff]
    %v844 = vld [vmem:[#allocation4 + $0xb0] sm:$0xff]
    %v845 = vld [vmem:[#allocation4 + $0xb8] sm:$0xff]
    %v846 = vld [vmem:[#allocation4 + $0xc0] sm:$0xff]
    %v847 = vld [vmem:[#allocation4 + $0xc8] sm:$0xff]
    %v848 = vld [vmem:[#allocation4 + $0xd0] sm:$0xff]
    %v849 = vld [vmem:[#allocation4 + $0xd8] sm:$0xff]
    %v850 = vld [vmem:[#allocation4 + $0xe0] sm:$0xff]
    %v851 = vld [vmem:[#allocation4 + $0xe8] sm:$0xff]
    %v852 = vld [vmem:[#allocation4 + $0xf0] sm:$0xff]
    %v853 = vld [vmem:[#allocation4 + $0xf8] sm:$0xff]
    %v854 = vld [vmem:[#allocation4 + $0x100] sm:$0xff]
    %v855 = vld [vmem:[#allocation4 + $0x108] sm:$0xff]
    %v856 = vld [vmem:[#allocation4 + $0x110] sm:$0xff]
    %v857 = vld [vmem:[#allocation4 + $0x118] sm:$0xff]
    %v858 = vld [vmem:[#allocation4 + $0x120] sm:$0xff]
    %v859 = vld [vmem:[#allocation4 + $0x128] sm:$0xff]
    %v860 = vld [vmem:[#allocation4 + $0x130] sm:$0xff]
    %v861 = vld [vmem:[#allocation4 + $0x138] sm:$0xff]
    %v862 = vld [vmem:[#allocation4 + $0x140] sm:$0xff]
    %v863 = vld [vmem:[#allocation4 + $0x148] sm:$0xff]
    %v864 = vld [vmem:[#allocation4 + $0x150] sm:$0xff]
    %v865 = vld [vmem:[#allocation4 + $0x158] sm:$0xff]
    %v866 = vld [vmem:[#allocation4 + $0x160] sm:$0xff]
    %v867 = vld [vmem:[#allocation4 + $0x168] sm:$0xff]
    %v868 = vld [vmem:[#allocation4 + $0x170] sm:$0xff]
    %v869 = vld [vmem:[#allocation4 + $0x178] sm:$0xff]
    %v870 = vld [vmem:[%s8] sm:$0x7]
    %v872 = vlaneseq
    %v873 = vshrl.u32 %v872, 7
    %v874 = vsub.s32 0, %v873
    %v875 = vrot.slane %v870, %v874
    %v876 = vlaneseq
    %v877 = vshrl.u32 %v876, 7
    %v878 = vsub.s32 1, %v877
    %v879 = vrot.slane %v870, %v878
    %v880 = vlaneseq
    %v881 = vshrl.u32 %v880, 7
    %v882 = vsub.s32 2, %v881
    %v883 = vrot.slane %v870, %v882
    %v887 = vlaneseq
    %v888 = vshrl.u32 %v887, 7
    %v889 = vsub.s32 0, %v888
    %v890 = vrot.slane %v530, %v889
    %v891 = vlaneseq
    %v892 = vshrl.u32 %v891, 7
    %v893 = vsub.s32 0, %v892
    %v894 = vrot.slane %v538, %v893
    %vm895 = vcmask 1041409
    %v896 = vsel %vm895, %v894, %v890
    %898 = vmatprep.subr.mxu0 %v868
    %899 = vmatpush1.msra.mxu0 %v867
    %900 = vmatprep.subr.mxu0 %v865
    %901 = vmatpush1.msra.mxu0 %v864
    %902 = vmatprep.subr.mxu0 %v862
    %903 = vmatpush1.msra.mxu0 %v861
    %904 = vmatprep.subr.mxu0 %v859
    %905 = vmatpush1.msra.mxu0 %v858
    %906 = vmatprep.subr.mxu0 %v856
    %907 = vmatpush1.msra.mxu0 %v855
    %908 = vmatprep.subr.mxu0 %v853
    %909 = vmatpush1.msra.mxu0 %v852
    %910 = vmatprep.subr.mxu0 %v850
    %911 = vmatpush1.msra.mxu0 %v849
    %912 = vmatprep.subr.mxu0 %v847
    %913 = vmatpush1.msra.mxu0 %v846
    %914 = vmatprep.subr.mxu0 %v844
    %915 = vmatpush1.msra.mxu0 %v843
    %916 = vmatprep.subr.mxu0 %v841
    %917 = vmatpush1.msra.mxu0 %v840
    %918 = vmatprep.subr.mxu0 %v838
    %919 = vmatpush1.msra.mxu0 %v837
    %920 = vmatprep.subr.mxu0 %v835
    %921 = vmatpush1.msra.mxu0 %v834
    %922 = vmatprep.subr.mxu0 %v832
    %923 = vmatpush1.msra.mxu0 %v831
    %924 = vmatprep.subr.mxu0 %v829
    %925 = vmatpush1.msra.mxu0 %v828
    %926 = vmatprep.subr.mxu0 %v826
    %927 = vmatpush1.msra.mxu0 %v825
    %928 = vmatprep.subr.mxu0 %v823
    %929 = vmatpush1.msra.mxu0 %v822
    %930 = vmatprep.subr.mxu0 0.0
    %931 = vmatpush2.msra.mxu0 0.0
    %932 = vmatprep.subr.mxu0 0.0
    %933 = vmatpush2.msra.mxu0 0.0
    %934 = vmatprep.subr.mxu0 0.0
    %935 = vmatpush2.msra.mxu0 0.0
    %936 = vmatprep.subr.mxu0 0.0
    %937 = vmatpush2.msra.mxu0 0.0
    %938 = vmatprep.subr.mxu0 0.0
    %939 = vmatpush2.msra.mxu0 0.0
    %940 = vmatprep.subr.mxu0 0.0
    %941 = vmatpush2.msra.mxu0 0.0
    %942 = vmatprep.subr.mxu0 0.0
    %943 = vmatpush2.msra.mxu0 0.0
    %944 = vmatprep.subr.mxu0 0.0
    %945 = vmatpush2.msra.mxu0 0.0
    %946 = vmatprep.subr.mxu0 0.0
    %947 = vmatpush2.msra.mxu0 0.0
    %948 = vmatprep.subr.mxu0 0.0
    %949 = vmatpush2.msra.mxu0 0.0
    %950 = vmatprep.subr.mxu0 0.0
    %951 = vmatpush2.msra.mxu0 0.0
    %952 = vmatprep.subr.mxu0 0.0
    %953 = vmatpush2.msra.mxu0 0.0
    %954 = vmatprep.subr.mxu0 0.0
    %955 = vmatpush2.msra.mxu0 0.0
    %956 = vmatprep.subr.mxu0 0.0
    %957 = vmatpush2.msra.mxu0 0.0
    %958 = vmatprep.subr.mxu0 0.0
    %959 = vmatpush2.msra.mxu0 0.0
    %960 = vmatprep.subr.mxu0 0.0
    %961 = vmatpush2.msra.mxu0 0.0
    %962 = vmatprep.mubr.f32.mxu0 0.0
    %963 = vmatmul.mubr.f32.gmra.mxu0 %v896
    %v964 = vpop.f32.mrf.mxu0
    %v965 = vadd.f32 %v875, %v964
    %v966 = vpop.f32.mrf.mxu0
    %v967 = vadd.f32 %v879, %v966
    %968 = vdwg.mxu0
    %969 = vmatprep.subr.mxu0 0.0
    %970 = vmatpush1.msra.mxu0 %v869
    %971 = vmatprep.subr.mxu0 0.0
    %972 = vmatpush1.msra.mxu0 %v866
    %973 = vmatprep.subr.mxu0 0.0
    %974 = vmatpush1.msra.mxu0 %v863
    %975 = vmatprep.subr.mxu0 0.0
    %976 = vmatpush1.msra.mxu0 %v860
    %977 = vmatprep.subr.mxu0 0.0
    %978 = vmatpush1.msra.mxu0 %v857
    %979 = vmatprep.subr.mxu0 0.0
    %980 = vmatpush1.msra.mxu0 %v854
    %981 = vmatprep.subr.mxu0 0.0
    %982 = vmatpush1.msra.mxu0 %v851
    %983 = vmatprep.subr.mxu0 0.0
    %984 = vmatpush1.msra.mxu0 %v848
    %985 = vmatprep.subr.mxu0 0.0
    %986 = vmatpush1.msra.mxu0 %v845
    %987 = vmatprep.subr.mxu0 0.0
    %988 = vmatpush1.msra.mxu0 %v842
    %989 = vmatprep.subr.mxu0 0.0
    %990 = vmatpush1.msra.mxu0 %v839
    %991 = vmatprep.subr.mxu0 0.0
    %992 = vmatpush1.msra.mxu0 %v836
    %993 = vmatprep.subr.mxu0 0.0
    %994 = vmatpush1.msra.mxu0 %v833
    %995 = vmatprep.subr.mxu0 0.0
    %996 = vmatpush1.msra.mxu0 %v830
    %997 = vmatprep.subr.mxu0 0.0
    %998 = vmatpush1.msra.mxu0 %v827
    %999 = vmatprep.subr.mxu0 0.0
    %1000 = vmatpush1.msra.mxu0 %v824
    %1001 = vmatprep.subr.mxu0 0.0
    %1002 = vmatpush2.msra.mxu0 0.0
    %1003 = vmatprep.subr.mxu0 0.0
    %1004 = vmatpush2.msra.mxu0 0.0
    %1005 = vmatprep.subr.mxu0 0.0
    %1006 = vmatpush2.msra.mxu0 0.0
    %1007 = vmatprep.subr.mxu0 0.0
    %1008 = vmatpush2.msra.mxu0 0.0
    %1009 = vmatprep.subr.mxu0 0.0
    %1010 = vmatpush2.msra.mxu0 0.0
    %1011 = vmatprep.subr.mxu0 0.0
    %1012 = vmatpush2.msra.mxu0 0.0
    %1013 = vmatprep.subr.mxu0 0.0
    %1014 = vmatpush2.msra.mxu0 0.0
    %1015 = vmatprep.subr.mxu0 0.0
    %1016 = vmatpush2.msra.mxu0 0.0
    %1017 = vmatprep.subr.mxu0 0.0
    %1018 = vmatpush2.msra.mxu0 0.0
    %1019 = vmatprep.subr.mxu0 0.0
    %1020 = vmatpush2.msra.mxu0 0.0
    %1021 = vmatprep.subr.mxu0 0.0
    %1022 = vmatpush2.msra.mxu0 0.0
    %1023 = vmatprep.subr.mxu0 0.0
    %1024 = vmatpush2.msra.mxu0 0.0
    %1025 = vmatprep.subr.mxu0 0.0
    %1026 = vmatpush2.msra.mxu0 0.0
    %1027 = vmatprep.subr.mxu0 0.0
    %1028 = vmatpush2.msra.mxu0 0.0
    %1029 = vmatprep.subr.mxu0 0.0
    %1030 = vmatpush2.msra.mxu0 0.0
    %1031 = vmatprep.subr.mxu0 0.0
    %1032 = vmatpush2.msra.mxu0 0.0
    %1033 = vmatprep.mubr.f32.mxu0 0.0
    %1034 = vmatmul.mubr.f32.gmra.mxu0 %v896
    %v1035 = vpop.f32.mrf.mxu0
    %v1036 = vadd.f32 %v883, %v1035
    %v1037 = vpop.f32.mrf.mxu0
    %1038 = vdwg.mxu0
    %v1041 = vunpack.c.l.s4 1983009808
    %v1042 = vunpack.c.0.s8 %v1041
    %v1043 = vlaneseq
    %v1044 = vshrl.u32 %v1043, 7
    %v1045 = vsub.s32 %v1042, %v1044
    %v1046 = vrot.slane %v965, %v1045
    %v1047 = vrot.slane %v1046, 1
    %v1050 = vadd.f32 %v795, %v1046
    %v1051 = vadd.f32 %v798, %v1047
    %v1052 = vxor.u32 %v1050, 2147483648
    %v1053 = vxor.u32 %v1051, 2147483648
    %v1054 = vmul.f32 %v1052, 1.442695
    %v1055 = vpow.pop %v1054
    %v1056 = vmul.f32 %v1053, 1.442695
    %v1057 = vpow.pop %v1056
    %v1058 = vadd.f32 %v1055, 1.0
    %v1059 = vadd.f32 %v1057, 1.0
    %v1060 = vrcp.pop %v1058
    %v1061 = vmul.f32 1.0, %v1060
    %v1062 = vrcp.pop %v1059
    %v1063 = vmul.f32 1.0, %v1062
    %v1064 = vrot.slane %v795, 2
    %v1065 = vrot.slane %v798, 2
    %v1070 = vunpack.c.l.s4 1983009808
    %v1071 = vunpack.c.0.s8 %v1070
    %v1072 = vlaneseq
    %v1073 = vshrl.u32 %v1072, 7
    %v1074 = vsub.s32 %v1071, %v1073
    %v1075 = vrot.slane %v967, %v1074
    %v1076 = vrot.slane %v1075, 1
    %v1079 = vadd.f32 %v1064, %v1075
    %v1080 = vadd.f32 %v1065, %v1076
    %v1081 = vxor.u32 %v1079, 2147483648
    %v1082 = vxor.u32 %v1080, 2147483648
    %v1083 = vmul.f32 %v1081, 1.442695
    %v1084 = vpow.pop %v1083
    %v1085 = vmul.f32 %v1082, 1.442695
    %v1086 = vpow.pop %v1085
    %v1087 = vadd.f32 %v1084, 1.0
    %v1088 = vadd.f32 %v1086, 1.0
    %v1089 = vrcp.pop %v1087
    %v1090 = vmul.f32 1.0, %v1089
    %v1091 = vrcp.pop %v1088
    %v1092 = vmul.f32 1.0, %v1091
    %v1095 = vunpack.c.l.s4 1983009808
    %v1096 = vunpack.c.0.s8 %v1095
    %v1097 = vlaneseq
    %v1098 = vshrl.u32 %v1097, 7
    %v1099 = vsub.s32 %v1096, %v1098
    %v1100 = vrot.slane %v1036, %v1099
    %v1101 = vrot.slane %v1100, 1
    %v1104 = vmul.f32 %v1061, %v1100
    %v1105 = vmul.f32 %v1063, %v1101
    %v1106 = vrot.slane %v795, 4
    %v1107 = vrot.slane %v798, 4
    %v1110 = vadd.f32 %v1106, %v1104
    %v1111 = vadd.f32 %v1107, %v1105
    %v1112 = vtanh.pop %v1110
    %v1113 = vtanh.pop %v1111
    %v1114 = vsub.f32 1.0, %v1090
    %v1115 = vsub.f32 1.0, %v1092
    %v1116 = vmul.f32 %v1114, %v1112
    %v1117 = vmul.f32 %v1115, %v1113
    %v1118 = vmul.f32 %v1090, %v530
    %v1119 = vmul.f32 %v1092, %v538
    %v1120 = vadd.f32 %v1116, %v1118
    %v1121 = vadd.f32 %v1117, %v1119
    %v1124 = vlaneseq
    %v1125 = vshrl.u32 %v1124, 7
    %v1126 = vsub.s32 0, %v1125
    %v1127 = vrot.slane %v1120, %v1126
    %v1128 = vlaneseq
    %v1129 = vshrl.u32 %v1128, 7
    %v1130 = vsub.s32 0, %v1129
    %v1131 = vrot.slane %v1121, %v1130
    %v1132 = vsel %vm895, %v1131, %v1127
    %1134 = vmatprep.subr.mxu0 %v868
    %1135 = vmatpush1.msra.mxu0 %v867
    %1136 = vmatprep.subr.mxu0 %v865
    %1137 = vmatpush1.msra.mxu0 %v864
    %1138 = vmatprep.subr.mxu0 %v862
    %1139 = vmatpush1.msra.mxu0 %v861
    %1140 = vmatprep.subr.mxu0 %v859
    %1141 = vmatpush1.msra.mxu0 %v858
    %1142 = vmatprep.subr.mxu0 %v856
    %1143 = vmatpush1.msra.mxu0 %v855
    %1144 = vmatprep.subr.mxu0 %v853
    %1145 = vmatpush1.msra.mxu0 %v852
    %1146 = vmatprep.subr.mxu0 %v850
    %1147 = vmatpush1.msra.mxu0 %v849
    %1148 = vmatprep.subr.mxu0 %v847
    %1149 = vmatpush1.msra.mxu0 %v846
    %1150 = vmatprep.subr.mxu0 %v844
    %1151 = vmatpush1.msra.mxu0 %v843
    %1152 = vmatprep.subr.mxu0 %v841
    %1153 = vmatpush1.msra.mxu0 %v840
    %1154 = vmatprep.subr.mxu0 %v838
    %1155 = vmatpush1.msra.mxu0 %v837
    %1156 = vmatprep.subr.mxu0 %v835
    %1157 = vmatpush1.msra.mxu0 %v834
    %1158 = vmatprep.subr.mxu0 %v832
    %1159 = vmatpush1.msra.mxu0 %v831
    %1160 = vmatprep.subr.mxu0 %v829
    %1161 = vmatpush1.msra.mxu0 %v828
    %1162 = vmatprep.subr.mxu0 %v826
    %1163 = vmatpush1.msra.mxu0 %v825
    %1164 = vmatprep.subr.mxu0 %v823
    %1165 = vmatpush1.msra.mxu0 %v822
    %1166 = vmatprep.subr.mxu0 0.0
    %1167 = vmatpush2.msra.mxu0 0.0
    %1168 = vmatprep.subr.mxu0 0.0
    %1169 = vmatpush2.msra.mxu0 0.0
    %1170 = vmatprep.subr.mxu0 0.0
    %1171 = vmatpush2.msra.mxu0 0.0
    %1172 = vmatprep.subr.mxu0 0.0
    %1173 = vmatpush2.msra.mxu0 0.0
    %1174 = vmatprep.subr.mxu0 0.0
    %1175 = vmatpush2.msra.mxu0 0.0
    %1176 = vmatprep.subr.mxu0 0.0
    %1177 = vmatpush2.msra.mxu0 0.0
    %1178 = vmatprep.subr.mxu0 0.0
    %1179 = vmatpush2.msra.mxu0 0.0
    %1180 = vmatprep.subr.mxu0 0.0
    %1181 = vmatpush2.msra.mxu0 0.0
    %1182 = vmatprep.subr.mxu0 0.0
    %1183 = vmatpush2.msra.mxu0 0.0
    %1184 = vmatprep.subr.mxu0 0.0
    %1185 = vmatpush2.msra.mxu0 0.0
    %1186 = vmatprep.subr.mxu0 0.0
    %1187 = vmatpush2.msra.mxu0 0.0
    %1188 = vmatprep.subr.mxu0 0.0
    %1189 = vmatpush2.msra.mxu0 0.0
    %1190 = vmatprep.subr.mxu0 0.0
    %1191 = vmatpush2.msra.mxu0 0.0
    %1192 = vmatprep.subr.mxu0 0.0
    %1193 = vmatpush2.msra.mxu0 0.0
    %1194 = vmatprep.subr.mxu0 0.0
    %1195 = vmatpush2.msra.mxu0 0.0
    %1196 = vmatprep.subr.mxu0 0.0
    %1197 = vmatpush2.msra.mxu0 0.0
    %1198 = vmatprep.mubr.f32.mxu0 0.0
    %1199 = vmatmul.mubr.f32.gmra.mxu0 %v1132
    %v1200 = vpop.f32.mrf.mxu0
    %v1201 = vadd.f32 %v875, %v1200
    %v1202 = vpop.f32.mrf.mxu0
    %v1203 = vadd.f32 %v879, %v1202
    %1204 = vdwg.mxu0
    %1205 = vmatprep.subr.mxu0 0.0
    %1206 = vmatpush1.msra.mxu0 %v869
    %1207 = vmatprep.subr.mxu0 0.0
    %1208 = vmatpush1.msra.mxu0 %v866
    %1209 = vmatprep.subr.mxu0 0.0
    %1210 = vmatpush1.msra.mxu0 %v863
    %1211 = vmatprep.subr.mxu0 0.0
    %1212 = vmatpush1.msra.mxu0 %v860
    %1213 = vmatprep.subr.mxu0 0.0
    %1214 = vmatpush1.msra.mxu0 %v857
    %1215 = vmatprep.subr.mxu0 0.0
    %1216 = vmatpush1.msra.mxu0 %v854
    %1217 = vmatprep.subr.mxu0 0.0
    %1218 = vmatpush1.msra.mxu0 %v851
    %1219 = vmatprep.subr.mxu0 0.0
    %1220 = vmatpush1.msra.mxu0 %v848
    %1221 = vmatprep.subr.mxu0 0.0
    %1222 = vmatpush1.msra.mxu0 %v845
    %1223 = vmatprep.subr.mxu0 0.0
    %1224 = vmatpush1.msra.mxu0 %v842
    %1225 = vmatprep.subr.mxu0 0.0
    %1226 = vmatpush1.msra.mxu0 %v839
    %1227 = vmatprep.subr.mxu0 0.0
    %1228 = vmatpush1.msra.mxu0 %v836
    %1229 = vmatprep.subr.mxu0 0.0
    %1230 = vmatpush1.msra.mxu0 %v833
    %1231 = vmatprep.subr.mxu0 0.0
    %1232 = vmatpush1.msra.mxu0 %v830
    %1233 = vmatprep.subr.mxu0 0.0
    %1234 = vmatpush1.msra.mxu0 %v827
    %1235 = vmatprep.subr.mxu0 0.0
    %1236 = vmatpush1.msra.mxu0 %v824
    %1237 = vmatprep.subr.mxu0 0.0
    %1238 = vmatpush2.msra.mxu0 0.0
    %1239 = vmatprep.subr.mxu0 0.0
    %1240 = vmatpush2.msra.mxu0 0.0
    %1241 = vmatprep.subr.mxu0 0.0
    %1242 = vmatpush2.msra.mxu0 0.0
    %1243 = vmatprep.subr.mxu0 0.0
    %1244 = vmatpush2.msra.mxu0 0.0
    %1245 = vmatprep.subr.mxu0 0.0
    %1246 = vmatpush2.msra.mxu0 0.0
    %1247 = vmatprep.subr.mxu0 0.0
    %1248 = vmatpush2.msra.mxu0 0.0
    %1249 = vmatprep.subr.mxu0 0.0
    %1250 = vmatpush2.msra.mxu0 0.0
    %1251 = vmatprep.subr.mxu0 0.0
    %1252 = vmatpush2.msra.mxu0 0.0
    %1253 = vmatprep.subr.mxu0 0.0
    %1254 = vmatpush2.msra.mxu0 0.0
    %1255 = vmatprep.subr.mxu0 0.0
    %1256 = vmatpush2.msra.mxu0 0.0
    %1257 = vmatprep.subr.mxu0 0.0
    %1258 = vmatpush2.msra.mxu0 0.0
    %1259 = vmatprep.subr.mxu0 0.0
    %1260 = vmatpush2.msra.mxu0 0.0
    %1261 = vmatprep.subr.mxu0 0.0
    %1262 = vmatpush2.msra.mxu0 0.0
    %1263 = vmatprep.subr.mxu0 0.0
    %1264 = vmatpush2.msra.mxu0 0.0
    %1265 = vmatprep.subr.mxu0 0.0
    %1266 = vmatpush2.msra.mxu0 0.0
    %1267 = vmatprep.subr.mxu0 0.0
    %1268 = vmatpush2.msra.mxu0 0.0
    %1269 = vmatprep.mubr.f32.mxu0 0.0
    %1270 = vmatmul.mubr.f32.gmra.mxu0 %v1132
    %v1271 = vpop.f32.mrf.mxu0
    %v1272 = vadd.f32 %v883, %v1271
    %v1273 = vpop.f32.mrf.mxu0
    %1274 = vdwg.mxu0
    %v1277 = vunpack.c.l.s4 1983009808
    %v1278 = vunpack.c.0.s8 %v1277
    %v1279 = vlaneseq
    %v1280 = vshrl.u32 %v1279, 7
    %v1281 = vsub.s32 %v1278, %v1280
    %v1282 = vrot.slane %v1201, %v1281
    %v1283 = vrot.slane %v1282, 7
    %v1286 = vadd.f32 %v795, %v1283
    %v1287 = vadd.f32 %v798, %v1282
    %v1288 = vxor.u32 %v1286, 2147483648
    %v1289 = vxor.u32 %v1287, 2147483648
    %v1290 = vmul.f32 %v1288, 1.442695
    %v1291 = vpow.pop %v1290
    %v1292 = vmul.f32 %v1289, 1.442695
    %v1293 = vpow.pop %v1292
    %v1294 = vadd.f32 %v1291, 1.0
    %v1295 = vadd.f32 %v1293, 1.0
    %v1296 = vrcp.pop %v1294
    %v1297 = vmul.f32 1.0, %v1296
    %v1298 = vrcp.pop %v1295
    %v1299 = vmul.f32 1.0, %v1298
    %v1302 = vunpack.c.l.s4 1983009808
    %v1303 = vunpack.c.0.s8 %v1302
    %v1304 = vlaneseq
    %v1305 = vshrl.u32 %v1304, 7
    %v1306 = vsub.s32 %v1303, %v1305
    %v1307 = vrot.slane %v1203, %v1306
    %v1308 = vrot.slane %v1307, 7
    %v1311 = vadd.f32 %v1064, %v1308
    %v1312 = vadd.f32 %v1065, %v1307
    %v1313 = vxor.u32 %v1311, 2147483648
    %v1314 = vxor.u32 %v1312, 2147483648
    %v1315 = vmul.f32 %v1313, 1.442695
    %v1316 = vpow.pop %v1315
    %v1317 = vmul.f32 %v1314, 1.442695
    %v1318 = vpow.pop %v1317
    %v1319 = vadd.f32 %v1316, 1.0
    %v1320 = vadd.f32 %v1318, 1.0
    %v1321 = vrcp.pop %v1319
    %v1322 = vmul.f32 1.0, %v1321
    %v1323 = vrcp.pop %v1320
    %v1324 = vmul.f32 1.0, %v1323
    %v1327 = vunpack.c.l.s4 1983009808
    %v1328 = vunpack.c.0.s8 %v1327
    %v1329 = vlaneseq
    %v1330 = vshrl.u32 %v1329, 7
    %v1331 = vsub.s32 %v1328, %v1330
    %v1332 = vrot.slane %v1272, %v1331
    %v1333 = vrot.slane %v1332, 7
    %v1336 = vmul.f32 %v1297, %v1333
    %v1337 = vmul.f32 %v1299, %v1332
    %v1338 = vadd.f32 %v1106, %v1336
    %v1339 = vadd.f32 %v1107, %v1337
    %v1340 = vtanh.pop %v1338
    %v1341 = vtanh.pop %v1339
    %v1342 = vsub.f32 1.0, %v1322
    %v1343 = vsub.f32 1.0, %v1324
    %v1344 = vmul.f32 %v1342, %v1340
    %v1345 = vmul.f32 %v1343, %v1341
    %v1346 = vrot.slane %v1120, 7
    %v1347 = vrot.slane %v1121, 7
    %v1350 = vmul.f32 %v1322, %v1346
    %v1351 = vmul.f32 %v1324, %v1347
    %v1352 = vadd.f32 %v1344, %v1350
    %v1353 = vadd.f32 %v1345, %v1351
    %v1356 = vlaneseq
    %v1357 = vshrl.u32 %v1356, 7
    %v1358 = vsub.s32 1, %v1357
    %v1359 = vrot.slane %v1352, %v1358
    %v1360 = vlaneseq
    %v1361 = vshrl.u32 %v1360, 7
    %v1362 = vsub.s32 1, %v1361
    %v1363 = vrot.slane %v1353, %v1362
    %v1364 = vsel %vm895, %v1363, %v1359
    %1366 = vmatprep.subr.mxu0 %v868
    %1367 = vmatpush1.msra.mxu0 %v867
    %1368 = vmatprep.subr.mxu0 %v865
    %1369 = vmatpush1.msra.mxu0 %v864
    %1370 = vmatprep.subr.mxu0 %v862
    %1371 = vmatpush1.msra.mxu0 %v861
    %1372 = vmatprep.subr.mxu0 %v859
    %1373 = vmatpush1.msra.mxu0 %v858
    %1374 = vmatprep.subr.mxu0 %v856
    %1375 = vmatpush1.msra.mxu0 %v855
    %1376 = vmatprep.subr.mxu0 %v853
    %1377 = vmatpush1.msra.mxu0 %v852
    %1378 = vmatprep.subr.mxu0 %v850
    %1379 = vmatpush1.msra.mxu0 %v849
    %1380 = vmatprep.subr.mxu0 %v847
    %1381 = vmatpush1.msra.mxu0 %v846
    %1382 = vmatprep.subr.mxu0 %v844
    %1383 = vmatpush1.msra.mxu0 %v843
    %1384 = vmatprep.subr.mxu0 %v841
    %1385 = vmatpush1.msra.mxu0 %v840
    %1386 = vmatprep.subr.mxu0 %v838
    %1387 = vmatpush1.msra.mxu0 %v837
    %1388 = vmatprep.subr.mxu0 %v835
    %1389 = vmatpush1.msra.mxu0 %v834
    %1390 = vmatprep.subr.mxu0 %v832
    %1391 = vmatpush1.msra.mxu0 %v831
    %1392 = vmatprep.subr.mxu0 %v829
    %1393 = vmatpush1.msra.mxu0 %v828
    %1394 = vmatprep.subr.mxu0 %v826
    %1395 = vmatpush1.msra.mxu0 %v825
    %1396 = vmatprep.subr.mxu0 %v823
    %1397 = vmatpush1.msra.mxu0 %v822
    %1398 = vmatprep.subr.mxu0 0.0
    %1399 = vmatpush2.msra.mxu0 0.0
    %1400 = vmatprep.subr.mxu0 0.0
    %1401 = vmatpush2.msra.mxu0 0.0
    %1402 = vmatprep.subr.mxu0 0.0
    %1403 = vmatpush2.msra.mxu0 0.0
    %1404 = vmatprep.subr.mxu0 0.0
    %1405 = vmatpush2.msra.mxu0 0.0
    %1406 = vmatprep.subr.mxu0 0.0
    %1407 = vmatpush2.msra.mxu0 0.0
    %1408 = vmatprep.subr.mxu0 0.0
    %1409 = vmatpush2.msra.mxu0 0.0
    %1410 = vmatprep.subr.mxu0 0.0
    %1411 = vmatpush2.msra.mxu0 0.0
    %1412 = vmatprep.subr.mxu0 0.0
    %1413 = vmatpush2.msra.mxu0 0.0
    %1414 = vmatprep.subr.mxu0 0.0
    %1415 = vmatpush2.msra.mxu0 0.0
    %1416 = vmatprep.subr.mxu0 0.0
    %1417 = vmatpush2.msra.mxu0 0.0
    %1418 = vmatprep.subr.mxu0 0.0
    %1419 = vmatpush2.msra.mxu0 0.0
    %1420 = vmatprep.subr.mxu0 0.0
    %1421 = vmatpush2.msra.mxu0 0.0
    %1422 = vmatprep.subr.mxu0 0.0
    %1423 = vmatpush2.msra.mxu0 0.0
    %1424 = vmatprep.subr.mxu0 0.0
    %1425 = vmatpush2.msra.mxu0 0.0
    %1426 = vmatprep.subr.mxu0 0.0
    %1427 = vmatpush2.msra.mxu0 0.0
    %1428 = vmatprep.subr.mxu0 0.0
    %1429 = vmatpush2.msra.mxu0 0.0
    %1430 = vmatprep.mubr.f32.mxu0 0.0
    %1431 = vmatmul.mubr.f32.gmra.mxu0 %v1364
    %v1432 = vpop.f32.mrf.mxu0
    %v1433 = vadd.f32 %v875, %v1432
    %v1434 = vpop.f32.mrf.mxu0
    %v1435 = vadd.f32 %v879, %v1434
    %1436 = vdwg.mxu0
    %1437 = vmatprep.subr.mxu0 0.0
    %1438 = vmatpush1.msra.mxu0 %v869
    %1439 = vmatprep.subr.mxu0 0.0
    %1440 = vmatpush1.msra.mxu0 %v866
    %1441 = vmatprep.subr.mxu0 0.0
    %1442 = vmatpush1.msra.mxu0 %v863
    %1443 = vmatprep.subr.mxu0 0.0
    %1444 = vmatpush1.msra.mxu0 %v860
    %1445 = vmatprep.subr.mxu0 0.0
    %1446 = vmatpush1.msra.mxu0 %v857
    %1447 = vmatprep.subr.mxu0 0.0
    %1448 = vmatpush1.msra.mxu0 %v854
    %1449 = vmatprep.subr.mxu0 0.0
    %1450 = vmatpush1.msra.mxu0 %v851
    %1451 = vmatprep.subr.mxu0 0.0
    %1452 = vmatpush1.msra.mxu0 %v848
    %1453 = vmatprep.subr.mxu0 0.0
    %1454 = vmatpush1.msra.mxu0 %v845
    %1455 = vmatprep.subr.mxu0 0.0
    %1456 = vmatpush1.msra.mxu0 %v842
    %1457 = vmatprep.subr.mxu0 0.0
    %1458 = vmatpush1.msra.mxu0 %v839
    %1459 = vmatprep.subr.mxu0 0.0
    %1460 = vmatpush1.msra.mxu0 %v836
    %1461 = vmatprep.subr.mxu0 0.0
    %1462 = vmatpush1.msra.mxu0 %v833
    %1463 = vmatprep.subr.mxu0 0.0
    %1464 = vmatpush1.msra.mxu0 %v830
    %1465 = vmatprep.subr.mxu0 0.0
    %1466 = vmatpush1.msra.mxu0 %v827
    %1467 = vmatprep.subr.mxu0 0.0
    %1468 = vmatpush1.msra.mxu0 %v824
    %1469 = vmatprep.subr.mxu0 0.0
    %1470 = vmatpush2.msra.mxu0 0.0
    %1471 = vmatprep.subr.mxu0 0.0
    %1472 = vmatpush2.msra.mxu0 0.0
    %1473 = vmatprep.subr.mxu0 0.0
    %1474 = vmatpush2.msra.mxu0 0.0
    %1475 = vmatprep.subr.mxu0 0.0
    %1476 = vmatpush2.msra.mxu0 0.0
    %1477 = vmatprep.subr.mxu0 0.0
    %1478 = vmatpush2.msra.mxu0 0.0
    %1479 = vmatprep.subr.mxu0 0.0
    %1480 = vmatpush2.msra.mxu0 0.0
    %1481 = vmatprep.subr.mxu0 0.0
    %1482 = vmatpush2.msra.mxu0 0.0
    %1483 = vmatprep.subr.mxu0 0.0
    %1484 = vmatpush2.msra.mxu0 0.0
    %1485 = vmatprep.subr.mxu0 0.0
    %1486 = vmatpush2.msra.mxu0 0.0
    %1487 = vmatprep.subr.mxu0 0.0
    %1488 = vmatpush2.msra.mxu0 0.0
    %1489 = vmatprep.subr.mxu0 0.0
    %1490 = vmatpush2.msra.mxu0 0.0
    %1491 = vmatprep.subr.mxu0 0.0
    %1492 = vmatpush2.msra.mxu0 0.0
    %1493 = vmatprep.subr.mxu0 0.0
    %1494 = vmatpush2.msra.mxu0 0.0
    %1495 = vmatprep.subr.mxu0 0.0
    %1496 = vmatpush2.msra.mxu0 0.0
    %1497 = vmatprep.subr.mxu0 0.0
    %1498 = vmatpush2.msra.mxu0 0.0
    %1499 = vmatprep.subr.mxu0 0.0
    %1500 = vmatpush2.msra.mxu0 0.0
    %1501 = vmatprep.mubr.f32.mxu0 0.0
    %1502 = vmatmul.mubr.f32.gmra.mxu0 %v1364
    %v1503 = vpop.f32.mrf.mxu0
    %v1504 = vadd.f32 %v883, %v1503
    %v1505 = vpop.f32.mrf.mxu0
    %1506 = vdwg.mxu0
    %v1509 = vunpack.c.l.s4 1983009808
    %v1510 = vunpack.c.0.s8 %v1509
    %v1511 = vlaneseq
    %v1512 = vshrl.u32 %v1511, 7
    %v1513 = vsub.s32 %v1510, %v1512
    %v1514 = vrot.slane %v1433, %v1513
    %v1515 = vrot.slane %v1514, 1
    %v1518 = vadd.f32 %v796, %v1514
    %v1519 = vadd.f32 %v814, %v1515
    %v1520 = vxor.u32 %v1518, 2147483648
    %v1521 = vxor.u32 %v1519, 2147483648
    %v1522 = vmul.f32 %v1520, 1.442695
    %v1523 = vpow.pop %v1522
    %v1524 = vmul.f32 %v1521, 1.442695
    %v1525 = vpow.pop %v1524
    %v1526 = vadd.f32 %v1523, 1.0
    %v1527 = vadd.f32 %v1525, 1.0
    %v1528 = vrcp.pop %v1526
    %v1529 = vmul.f32 1.0, %v1528
    %v1530 = vrcp.pop %v1527
    %v1531 = vmul.f32 1.0, %v1530
    %v1532 = vrot.slane %v796, 2
    %v1533 = vrot.slane %v814, 2
    %v1538 = vunpack.c.l.s4 1983009808
    %v1539 = vunpack.c.0.s8 %v1538
    %v1540 = vlaneseq
    %v1541 = vshrl.u32 %v1540, 7
    %v1542 = vsub.s32 %v1539, %v1541
    %v1543 = vrot.slane %v1435, %v1542
    %v1544 = vrot.slane %v1543, 1
    %v1547 = vadd.f32 %v1532, %v1543
    %v1548 = vadd.f32 %v1533, %v1544
    %v1549 = vxor.u32 %v1547, 2147483648
    %v1550 = vxor.u32 %v1548, 2147483648
    %v1551 = vmul.f32 %v1549, 1.442695
    %v1552 = vpow.pop %v1551
    %v1553 = vmul.f32 %v1550, 1.442695
    %v1554 = vpow.pop %v1553
    %v1555 = vadd.f32 %v1552, 1.0
    %v1556 = vadd.f32 %v1554, 1.0
    %v1557 = vrcp.pop %v1555
    %v1558 = vmul.f32 1.0, %v1557
    %v1559 = vrcp.pop %v1556
    %v1560 = vmul.f32 1.0, %v1559
    %v1563 = vunpack.c.l.s4 1983009808
    %v1564 = vunpack.c.0.s8 %v1563
    %v1565 = vlaneseq
    %v1566 = vshrl.u32 %v1565, 7
    %v1567 = vsub.s32 %v1564, %v1566
    %v1568 = vrot.slane %v1504, %v1567
    %v1569 = vrot.slane %v1568, 1
    %v1572 = vmul.f32 %v1529, %v1568
    %v1573 = vmul.f32 %v1531, %v1569
    %v1574 = vrot.slane %v796, 4
    %v1575 = vrot.slane %v814, 4
    %v1578 = vadd.f32 %v1574, %v1572
    %v1579 = vadd.f32 %v1575, %v1573
    %v1580 = vtanh.pop %v1578
    %v1581 = vtanh.pop %v1579
    %v1582 = vsub.f32 1.0, %v1558
    %v1583 = vsub.f32 1.0, %v1560
    %v1584 = vmul.f32 %v1582, %v1580
    %v1585 = vmul.f32 %v1583, %v1581
    %v1586 = vrot.slane %v1352, 7
    %v1587 = vrot.slane %v1586, 2
    %v1588 = vrot.slane %v1353, 7
    %v1589 = vrot.slane %v1588, 2
    %v1592 = vmul.f32 %v1558, %v1587
    %v1593 = vmul.f32 %v1560, %v1589
    %v1594 = vadd.f32 %v1584, %v1592
    %v1595 = vadd.f32 %v1585, %v1593
    %v1598 = vlaneseq
    %v1599 = vshrl.u32 %v1598, 7
    %v1600 = vsub.s32 0, %v1599
    %v1601 = vrot.slane %v1594, %v1600
    %v1602 = vlaneseq
    %v1603 = vshrl.u32 %v1602, 7
    %v1604 = vsub.s32 0, %v1603
    %v1605 = vrot.slane %v1595, %v1604
    %v1606 = vsel %vm895, %v1605, %v1601
    %1608 = vmatprep.subr.mxu0 %v868
    %1609 = vmatpush1.msra.mxu0 %v867
    %1610 = vmatprep.subr.mxu0 %v865
    %1611 = vmatpush1.msra.mxu0 %v864
    %1612 = vmatprep.subr.mxu0 %v862
    %1613 = vmatpush1.msra.mxu0 %v861
    %1614 = vmatprep.subr.mxu0 %v859
    %1615 = vmatpush1.msra.mxu0 %v858
    %1616 = vmatprep.subr.mxu0 %v856
    %1617 = vmatpush1.msra.mxu0 %v855
    %1618 = vmatprep.subr.mxu0 %v853
    %1619 = vmatpush1.msra.mxu0 %v852
    %1620 = vmatprep.subr.mxu0 %v850
    %1621 = vmatpush1.msra.mxu0 %v849
    %1622 = vmatprep.subr.mxu0 %v847
    %1623 = vmatpush1.msra.mxu0 %v846
    %1624 = vmatprep.subr.mxu0 %v844
    %1625 = vmatpush1.msra.mxu0 %v843
    %1626 = vmatprep.subr.mxu0 %v841
    %1627 = vmatpush1.msra.mxu0 %v840
    %1628 = vmatprep.subr.mxu0 %v838
    %1629 = vmatpush1.msra.mxu0 %v837
    %1630 = vmatprep.subr.mxu0 %v835
    %1631 = vmatpush1.msra.mxu0 %v834
    %1632 = vmatprep.subr.mxu0 %v832
    %1633 = vmatpush1.msra.mxu0 %v831
    %1634 = vmatprep.subr.mxu0 %v829
    %1635 = vmatpush1.msra.mxu0 %v828
    %1636 = vmatprep.subr.mxu0 %v826
    %1637 = vmatpush1.msra.mxu0 %v825
    %1638 = vmatprep.subr.mxu0 %v823
    %1639 = vmatpush1.msra.mxu0 %v822
    %1640 = vmatprep.subr.mxu0 0.0
    %1641 = vmatpush2.msra.mxu0 0.0
    %1642 = vmatprep.subr.mxu0 0.0
    %1643 = vmatpush2.msra.mxu0 0.0
    %1644 = vmatprep.subr.mxu0 0.0
    %1645 = vmatpush2.msra.mxu0 0.0
    %1646 = vmatprep.subr.mxu0 0.0
    %1647 = vmatpush2.msra.mxu0 0.0
    %1648 = vmatprep.subr.mxu0 0.0
    %1649 = vmatpush2.msra.mxu0 0.0
    %1650 = vmatprep.subr.mxu0 0.0
    %1651 = vmatpush2.msra.mxu0 0.0
    %1652 = vmatprep.subr.mxu0 0.0
    %1653 = vmatpush2.msra.mxu0 0.0
    %1654 = vmatprep.subr.mxu0 0.0
    %1655 = vmatpush2.msra.mxu0 0.0
    %1656 = vmatprep.subr.mxu0 0.0
    %1657 = vmatpush2.msra.mxu0 0.0
    %1658 = vmatprep.subr.mxu0 0.0
    %1659 = vmatpush2.msra.mxu0 0.0
    %1660 = vmatprep.subr.mxu0 0.0
    %1661 = vmatpush2.msra.mxu0 0.0
    %1662 = vmatprep.subr.mxu0 0.0
    %1663 = vmatpush2.msra.mxu0 0.0
    %1664 = vmatprep.subr.mxu0 0.0
    %1665 = vmatpush2.msra.mxu0 0.0
    %1666 = vmatprep.subr.mxu0 0.0
    %1667 = vmatpush2.msra.mxu0 0.0
    %1668 = vmatprep.subr.mxu0 0.0
    %1669 = vmatpush2.msra.mxu0 0.0
    %1670 = vmatprep.subr.mxu0 0.0
    %1671 = vmatpush2.msra.mxu0 0.0
    %1672 = vmatprep.mubr.f32.mxu0 0.0
    %1673 = vmatmul.mubr.f32.gmra.mxu0 %v1606
    %v1674 = vpop.f32.mrf.mxu0
    %v1675 = vadd.f32 %v875, %v1674
    %v1676 = vpop.f32.mrf.mxu0
    %v1677 = vadd.f32 %v879, %v1676
    %1678 = vdwg.mxu0
    %1679 = vmatprep.subr.mxu0 0.0
    %1680 = vmatpush1.msra.mxu0 %v869
    %1681 = vmatprep.subr.mxu0 0.0
    %1682 = vmatpush1.msra.mxu0 %v866
    %1683 = vmatprep.subr.mxu0 0.0
    %1684 = vmatpush1.msra.mxu0 %v863
    %1685 = vmatprep.subr.mxu0 0.0
    %1686 = vmatpush1.msra.mxu0 %v860
    %1687 = vmatprep.subr.mxu0 0.0
    %1688 = vmatpush1.msra.mxu0 %v857
    %1689 = vmatprep.subr.mxu0 0.0
    %1690 = vmatpush1.msra.mxu0 %v854
    %1691 = vmatprep.subr.mxu0 0.0
    %1692 = vmatpush1.msra.mxu0 %v851
    %1693 = vmatprep.subr.mxu0 0.0
    %1694 = vmatpush1.msra.mxu0 %v848
    %1695 = vmatprep.subr.mxu0 0.0
    %1696 = vmatpush1.msra.mxu0 %v845
    %1697 = vmatprep.subr.mxu0 0.0
    %1698 = vmatpush1.msra.mxu0 %v842
    %1699 = vmatprep.subr.mxu0 0.0
    %1700 = vmatpush1.msra.mxu0 %v839
    %1701 = vmatprep.subr.mxu0 0.0
    %1702 = vmatpush1.msra.mxu0 %v836
    %1703 = vmatprep.subr.mxu0 0.0
    %1704 = vmatpush1.msra.mxu0 %v833
    %1705 = vmatprep.subr.mxu0 0.0
    %1706 = vmatpush1.msra.mxu0 %v830
    %1707 = vmatprep.subr.mxu0 0.0
    %1708 = vmatpush1.msra.mxu0 %v827
    %1709 = vmatprep.subr.mxu0 0.0
    %1710 = vmatpush1.msra.mxu0 %v824
    %1711 = vmatprep.subr.mxu0 0.0
    %1712 = vmatpush2.msra.mxu0 0.0
    %1713 = vmatprep.subr.mxu0 0.0
    %1714 = vmatpush2.msra.mxu0 0.0
    %1715 = vmatprep.subr.mxu0 0.0
    %1716 = vmatpush2.msra.mxu0 0.0
    %1717 = vmatprep.subr.mxu0 0.0
    %1718 = vmatpush2.msra.mxu0 0.0
    %1719 = vmatprep.subr.mxu0 0.0
    %1720 = vmatpush2.msra.mxu0 0.0
    %1721 = vmatprep.subr.mxu0 0.0
    %1722 = vmatpush2.msra.mxu0 0.0
    %1723 = vmatprep.subr.mxu0 0.0
    %1724 = vmatpush2.msra.mxu0 0.0
    %1725 = vmatprep.subr.mxu0 0.0
    %1726 = vmatpush2.msra.mxu0 0.0
    %1727 = vmatprep.subr.mxu0 0.0
    %1728 = vmatpush2.msra.mxu0 0.0
    %1729 = vmatprep.subr.mxu0 0.0
    %1730 = vmatpush2.msra.mxu0 0.0
    %1731 = vmatprep.subr.mxu0 0.0
    %1732 = vmatpush2.msra.mxu0 0.0
    %1733 = vmatprep.subr.mxu0 0.0
    %1734 = vmatpush2.msra.mxu0 0.0
    %1735 = vmatprep.subr.mxu0 0.0
    %1736 = vmatpush2.msra.mxu0 0.0
    %1737 = vmatprep.subr.mxu0 0.0
    %1738 = vmatpush2.msra.mxu0 0.0
    %1739 = vmatprep.subr.mxu0 0.0
    %1740 = vmatpush2.msra.mxu0 0.0
    %1741 = vmatprep.subr.mxu0 0.0
    %1742 = vmatpush2.msra.mxu0 0.0
    %1743 = vmatprep.mubr.f32.mxu0 0.0
    %1744 = vmatmul.mubr.f32.gmra.mxu0 %v1606
    %v1745 = vpop.f32.mrf.mxu0
    %v1746 = vadd.f32 %v883, %v1745
    %v1747 = vpop.f32.mrf.mxu0
    %1748 = vdwg.mxu0
    %v1751 = vunpack.c.l.s4 1983009808
    %v1752 = vunpack.c.0.s8 %v1751
    %v1753 = vlaneseq
    %v1754 = vshrl.u32 %v1753, 7
    %v1755 = vsub.s32 %v1752, %v1754
    %v1756 = vrot.slane %v1675, %v1755
    %v1757 = vrot.slane %v1756, 7
    %v1760 = vadd.f32 %v796, %v1757
    %v1761 = vadd.f32 %v814, %v1756
    %v1762 = vxor.u32 %v1760, 2147483648
    %v1763 = vxor.u32 %v1761, 2147483648
    %v1764 = vmul.f32 %v1762, 1.442695
    %v1765 = vpow.pop %v1764
    %v1766 = vmul.f32 %v1763, 1.442695
    %v1767 = vpow.pop %v1766
    %v1768 = vadd.f32 %v1765, 1.0
    %v1769 = vadd.f32 %v1767, 1.0
    %v1770 = vrcp.pop %v1768
    %v1771 = vmul.f32 1.0, %v1770
    %v1772 = vrcp.pop %v1769
    %v1773 = vmul.f32 1.0, %v1772
    %v1776 = vunpack.c.l.s4 1983009808
    %v1777 = vunpack.c.0.s8 %v1776
    %v1778 = vlaneseq
    %v1779 = vshrl.u32 %v1778, 7
    %v1780 = vsub.s32 %v1777, %v1779
    %v1781 = vrot.slane %v1677, %v1780
    %v1782 = vrot.slane %v1781, 7
    %v1785 = vadd.f32 %v1532, %v1782
    %v1786 = vadd.f32 %v1533, %v1781
    %v1787 = vxor.u32 %v1785, 2147483648
    %v1788 = vxor.u32 %v1786, 2147483648
    %v1789 = vmul.f32 %v1787, 1.442695
    %v1790 = vpow.pop %v1789
    %v1791 = vmul.f32 %v1788, 1.442695
    %v1792 = vpow.pop %v1791
    %v1793 = vadd.f32 %v1790, 1.0
    %v1794 = vadd.f32 %v1792, 1.0
    %v1795 = vrcp.pop %v1793
    %v1796 = vmul.f32 1.0, %v1795
    %v1797 = vrcp.pop %v1794
    %v1798 = vmul.f32 1.0, %v1797
    %v1801 = vunpack.c.l.s4 1983009808
    %v1802 = vunpack.c.0.s8 %v1801
    %v1803 = vlaneseq
    %v1804 = vshrl.u32 %v1803, 7
    %v1805 = vsub.s32 %v1802, %v1804
    %v1806 = vrot.slane %v1746, %v1805
    %v1807 = vrot.slane %v1806, 7
    %v1810 = vmul.f32 %v1771, %v1807
    %v1811 = vmul.f32 %v1773, %v1806
    %v1812 = vadd.f32 %v1574, %v1810
    %v1813 = vadd.f32 %v1575, %v1811
    %v1814 = vtanh.pop %v1812
    %v1815 = vtanh.pop %v1813
    %v1816 = vsub.f32 1.0, %v1796
    %v1817 = vsub.f32 1.0, %v1798
    %v1818 = vmul.f32 %v1816, %v1814
    %v1819 = vmul.f32 %v1817, %v1815
    %v1820 = vrot.slane %v1594, 7
    %v1821 = vrot.slane %v1595, 7
    %v1824 = vmul.f32 %v1796, %v1820
    %v1825 = vmul.f32 %v1798, %v1821
    %v1826 = vadd.f32 %v1818, %v1824
    %v1827 = vadd.f32 %v1819, %v1825
    %v1830 = vlaneseq
    %v1831 = vshrl.u32 %v1830, 7
    %v1832 = vsub.s32 1, %v1831
    %v1833 = vrot.slane %v1826, %v1832
    %v1834 = vlaneseq
    %v1835 = vshrl.u32 %v1834, 7
    %v1836 = vsub.s32 1, %v1835
    %v1837 = vrot.slane %v1827, %v1836
    %v1838 = vsel %vm895, %v1837, %v1833
    %1840 = vmatprep.subr.mxu0 %v868
    %1841 = vmatpush1.msra.mxu0 %v867
    %1842 = vmatprep.subr.mxu0 %v865
    %1843 = vmatpush1.msra.mxu0 %v864
    %1844 = vmatprep.subr.mxu0 %v862
    %1845 = vmatpush1.msra.mxu0 %v861
    %1846 = vmatprep.subr.mxu0 %v859
    %1847 = vmatpush1.msra.mxu0 %v858
    %1848 = vmatprep.subr.mxu0 %v856
    %1849 = vmatpush1.msra.mxu0 %v855
    %1850 = vmatprep.subr.mxu0 %v853
    %1851 = vmatpush1.msra.mxu0 %v852
    %1852 = vmatprep.subr.mxu0 %v850
    %1853 = vmatpush1.msra.mxu0 %v849
    %1854 = vmatprep.subr.mxu0 %v847
    %1855 = vmatpush1.msra.mxu0 %v846
    %1856 = vmatprep.subr.mxu0 %v844
    %1857 = vmatpush1.msra.mxu0 %v843
    %1858 = vmatprep.subr.mxu0 %v841
    %1859 = vmatpush1.msra.mxu0 %v840
    %1860 = vmatprep.subr.mxu0 %v838
    %1861 = vmatpush1.msra.mxu0 %v837
    %1862 = vmatprep.subr.mxu0 %v835
    %1863 = vmatpush1.msra.mxu0 %v834
    %1864 = vmatprep.subr.mxu0 %v832
    %1865 = vmatpush1.msra.mxu0 %v831
    %1866 = vmatprep.subr.mxu0 %v829
    %1867 = vmatpush1.msra.mxu0 %v828
    %1868 = vmatprep.subr.mxu0 %v826
    %1869 = vmatpush1.msra.mxu0 %v825
    %1870 = vmatprep.subr.mxu0 %v823
    %1871 = vmatpush1.msra.mxu0 %v822
    %1872 = vmatprep.subr.mxu0 0.0
    %1873 = vmatpush2.msra.mxu0 0.0
    %1874 = vmatprep.subr.mxu0 0.0
    %1875 = vmatpush2.msra.mxu0 0.0
    %1876 = vmatprep.subr.mxu0 0.0
    %1877 = vmatpush2.msra.mxu0 0.0
    %1878 = vmatprep.subr.mxu0 0.0
    %1879 = vmatpush2.msra.mxu0 0.0
    %1880 = vmatprep.subr.mxu0 0.0
    %1881 = vmatpush2.msra.mxu0 0.0
    %1882 = vmatprep.subr.mxu0 0.0
    %1883 = vmatpush2.msra.mxu0 0.0
    %1884 = vmatprep.subr.mxu0 0.0
    %1885 = vmatpush2.msra.mxu0 0.0
    %1886 = vmatprep.subr.mxu0 0.0
    %1887 = vmatpush2.msra.mxu0 0.0
    %1888 = vmatprep.subr.mxu0 0.0
    %1889 = vmatpush2.msra.mxu0 0.0
    %1890 = vmatprep.subr.mxu0 0.0
    %1891 = vmatpush2.msra.mxu0 0.0
    %1892 = vmatprep.subr.mxu0 0.0
    %1893 = vmatpush2.msra.mxu0 0.0
    %1894 = vmatprep.subr.mxu0 0.0
    %1895 = vmatpush2.msra.mxu0 0.0
    %1896 = vmatprep.subr.mxu0 0.0
    %1897 = vmatpush2.msra.mxu0 0.0
    %1898 = vmatprep.subr.mxu0 0.0
    %1899 = vmatpush2.msra.mxu0 0.0
    %1900 = vmatprep.subr.mxu0 0.0
    %1901 = vmatpush2.msra.mxu0 0.0
    %1902 = vmatprep.subr.mxu0 0.0
    %1903 = vmatpush2.msra.mxu0 0.0
    %1904 = vmatprep.mubr.f32.mxu0 0.0
    %1905 = vmatmul.mubr.f32.gmra.mxu0 %v1838
    %v1906 = vpop.f32.mrf.mxu0
    %v1907 = vadd.f32 %v875, %v1906
    %v1908 = vpop.f32.mrf.mxu0
    %v1909 = vadd.f32 %v879, %v1908
    %1910 = vdwg.mxu0
    %1911 = vmatprep.subr.mxu0 0.0
    %1912 = vmatpush1.msra.mxu0 %v869
    %1913 = vmatprep.subr.mxu0 0.0
    %1914 = vmatpush1.msra.mxu0 %v866
    %1915 = vmatprep.subr.mxu0 0.0
    %1916 = vmatpush1.msra.mxu0 %v863
    %1917 = vmatprep.subr.mxu0 0.0
    %1918 = vmatpush1.msra.mxu0 %v860
    %1919 = vmatprep.subr.mxu0 0.0
    %1920 = vmatpush1.msra.mxu0 %v857
    %1921 = vmatprep.subr.mxu0 0.0
    %1922 = vmatpush1.msra.mxu0 %v854
    %1923 = vmatprep.subr.mxu0 0.0
    %1924 = vmatpush1.msra.mxu0 %v851
    %1925 = vmatprep.subr.mxu0 0.0
    %1926 = vmatpush1.msra.mxu0 %v848
    %1927 = vmatprep.subr.mxu0 0.0
    %1928 = vmatpush1.msra.mxu0 %v845
    %1929 = vmatprep.subr.mxu0 0.0
    %1930 = vmatpush1.msra.mxu0 %v842
    %1931 = vmatprep.subr.mxu0 0.0
    %1932 = vmatpush1.msra.mxu0 %v839
    %1933 = vmatprep.subr.mxu0 0.0
    %1934 = vmatpush1.msra.mxu0 %v836
    %1935 = vmatprep.subr.mxu0 0.0
    %1936 = vmatpush1.msra.mxu0 %v833
    %1937 = vmatprep.subr.mxu0 0.0
    %1938 = vmatpush1.msra.mxu0 %v830
    %1939 = vmatprep.subr.mxu0 0.0
    %1940 = vmatpush1.msra.mxu0 %v827
    %1941 = vmatprep.subr.mxu0 0.0
    %1942 = vmatpush1.msra.mxu0 %v824
    %1943 = vmatprep.subr.mxu0 0.0
    %1944 = vmatpush2.msra.mxu0 0.0
    %1945 = vmatprep.subr.mxu0 0.0
    %1946 = vmatpush2.msra.mxu0 0.0
    %1947 = vmatprep.subr.mxu0 0.0
    %1948 = vmatpush2.msra.mxu0 0.0
    %1949 = vmatprep.subr.mxu0 0.0
    %1950 = vmatpush2.msra.mxu0 0.0
    %1951 = vmatprep.subr.mxu0 0.0
    %1952 = vmatpush2.msra.mxu0 0.0
    %1953 = vmatprep.subr.mxu0 0.0
    %1954 = vmatpush2.msra.mxu0 0.0
    %1955 = vmatprep.subr.mxu0 0.0
    %1956 = vmatpush2.msra.mxu0 0.0
    %1957 = vmatprep.subr.mxu0 0.0
    %1958 = vmatpush2.msra.mxu0 0.0
    %1959 = vmatprep.subr.mxu0 0.0
    %1960 = vmatpush2.msra.mxu0 0.0
    %1961 = vmatprep.subr.mxu0 0.0
    %1962 = vmatpush2.msra.mxu0 0.0
    %1963 = vmatprep.subr.mxu0 0.0
    %1964 = vmatpush2.msra.mxu0 0.0
    %1965 = vmatprep.subr.mxu0 0.0
    %1966 = vmatpush2.msra.mxu0 0.0
    %1967 = vmatprep.subr.mxu0 0.0
    %1968 = vmatpush2.msra.mxu0 0.0
    %1969 = vmatprep.subr.mxu0 0.0
    %1970 = vmatpush2.msra.mxu0 0.0
    %1971 = vmatprep.subr.mxu0 0.0
    %1972 = vmatpush2.msra.mxu0 0.0
    %1973 = vmatprep.subr.mxu0 0.0
    %1974 = vmatpush2.msra.mxu0 0.0
    %1975 = vmatprep.mubr.f32.mxu0 0.0
    %1976 = vmatmul.mubr.f32.gmra.mxu0 %v1838
    %v1977 = vpop.f32.mrf.mxu0
    %v1978 = vadd.f32 %v883, %v1977
    %v1979 = vpop.f32.mrf.mxu0
    %1980 = vdwg.mxu0
    %v1983 = vunpack.c.l.s4 1983009808
    %v1984 = vunpack.c.0.s8 %v1983
    %v1985 = vlaneseq
    %v1986 = vshrl.u32 %v1985, 7
    %v1987 = vsub.s32 %v1984, %v1986
    %v1988 = vrot.slane %v1907, %v1987
    %v1989 = vrot.slane %v1988, 1
    %v1992 = vadd.f32 %v797, %v1988
    %v1993 = vadd.f32 %v815, %v1989
    %v1994 = vxor.u32 %v1992, 2147483648
    %v1995 = vxor.u32 %v1993, 2147483648
    %v1996 = vmul.f32 %v1994, 1.442695
    %v1997 = vpow.pop %v1996
    %v1998 = vmul.f32 %v1995, 1.442695
    %v1999 = vpow.pop %v1998
    %v2000 = vadd.f32 %v1997, 1.0
    %v2001 = vadd.f32 %v1999, 1.0
    %v2002 = vrcp.pop %v2000
    %v2003 = vmul.f32 1.0, %v2002
    %v2004 = vrcp.pop %v2001
    %v2005 = vmul.f32 1.0, %v2004
    %v2006 = vrot.slane %v797, 2
    %v2007 = vrot.slane %v815, 2
    %v2012 = vunpack.c.l.s4 1983009808
    %v2013 = vunpack.c.0.s8 %v2012
    %v2014 = vlaneseq
    %v2015 = vshrl.u32 %v2014, 7
    %v2016 = vsub.s32 %v2013, %v2015
    %v2017 = vrot.slane %v1909, %v2016
    %v2018 = vrot.slane %v2017, 1
    %v2021 = vadd.f32 %v2006, %v2017
    %v2022 = vadd.f32 %v2007, %v2018
    %v2023 = vxor.u32 %v2021, 2147483648
    %v2024 = vxor.u32 %v2022, 2147483648
    %v2025 = vmul.f32 %v2023, 1.442695
    %v2026 = vpow.pop %v2025
    %v2027 = vmul.f32 %v2024, 1.442695
    %v2028 = vpow.pop %v2027
    %v2029 = vadd.f32 %v2026, 1.0
    %v2030 = vadd.f32 %v2028, 1.0
    %v2031 = vrcp.pop %v2029
    %v2032 = vmul.f32 1.0, %v2031
    %v2033 = vrcp.pop %v2030
    %v2034 = vmul.f32 1.0, %v2033
    %v2037 = vunpack.c.l.s4 1983009808
    %v2038 = vunpack.c.0.s8 %v2037
    %v2039 = vlaneseq
    %v2040 = vshrl.u32 %v2039, 7
    %v2041 = vsub.s32 %v2038, %v2040
    %v2042 = vrot.slane %v1978, %v2041
    %v2043 = vrot.slane %v2042, 1
    %v2046 = vmul.f32 %v2003, %v2042
    %v2047 = vmul.f32 %v2005, %v2043
    %v2048 = vrot.slane %v797, 4
    %v2049 = vrot.slane %v815, 4
    %v2052 = vadd.f32 %v2048, %v2046
    %v2053 = vadd.f32 %v2049, %v2047
    %v2054 = vtanh.pop %v2052
    %v2055 = vtanh.pop %v2053
    %v2056 = vsub.f32 1.0, %v2032
    %v2057 = vsub.f32 1.0, %v2034
    %v2058 = vmul.f32 %v2056, %v2054
    %v2059 = vmul.f32 %v2057, %v2055
    %v2060 = vrot.slane %v1826, 7
    %v2061 = vrot.slane %v2060, 2
    %v2062 = vrot.slane %v1827, 7
    %v2063 = vrot.slane %v2062, 2
    %v2066 = vmul.f32 %v2032, %v2061
    %v2067 = vmul.f32 %v2034, %v2063
    %v2068 = vadd.f32 %v2058, %v2066
    %v2069 = vadd.f32 %v2059, %v2067
    %v2076 = vlaneseq
    %v2077 = vshrl.u32 %v2076, 7
    %v2078 = vsub.s32 0, %v2077
    %v2079 = vrot.slane %v2068, %v2078
    %v2080 = vlaneseq
    %v2081 = vshrl.u32 %v2080, 7
    %v2082 = vsub.s32 0, %v2081
    %v2083 = vrot.slane %v2069, %v2082
    %vm2086 = vcmask 1040384
    %v2087 = vsel %vm2086, %v1120, %v1352
    %v2088 = vsel %vm2086, %v1121, %v1353
    %vm2089 = vcmask 1041408
    %v2090 = vsel %vm2089, %v2087, %v1601
    %v2091 = vsel %vm2089, %v2088, %v1605
    %vm2092 = vcmask 1042432
    %v2093 = vsel %vm2092, %v2090, %v1833
    %v2094 = vsel %vm2092, %v2091, %v1837
    %v2095 = vsel %vm207, %v2093, %v2079
    %v2096 = vsel %vm207, %v2094, %v2083
    %v2099 = vcombine.high %v2095, %v2095
    %v2101 = vunpack.c.l.s4 1966171168
    %v2102 = vunpack.c.0.s8 %v2101
    %v2103 = vlaneseq
    %v2104 = vshrl.u32 %v2103, 7
    %v2105 = vsub.s32 %v2102, %v2104
    %v2106 = vrot.slane %v2095, %v2105
    %v2108 = vunpack.c.l.s4 1966171168
    %v2109 = vunpack.c.0.s8 %v2108
    %v2110 = vlaneseq
    %v2111 = vshrl.u32 %v2110, 7
    %v2112 = vsub.s32 %v2109, %v2111
    %v2113 = vrot.slane %v2099, %v2112
    %v2114 = vcombine.high %v2106, %v2106
    %v2116 = vunpack.c.l.s4 1966171168
    %v2117 = vunpack.c.0.s8 %v2116
    %v2118 = vlaneseq
    %v2119 = vshrl.u32 %v2118, 7
    %v2120 = vsub.s32 %v2117, %v2119
    %v2121 = vrot.slane %v2106, %v2120
    %v2123 = vunpack.c.l.s4 1966171168
    %v2124 = vunpack.c.0.s8 %v2123
    %v2125 = vlaneseq
    %v2126 = vshrl.u32 %v2125, 7
    %v2127 = vsub.s32 %v2124, %v2126
    %v2128 = vrot.slane %v2113, %v2127
    %v2130 = vunpack.c.l.s4 1966171168
    %v2131 = vunpack.c.0.s8 %v2130
    %v2132 = vlaneseq
    %v2133 = vshrl.u32 %v2132, 7
    %v2134 = vsub.s32 %v2131, %v2133
    %v2135 = vrot.slane %v2114, %v2134
    %v2136 = vcombine.high %v2121, %v2121
    %v2137 = vcombine.high %v2135, %v2135
    %v2138 = vcombine.high %v2096, %v2096
    %v2140 = vunpack.c.l.s4 1966171168
    %v2141 = vunpack.c.0.s8 %v2140
    %v2142 = vlaneseq
    %v2143 = vshrl.u32 %v2142, 7
    %v2144 = vsub.s32 %v2141, %v2143
    %v2145 = vrot.slane %v2096, %v2144
    %v2147 = vunpack.c.l.s4 1966171168
    %v2148 = vunpack.c.0.s8 %v2147
    %v2149 = vlaneseq
    %v2150 = vshrl.u32 %v2149, 7
    %v2151 = vsub.s32 %v2148, %v2150
    %v2152 = vrot.slane %v2138, %v2151
    %v2153 = vcombine.high %v2145, %v2145
    %v2155 = vunpack.c.l.s4 1966171168
    %v2156 = vunpack.c.0.s8 %v2155
    %v2157 = vlaneseq
    %v2158 = vshrl.u32 %v2157, 7
    %v2159 = vsub.s32 %v2156, %v2158
    %v2160 = vrot.slane %v2145, %v2159
    %v2162 = vunpack.c.l.s4 1966171168
    %v2163 = vunpack.c.0.s8 %v2162
    %v2164 = vlaneseq
    %v2165 = vshrl.u32 %v2164, 7
    %v2166 = vsub.s32 %v2163, %v2165
    %v2167 = vrot.slane %v2152, %v2166
    %v2169 = vunpack.c.l.s4 1966171168
    %v2170 = vunpack.c.0.s8 %v2169
    %v2171 = vlaneseq
    %v2172 = vshrl.u32 %v2171, 7
    %v2173 = vsub.s32 %v2170, %v2172
    %v2174 = vrot.slane %v2153, %v2173
    %v2175 = vcombine.high %v2160, %v2160
    %v2176 = vcombine.high %v2174, %v2174
    %v2177 = vcombine.low %v2121, %v2135
    %v2178 = vcombine.low %v2136, %v2137
    %v2179 = vcombine.low %v2128, %v2160
    %v2180 = vcombine.low %v2174, %v2175
    %v2182 = vunpack.c.l.s4 1966171168
    %v2183 = vunpack.c.0.s8 %v2182
    %v2184 = vlaneseq
    %v2185 = vshrl.u32 %v2184, 7
    %v2186 = vsub.s32 %v2183, %v2185
    %v2187 = vrot.slane %v2177, %v2186
    %v2189 = vunpack.c.l.s4 1966171168
    %v2190 = vunpack.c.0.s8 %v2189
    %v2191 = vlaneseq
    %v2192 = vshrl.u32 %v2191, 7
    %v2193 = vsub.s32 %v2190, %v2192
    %v2194 = vrot.slane %v2178, %v2193
    %v2196 = vunpack.c.l.s4 1966171168
    %v2197 = vunpack.c.0.s8 %v2196
    %v2198 = vlaneseq
    %v2199 = vshrl.u32 %v2198, 7
    %v2200 = vsub.s32 %v2197, %v2199
    %v2201 = vrot.slane %v2179, %v2200
    %v2203 = vunpack.c.l.s4 1966171168
    %v2204 = vunpack.c.0.s8 %v2203
    %v2205 = vlaneseq
    %v2206 = vshrl.u32 %v2205, 7
    %v2207 = vsub.s32 %v2204, %v2206
    %v2208 = vrot.slane %v2180, %v2207
    %v2209 = vcombine.low %v2187, %v2194
    %v2210 = vcombine.low %v2201, %v2208
    %v2212 = vunpack.c.l.s4 1966171168
    %v2213 = vunpack.c.0.s8 %v2212
    %v2214 = vlaneseq
    %v2215 = vshrl.u32 %v2214, 7
    %v2216 = vsub.s32 %v2213, %v2215
    %v2217 = vrot.slane %v2209, %v2216
    %v2219 = vunpack.c.l.s4 1966171168
    %v2220 = vunpack.c.0.s8 %v2219
    %v2221 = vlaneseq
    %v2222 = vshrl.u32 %v2221, 7
    %v2223 = vsub.s32 %v2220, %v2222
    %v2224 = vrot.slane %v2210, %v2223
    %v2225 = vcombine.low %v2217, %v2224
    %v2226 = vcombine.low %v2176, %v2167
    %v2228 = vunpack.c.l.s4 1966171168
    %v2229 = vunpack.c.0.s8 %v2228
    %v2230 = vlaneseq
    %v2231 = vshrl.u32 %v2230, 7
    %v2232 = vsub.s32 %v2229, %v2231
    %v2233 = vrot.slane %v2226, %v2232
    %v2235 = vunpack.c.l.s4 1966171168
    %v2236 = vunpack.c.0.s8 %v2235
    %v2237 = vlaneseq
    %v2238 = vshrl.u32 %v2237, 7
    %v2239 = vsub.s32 %v2236, %v2238
    %v2240 = vrot.slane %v2233, %v2239
    %2243 = vst [vmem:[%s15] sm:$0xff] %v2225
    %2244 = vst [vmem:[%s15 + $0x8] sm:$0x3] %v2240
    %v2245 = vld [vmem:[%s11] sm:$0xff]
    %v2246 = vld [vmem:[%s11 + $0x8] sm:$0xff]
    %v2247 = vld [vmem:[%s11 + $0x10] sm:$0xff]
    %v2248 = vld [vmem:[%s11 + $0x18] sm:$0xff]
    %v2249 = vld [vmem:[%s11 + $0x20] sm:$0xff]
    %v2250 = vld [vmem:[%s11 + $0x28] sm:$0xff]
    %v2251 = vld [vmem:[%s11 + $0x30] sm:$0xff]
    %v2252 = vld [vmem:[%s11 + $0x38] sm:$0xff]
    %v2253 = vld [vmem:[%s11 + $0x40] sm:$0xff]
    %v2254 = vld [vmem:[%s11 + $0x48] sm:$0xff]
    %v2255 = vld [vmem:[%s11 + $0x50] sm:$0xff]
    %v2256 = vld [vmem:[%s11 + $0x58] sm:$0xff]
    %v2257 = vld [vmem:[%s11 + $0x60] sm:$0xff]
    %v2258 = vld [vmem:[%s11 + $0x68] sm:$0xff]
    %v2259 = vld [vmem:[%s11 + $0x70] sm:$0xff]
    %v2260 = vld [vmem:[%s11 + $0x78] sm:$0xff]
    %v2261 = vld [vmem:[%s12] sm:$0x1]
    %v2263 = vlaneseq
    %v2264 = vshrl.u32 %v2263, 7
    %v2265 = vsub.s32 0, %v2264
    %v2266 = vrot.slane %v2261, %v2265
    %2268 = vmatprep.subr.mxu0 0.0
    %2269 = vmatpush1.msra.mxu0 %v2260
    %2270 = vmatprep.subr.mxu0 0.0
    %2271 = vmatpush1.msra.mxu0 %v2259
    %2272 = vmatprep.subr.mxu0 0.0
    %2273 = vmatpush1.msra.mxu0 %v2258
    %2274 = vmatprep.subr.mxu0 0.0
    %2275 = vmatpush1.msra.mxu0 %v2257
    %2276 = vmatprep.subr.mxu0 0.0
    %2277 = vmatpush1.msra.mxu0 %v2256
    %2278 = vmatprep.subr.mxu0 0.0
    %2279 = vmatpush1.msra.mxu0 %v2255
    %2280 = vmatprep.subr.mxu0 0.0
    %2281 = vmatpush1.msra.mxu0 %v2254
    %2282 = vmatprep.subr.mxu0 0.0
    %2283 = vmatpush1.msra.mxu0 %v2253
    %2284 = vmatprep.subr.mxu0 0.0
    %2285 = vmatpush1.msra.mxu0 %v2252
    %2286 = vmatprep.subr.mxu0 0.0
    %2287 = vmatpush1.msra.mxu0 %v2251
    %2288 = vmatprep.subr.mxu0 0.0
    %2289 = vmatpush1.msra.mxu0 %v2250
    %2290 = vmatprep.subr.mxu0 0.0
    %2291 = vmatpush1.msra.mxu0 %v2249
    %2292 = vmatprep.subr.mxu0 0.0
    %2293 = vmatpush1.msra.mxu0 %v2248
    %2294 = vmatprep.subr.mxu0 0.0
    %2295 = vmatpush1.msra.mxu0 %v2247
    %2296 = vmatprep.subr.mxu0 0.0
    %2297 = vmatpush1.msra.mxu0 %v2246
    %2298 = vmatprep.subr.mxu0 0.0
    %2299 = vmatpush1.msra.mxu0 %v2245
    %2300 = vmatprep.subr.mxu0 0.0
    %2301 = vmatpush2.msra.mxu0 0.0
    %2302 = vmatprep.subr.mxu0 0.0
    %2303 = vmatpush2.msra.mxu0 0.0
    %2304 = vmatprep.subr.mxu0 0.0
    %2305 = vmatpush2.msra.mxu0 0.0
    %2306 = vmatprep.subr.mxu0 0.0
    %2307 = vmatpush2.msra.mxu0 0.0
    %2308 = vmatprep.subr.mxu0 0.0
    %2309 = vmatpush2.msra.mxu0 0.0
    %2310 = vmatprep.subr.mxu0 0.0
    %2311 = vmatpush2.msra.mxu0 0.0
    %2312 = vmatprep.subr.mxu0 0.0
    %2313 = vmatpush2.msra.mxu0 0.0
    %2314 = vmatprep.subr.mxu0 0.0
    %2315 = vmatpush2.msra.mxu0 0.0
    %2316 = vmatprep.subr.mxu0 0.0
    %2317 = vmatpush2.msra.mxu0 0.0
    %2318 = vmatprep.subr.mxu0 0.0
    %2319 = vmatpush2.msra.mxu0 0.0
    %2320 = vmatprep.subr.mxu0 0.0
    %2321 = vmatpush2.msra.mxu0 0.0
    %2322 = vmatprep.subr.mxu0 0.0
    %2323 = vmatpush2.msra.mxu0 0.0
    %2324 = vmatprep.subr.mxu0 0.0
    %2325 = vmatpush2.msra.mxu0 0.0
    %2326 = vmatprep.subr.mxu0 0.0
    %2327 = vmatpush2.msra.mxu0 0.0
    %2328 = vmatprep.subr.mxu0 0.0
    %2329 = vmatpush2.msra.mxu0 0.0
    %2330 = vmatprep.subr.mxu0 0.0
    %2331 = vmatpush2.msra.mxu0 0.0
    %2332 = vmatprep.mubr.f32.mxu0 0.0
    %2333 = vmatmul.mubr.f32.gmra.mxu0 %v2225
    %v2334 = vpop.f32.mrf.mxu0
    %v2335 = vadd.f32 %v2266, %v2334
    %v2336 = vpop.f32.mrf.mxu0
    %2337 = vmatprep.mubr.f32.mxu0 0.0
    %2338 = vmatmul.mubr.f32.gmra.mxu0 %v2240
    %v2339 = vpop.f32.mrf.mxu0
    %v2340 = vadd.f32 %v2266, %v2339
    %v2341 = vpop.f32.mrf.mxu0
    %2342 = vdwg.mxu0
    %2343 = vst [vmem:[%s16] sm:$0xff] %v2335
    %2344 = vst [vmem:[%s16 + $0x8] sm:$0x3] %v2340
    %v2345 = vcombine.low %v2217, %v2217
    %v2346 = vcombine.low %v2224, %v2240
    %v2349 = vsel %vm207, %v519, %v2345
    %v2350 = vld [vmem:[#allocation6] sm:$0xff]
    %v2351 = vld [vmem:[#allocation6 + $0x8] sm:$0xff]
    %v2352 = vld [vmem:[#allocation6 + $0x10] sm:$0xff]
    %v2353 = vld [vmem:[#allocation6 + $0x18] sm:$0xff]
    %v2354 = vld [vmem:[#allocation6 + $0x20] sm:$0xff]
    %v2355 = vld [vmem:[#allocation6 + $0x28] sm:$0xff]
    %v2356 = vld [vmem:[#allocation6 + $0x30] sm:$0xff]
    %v2357 = vld [vmem:[#allocation6 + $0x38] sm:$0xff]
    %v2358 = vld [vmem:[#allocation6 + $0x40] sm:$0xff]
    %v2359 = vld [vmem:[#allocation6 + $0x48] sm:$0xff]
    %v2360 = vld [vmem:[#allocation6 + $0x50] sm:$0xff]
    %v2361 = vld [vmem:[#allocation6 + $0x58] sm:$0xff]
    %v2362 = vld [vmem:[#allocation6 + $0x60] sm:$0xff]
    %v2363 = vld [vmem:[#allocation6 + $0x68] sm:$0xff]
    %v2364 = vld [vmem:[#allocation6 + $0x70] sm:$0xff]
    %v2365 = vld [vmem:[#allocation6 + $0x78] sm:$0xff]
    %v2366 = vld [vmem:[#allocation6 + $0x80] sm:$0xff]
    %v2367 = vld [vmem:[#allocation6 + $0x88] sm:$0xff]
    %v2368 = vld [vmem:[#allocation6 + $0x90] sm:$0xff]
    %v2369 = vld [vmem:[#allocation6 + $0x98] sm:$0xff]
    %v2370 = vld [vmem:[#allocation6 + $0xa0] sm:$0xff]
    %v2371 = vld [vmem:[#allocation6 + $0xa8] sm:$0xff]
    %v2372 = vld [vmem:[#allocation6 + $0xb0] sm:$0xff]
    %v2373 = vld [vmem:[#allocation6 + $0xb8] sm:$0xff]
    %v2374 = vld [vmem:[#allocation6 + $0xc0] sm:$0xff]
    %v2375 = vld [vmem:[#allocation6 + $0xc8] sm:$0xff]
    %v2376 = vld [vmem:[#allocation6 + $0xd0] sm:$0xff]
    %v2377 = vld [vmem:[#allocation6 + $0xd8] sm:$0xff]
    %v2378 = vld [vmem:[#allocation6 + $0xe0] sm:$0xff]
    %v2379 = vld [vmem:[#allocation6 + $0xe8] sm:$0xff]
    %v2380 = vld [vmem:[#allocation6 + $0xf0] sm:$0xff]
    %v2381 = vld [vmem:[#allocation6 + $0xf8] sm:$0xff]
    %v2382 = vld [vmem:[#allocation6 + $0x100] sm:$0xff]
    %v2383 = vld [vmem:[#allocation6 + $0x108] sm:$0xff]
    %v2384 = vld [vmem:[#allocation6 + $0x110] sm:$0xff]
    %v2385 = vld [vmem:[#allocation6 + $0x118] sm:$0xff]
    %v2386 = vld [vmem:[#allocation6 + $0x120] sm:$0xff]
    %v2387 = vld [vmem:[#allocation6 + $0x128] sm:$0xff]
    %v2388 = vld [vmem:[#allocation6 + $0x130] sm:$0xff]
    %v2389 = vld [vmem:[#allocation6 + $0x138] sm:$0xff]
    %v2390 = vld [vmem:[#allocation6 + $0x140] sm:$0xff]
    %v2391 = vld [vmem:[#allocation6 + $0x148] sm:$0xff]
    %v2392 = vld [vmem:[#allocation6 + $0x150] sm:$0xff]
    %v2393 = vld [vmem:[#allocation6 + $0x158] sm:$0xff]
    %v2394 = vld [vmem:[#allocation6 + $0x160] sm:$0xff]
    %v2395 = vld [vmem:[#allocation6 + $0x168] sm:$0xff]
    %v2396 = vld [vmem:[#allocation6 + $0x170] sm:$0xff]
    %v2397 = vld [vmem:[#allocation6 + $0x178] sm:$0xff]
    %v2398 = vld [vmem:[#allocation6 + $0x180] sm:$0xff]
    %v2399 = vld [vmem:[#allocation6 + $0x188] sm:$0xff]
    %v2400 = vld [vmem:[#allocation6 + $0x190] sm:$0xff]
    %v2401 = vld [vmem:[#allocation6 + $0x198] sm:$0xff]
    %v2402 = vld [vmem:[#allocation6 + $0x1a0] sm:$0xff]
    %v2403 = vld [vmem:[#allocation6 + $0x1a8] sm:$0xff]
    %v2404 = vld [vmem:[#allocation6 + $0x1b0] sm:$0xff]
    %v2405 = vld [vmem:[#allocation6 + $0x1b8] sm:$0xff]
    %v2406 = vld [vmem:[#allocation6 + $0x1c0] sm:$0xff]
    %v2407 = vld [vmem:[#allocation6 + $0x1c8] sm:$0xff]
    %v2408 = vld [vmem:[#allocation6 + $0x1d0] sm:$0xff]
    %v2409 = vld [vmem:[#allocation6 + $0x1d8] sm:$0xff]
    %v2410 = vld [vmem:[#allocation6 + $0x1e0] sm:$0xff]
    %v2411 = vld [vmem:[#allocation6 + $0x1e8] sm:$0xff]
    %v2412 = vld [vmem:[#allocation6 + $0x1f0] sm:$0xff]
    %v2413 = vld [vmem:[#allocation6 + $0x1f8] sm:$0xff]
    %v2414 = vld [vmem:[#allocation6 + $0x200] sm:$0xff]
    %v2415 = vld [vmem:[#allocation6 + $0x208] sm:$0xff]
    %v2416 = vld [vmem:[#allocation6 + $0x210] sm:$0xff]
    %v2417 = vld [vmem:[#allocation6 + $0x218] sm:$0xff]
    %v2418 = vld [vmem:[#allocation6 + $0x220] sm:$0xff]
    %v2419 = vld [vmem:[#allocation6 + $0x228] sm:$0xff]
    %v2420 = vld [vmem:[#allocation6 + $0x230] sm:$0xff]
    %v2421 = vld [vmem:[#allocation6 + $0x238] sm:$0xff]
    %v2422 = vld [vmem:[#allocation6 + $0x240] sm:$0xff]
    %v2423 = vld [vmem:[#allocation6 + $0x248] sm:$0xff]
    %v2424 = vld [vmem:[#allocation6 + $0x250] sm:$0xff]
    %v2425 = vld [vmem:[#allocation6 + $0x258] sm:$0xff]
    %v2426 = vld [vmem:[#allocation6 + $0x260] sm:$0xff]
    %v2427 = vld [vmem:[#allocation6 + $0x268] sm:$0xff]
    %v2428 = vld [vmem:[#allocation6 + $0x270] sm:$0xff]
    %v2429 = vld [vmem:[#allocation6 + $0x278] sm:$0xff]
    %v2430 = vld [vmem:[#allocation6 + $0x280] sm:$0xff]
    %v2431 = vld [vmem:[#allocation6 + $0x288] sm:$0xff]
    %v2432 = vld [vmem:[#allocation6 + $0x290] sm:$0xff]
    %v2433 = vld [vmem:[#allocation6 + $0x298] sm:$0xff]
    %v2434 = vld [vmem:[#allocation6 + $0x2a0] sm:$0xff]
    %v2435 = vld [vmem:[#allocation6 + $0x2a8] sm:$0xff]
    %v2436 = vld [vmem:[#allocation6 + $0x2b0] sm:$0xff]
    %v2437 = vld [vmem:[#allocation6 + $0x2b8] sm:$0xff]
    %v2438 = vld [vmem:[#allocation6 + $0x2c0] sm:$0xff]
    %v2439 = vld [vmem:[#allocation6 + $0x2c8] sm:$0xff]
    %v2440 = vld [vmem:[#allocation6 + $0x2d0] sm:$0xff]
    %v2441 = vld [vmem:[#allocation6 + $0x2d8] sm:$0xff]
    %v2442 = vld [vmem:[#allocation6 + $0x2e0] sm:$0xff]
    %v2443 = vld [vmem:[#allocation6 + $0x2e8] sm:$0xff]
    %v2444 = vld [vmem:[#allocation6 + $0x2f0] sm:$0xff]
    %v2445 = vld [vmem:[#allocation6 + $0x2f8] sm:$0xff]
    %v2446 = vld [vmem:[%s10] sm:$0x3f]
    %v2448 = vlaneseq
    %v2449 = vshrl.u32 %v2448, 7
    %v2450 = vsub.s32 0, %v2449
    %v2451 = vrot.slane %v2446, %v2450
    %v2452 = vlaneseq
    %v2453 = vshrl.u32 %v2452, 7
    %v2454 = vsub.s32 1, %v2453
    %v2455 = vrot.slane %v2446, %v2454
    %v2456 = vlaneseq
    %v2457 = vshrl.u32 %v2456, 7
    %v2458 = vsub.s32 2, %v2457
    %v2459 = vrot.slane %v2446, %v2458
    %v2460 = vlaneseq
    %v2461 = vshrl.u32 %v2460, 7
    %v2462 = vsub.s32 3, %v2461
    %v2463 = vrot.slane %v2446, %v2462
    %v2464 = vlaneseq
    %v2465 = vshrl.u32 %v2464, 7
    %v2466 = vsub.s32 4, %v2465
    %v2467 = vrot.slane %v2446, %v2466
    %v2468 = vlaneseq
    %v2469 = vshrl.u32 %v2468, 7
    %v2470 = vsub.s32 5, %v2469
    %v2471 = vrot.slane %v2446, %v2470
    %2478 = vmatprep.subr.mxu0 %v2441
    %2479 = vmatpush1.msra.mxu0 %v2440
    %2480 = vmatprep.subr.mxu0 %v2435
    %2481 = vmatpush1.msra.mxu0 %v2434
    %2482 = vmatprep.subr.mxu0 %v2429
    %2483 = vmatpush1.msra.mxu0 %v2428
    %2484 = vmatprep.subr.mxu0 %v2423
    %2485 = vmatpush1.msra.mxu0 %v2422
    %2486 = vmatprep.subr.mxu0 %v2417
    %2487 = vmatpush1.msra.mxu0 %v2416
    %2488 = vmatprep.subr.mxu0 %v2411
    %2489 = vmatpush1.msra.mxu0 %v2410
    %2490 = vmatprep.subr.mxu0 %v2405
    %2491 = vmatpush1.msra.mxu0 %v2404
    %2492 = vmatprep.subr.mxu0 %v2399
    %2493 = vmatpush1.msra.mxu0 %v2398
    %2494 = vmatprep.subr.mxu0 %v2393
    %2495 = vmatpush1.msra.mxu0 %v2392
    %2496 = vmatprep.subr.mxu0 %v2387
    %2497 = vmatpush1.msra.mxu0 %v2386
    %2498 = vmatprep.subr.mxu0 %v2381
    %2499 = vmatpush1.msra.mxu0 %v2380
    %2500 = vmatprep.subr.mxu0 %v2375
    %2501 = vmatpush1.msra.mxu0 %v2374
    %2502 = vmatprep.subr.mxu0 %v2369
    %2503 = vmatpush1.msra.mxu0 %v2368
    %2504 = vmatprep.subr.mxu0 %v2363
    %2505 = vmatpush1.msra.mxu0 %v2362
    %2506 = vmatprep.subr.mxu0 %v2357
    %2507 = vmatpush1.msra.mxu0 %v2356
    %2508 = vmatprep.subr.mxu0 %v2351
    %2509 = vmatpush1.msra.mxu0 %v2350
    %2510 = vmatprep.subr.mxu0 0.0
    %2511 = vmatpush2.msra.mxu0 0.0
    %2512 = vmatprep.subr.mxu0 0.0
    %2513 = vmatpush2.msra.mxu0 0.0
    %2514 = vmatprep.subr.mxu0 0.0
    %2515 = vmatpush2.msra.mxu0 0.0
    %2516 = vmatprep.subr.mxu0 0.0
    %2517 = vmatpush2.msra.mxu0 0.0
    %2518 = vmatprep.subr.mxu0 0.0
    %2519 = vmatpush2.msra.mxu0 0.0
    %2520 = vmatprep.subr.mxu0 0.0
    %2521 = vmatpush2.msra.mxu0 0.0
    %2522 = vmatprep.subr.mxu0 0.0
    %2523 = vmatpush2.msra.mxu0 0.0
    %2524 = vmatprep.subr.mxu0 0.0
    %2525 = vmatpush2.msra.mxu0 0.0
    %2526 = vmatprep.subr.mxu0 0.0
    %2527 = vmatpush2.msra.mxu0 0.0
    %2528 = vmatprep.subr.mxu0 0.0
    %2529 = vmatpush2.msra.mxu0 0.0
    %2530 = vmatprep.subr.mxu0 0.0
    %2531 = vmatpush2.msra.mxu0 0.0
    %2532 = vmatprep.subr.mxu0 0.0
    %2533 = vmatpush2.msra.mxu0 0.0
    %2534 = vmatprep.subr.mxu0 0.0
    %2535 = vmatpush2.msra.mxu0 0.0
    %2536 = vmatprep.subr.mxu0 0.0
    %2537 = vmatpush2.msra.mxu0 0.0
    %2538 = vmatprep.subr.mxu0 0.0
    %2539 = vmatpush2.msra.mxu0 0.0
    %2540 = vmatprep.subr.mxu0 0.0
    %2541 = vmatpush2.msra.mxu0 0.0
    %2542 = vmatprep.mubr.f32.mxu0 0.0
    %2543 = vmatmul.mubr.f32.gmra.mxu0 %v518
    %v2544 = vpop.f32.mrf.mxu0
    %v2545 = vadd.f32 %v2451, %v2544
    %v2546 = vpop.f32.mrf.mxu0
    %v2547 = vadd.f32 %v2455, %v2546
    %2548 = vmatprep.mubr.f32.mxu0 0.0
    %2549 = vmatmul.mubr.f32.gmra.mxu0 %v2349
    %v2550 = vpop.f32.mrf.mxu0
    %v2551 = vadd.f32 %v2451, %v2550
    %v2552 = vpop.f32.mrf.mxu0
    %v2553 = vadd.f32 %v2455, %v2552
    %2554 = vmatprep.mubr.f32.mxu0 0.0
    %2555 = vmatmul.mubr.f32.gmra.mxu0 %v2346
    %v2556 = vpop.f32.mrf.mxu0
    %v2557 = vadd.f32 %v2451, %v2556
    %v2558 = vpop.f32.mrf.mxu0
    %v2559 = vadd.f32 %v2455, %v2558
    %2560 = vdwg.mxu0
    %2561 = vmatprep.subr.mxu0 %v2443
    %2562 = vmatpush1.msra.mxu0 %v2442
    %2563 = vmatprep.subr.mxu0 %v2437
    %2564 = vmatpush1.msra.mxu0 %v2436
    %2565 = vmatprep.subr.mxu0 %v2431
    %2566 = vmatpush1.msra.mxu0 %v2430
    %2567 = vmatprep.subr.mxu0 %v2425
    %2568 = vmatpush1.msra.mxu0 %v2424
    %2569 = vmatprep.subr.mxu0 %v2419
    %2570 = vmatpush1.msra.mxu0 %v2418
    %2571 = vmatprep.subr.mxu0 %v2413
    %2572 = vmatpush1.msra.mxu0 %v2412
    %2573 = vmatprep.subr.mxu0 %v2407
    %2574 = vmatpush1.msra.mxu0 %v2406
    %2575 = vmatprep.subr.mxu0 %v2401
    %2576 = vmatpush1.msra.mxu0 %v2400
    %2577 = vmatprep.subr.mxu0 %v2395
    %2578 = vmatpush1.msra.mxu0 %v2394
    %2579 = vmatprep.subr.mxu0 %v2389
    %2580 = vmatpush1.msra.mxu0 %v2388
    %2581 = vmatprep.subr.mxu0 %v2383
    %2582 = vmatpush1.msra.mxu0 %v2382
    %2583 = vmatprep.subr.mxu0 %v2377
    %2584 = vmatpush1.msra.mxu0 %v2376
    %2585 = vmatprep.subr.mxu0 %v2371
    %2586 = vmatpush1.msra.mxu0 %v2370
    %2587 = vmatprep.subr.mxu0 %v2365
    %2588 = vmatpush1.msra.mxu0 %v2364
    %2589 = vmatprep.subr.mxu0 %v2359
    %2590 = vmatpush1.msra.mxu0 %v2358
    %2591 = vmatprep.subr.mxu0 %v2353
    %2592 = vmatpush1.msra.mxu0 %v2352
    %2593 = vmatprep.subr.mxu0 0.0
    %2594 = vmatpush2.msra.mxu0 0.0
    %2595 = vmatprep.subr.mxu0 0.0
    %2596 = vmatpush2.msra.mxu0 0.0
    %2597 = vmatprep.subr.mxu0 0.0
    %2598 = vmatpush2.msra.mxu0 0.0
    %2599 = vmatprep.subr.mxu0 0.0
    %2600 = vmatpush2.msra.mxu0 0.0
    %2601 = vmatprep.subr.mxu0 0.0
    %2602 = vmatpush2.msra.mxu0 0.0
    %2603 = vmatprep.subr.mxu0 0.0
    %2604 = vmatpush2.msra.mxu0 0.0
    %2605 = vmatprep.subr.mxu0 0.0
    %2606 = vmatpush2.msra.mxu0 0.0
    %2607 = vmatprep.subr.mxu0 0.0
    %2608 = vmatpush2.msra.mxu0 0.0
    %2609 = vmatprep.subr.mxu0 0.0
    %2610 = vmatpush2.msra.mxu0 0.0
    %2611 = vmatprep.subr.mxu0 0.0
    %2612 = vmatpush2.msra.mxu0 0.0
    %2613 = vmatprep.subr.mxu0 0.0
    %2614 = vmatpush2.msra.mxu0 0.0
    %2615 = vmatprep.subr.mxu0 0.0
    %2616 = vmatpush2.msra.mxu0 0.0
    %2617 = vmatprep.subr.mxu0 0.0
    %2618 = vmatpush2.msra.mxu0 0.0
    %2619 = vmatprep.subr.mxu0 0.0
    %2620 = vmatpush2.msra.mxu0 0.0
    %2621 = vmatprep.subr.mxu0 0.0
    %2622 = vmatpush2.msra.mxu0 0.0
    %2623 = vmatprep.subr.mxu0 0.0
    %2624 = vmatpush2.msra.mxu0 0.0
    %2625 = vmatprep.mubr.f32.mxu0 0.0
    %2626 = vmatmul.mubr.f32.gmra.mxu0 %v518
    %v2627 = vpop.f32.mrf.mxu0
    %v2628 = vadd.f32 %v2459, %v2627
    %v2629 = vpop.f32.mrf.mxu0
    %v2630 = vadd.f32 %v2463, %v2629
    %2631 = vmatprep.mubr.f32.mxu0 0.0
    %2632 = vmatmul.mubr.f32.gmra.mxu0 %v2349
    %v2633 = vpop.f32.mrf.mxu0
    %v2634 = vadd.f32 %v2459, %v2633
    %v2635 = vpop.f32.mrf.mxu0
    %v2636 = vadd.f32 %v2463, %v2635
    %2637 = vmatprep.mubr.f32.mxu0 0.0
    %2638 = vmatmul.mubr.f32.gmra.mxu0 %v2346
    %v2639 = vpop.f32.mrf.mxu0
    %v2640 = vadd.f32 %v2459, %v2639
    %v2641 = vpop.f32.mrf.mxu0
    %v2642 = vadd.f32 %v2463, %v2641
    %2643 = vdwg.mxu0
    %2644 = vmatprep.subr.mxu0 %v2445
    %2645 = vmatpush1.msra.mxu0 %v2444
    %2646 = vmatprep.subr.mxu0 %v2439
    %2647 = vmatpush1.msra.mxu0 %v2438
    %2648 = vmatprep.subr.mxu0 %v2433
    %2649 = vmatpush1.msra.mxu0 %v2432
    %2650 = vmatprep.subr.mxu0 %v2427
    %2651 = vmatpush1.msra.mxu0 %v2426
    %2652 = vmatprep.subr.mxu0 %v2421
    %2653 = vmatpush1.msra.mxu0 %v2420
    %2654 = vmatprep.subr.mxu0 %v2415
    %2655 = vmatpush1.msra.mxu0 %v2414
    %2656 = vmatprep.subr.mxu0 %v2409
    %2657 = vmatpush1.msra.mxu0 %v2408
    %2658 = vmatprep.subr.mxu0 %v2403
    %2659 = vmatpush1.msra.mxu0 %v2402
    %2660 = vmatprep.subr.mxu0 %v2397
    %2661 = vmatpush1.msra.mxu0 %v2396
    %2662 = vmatprep.subr.mxu0 %v2391
    %2663 = vmatpush1.msra.mxu0 %v2390
    %2664 = vmatprep.subr.mxu0 %v2385
    %2665 = vmatpush1.msra.mxu0 %v2384
    %2666 = vmatprep.subr.mxu0 %v2379
    %2667 = vmatpush1.msra.mxu0 %v2378
    %2668 = vmatprep.subr.mxu0 %v2373
    %2669 = vmatpush1.msra.mxu0 %v2372
    %2670 = vmatprep.subr.mxu0 %v2367
    %2671 = vmatpush1.msra.mxu0 %v2366
    %2672 = vmatprep.subr.mxu0 %v2361
    %2673 = vmatpush1.msra.mxu0 %v2360
    %2674 = vmatprep.subr.mxu0 %v2355
    %2675 = vmatpush1.msra.mxu0 %v2354
    %2676 = vmatprep.subr.mxu0 0.0
    %2677 = vmatpush2.msra.mxu0 0.0
    %2678 = vmatprep.subr.mxu0 0.0
    %2679 = vmatpush2.msra.mxu0 0.0
    %2680 = vmatprep.subr.mxu0 0.0
    %2681 = vmatpush2.msra.mxu0 0.0
    %2682 = vmatprep.subr.mxu0 0.0
    %2683 = vmatpush2.msra.mxu0 0.0
    %2684 = vmatprep.subr.mxu0 0.0
    %2685 = vmatpush2.msra.mxu0 0.0
    %2686 = vmatprep.subr.mxu0 0.0
    %2687 = vmatpush2.msra.mxu0 0.0
    %2688 = vmatprep.subr.mxu0 0.0
    %2689 = vmatpush2.msra.mxu0 0.0
    %2690 = vmatprep.subr.mxu0 0.0
    %2691 = vmatpush2.msra.mxu0 0.0
    %2692 = vmatprep.subr.mxu0 0.0
    %2693 = vmatpush2.msra.mxu0 0.0
    %2694 = vmatprep.subr.mxu0 0.0
    %2695 = vmatpush2.msra.mxu0 0.0
    %2696 = vmatprep.subr.mxu0 0.0
    %2697 = vmatpush2.msra.mxu0 0.0
    %2698 = vmatprep.subr.mxu0 0.0
    %2699 = vmatpush2.msra.mxu0 0.0
    %2700 = vmatprep.subr.mxu0 0.0
    %2701 = vmatpush2.msra.mxu0 0.0
    %2702 = vmatprep.subr.mxu0 0.0
    %2703 = vmatpush2.msra.mxu0 0.0
    %2704 = vmatprep.subr.mxu0 0.0
    %2705 = vmatpush2.msra.mxu0 0.0
    %2706 = vmatprep.subr.mxu0 0.0
    %2707 = vmatpush2.msra.mxu0 0.0
    %2708 = vmatprep.mubr.f32.mxu0 0.0
    %2709 = vmatmul.mubr.f32.gmra.mxu0 %v518
    %v2710 = vpop.f32.mrf.mxu0
    %v2711 = vadd.f32 %v2467, %v2710
    %v2712 = vpop.f32.mrf.mxu0
    %v2713 = vadd.f32 %v2471, %v2712
    %2714 = vmatprep.mubr.f32.mxu0 0.0
    %2715 = vmatmul.mubr.f32.gmra.mxu0 %v2349
    %v2716 = vpop.f32.mrf.mxu0
    %v2717 = vadd.f32 %v2467, %v2716
    %v2718 = vpop.f32.mrf.mxu0
    %v2719 = vadd.f32 %v2471, %v2718
    %2720 = vmatprep.mubr.f32.mxu0 0.0
    %2721 = vmatmul.mubr.f32.gmra.mxu0 %v2346
    %v2722 = vpop.f32.mrf.mxu0
    %v2723 = vadd.f32 %v2467, %v2722
    %v2724 = vpop.f32.mrf.mxu0
    %v2725 = vadd.f32 %v2471, %v2724
    %2726 = vdwg.mxu0
    %2727 = vst [vmem:[%s13] sm:$0xff] %v2545
    %2728 = vst [vmem:[%s13 + $0x8] sm:$0xff] %v2547
    %2729 = vst [vmem:[%s13 + $0x10] sm:$0xff] %v2628
    %2730 = vst [vmem:[%s13 + $0x18] sm:$0xff] %v2630
    %2731 = vst [vmem:[%s13 + $0x20] sm:$0xff] %v2711
    %2732 = vst [vmem:[%s13 + $0x28] sm:$0xff] %v2713
    %2733 = vst [vmem:[%s13 + $0x30] sm:$0xff] %v2551
    %2734 = vst [vmem:[%s13 + $0x38] sm:$0xff] %v2553
    %2735 = vst [vmem:[%s13 + $0x40] sm:$0xff] %v2634
    %2736 = vst [vmem:[%s13 + $0x48] sm:$0xff] %v2636
    %2737 = vst [vmem:[%s13 + $0x50] sm:$0xff] %v2717
    %2738 = vst [vmem:[%s13 + $0x58] sm:$0xff] %v2719
    %2739 = vst [vmem:[%s13 + $0x60] sm:$0x3f] %v2557
    %2740 = vst [vmem:[%s13 + $0x68] sm:$0x3f] %v2559
    %2741 = vst [vmem:[%s13 + $0x70] sm:$0x3f] %v2640
    %2742 = vst [vmem:[%s13 + $0x78] sm:$0x3f] %v2642
    %2743 = vst [vmem:[%s13 + $0x80] sm:$0x3f] %v2723
    %2744 = vst [vmem:[%s13 + $0x88] sm:$0x3f] %v2725
    // Predicated region
    $region66: #{forward.1} parent=1 // pred_check
      _
    $region67: #{forward.1} parent=1 // pred_check_branch
      %2746 = sbr.rel (0) target = $region69
    $region68: #{forward.1} parent=1 // pred_region
      _
    $region69: #{forward.1} parent=1 // pred_fallthru
      _
    // Predicated region
    $region70: #{forward.1} parent=1 // pred_check
      _
    $region71: #{forward.1} parent=1 // pred_check_branch
      %2748 = sbr.rel (0) target = $region73
    $region72: #{forward.1} parent=1 // pred_region
      _
    $region73: #{forward.1} parent=1 // pred_fallthru
      _
    // Predicated region
    $region74: #{forward.1} parent=1 // pred_check
      _
    $region75: #{forward.1} parent=1 // pred_check_branch
      %2750 = sbr.rel (0) target = $region77
    $region76: #{forward.1} parent=1 // pred_region
      _
    $region77: #{forward.1} parent=1 // pred_fallthru
      _
    // Predicated region
    $region78: #{forward.1} parent=1 // pred_check
      _
    $region79: #{forward.1} parent=1 // pred_check_branch
      %2752 = sbr.rel (0) target = $region81
    $region80: #{forward.1} parent=1 // pred_region
      _
    $region81: #{forward.1} parent=1 // pred_fallthru
      _
    // Predicated region
    $region82: #{forward.1} parent=1 // pred_check
      _
    $region83: #{forward.1} parent=1 // pred_check_branch
      %2754 = sbr.rel (0) target = $region85
    $region84: #{forward.1} parent=1 // pred_region
      _
    $region85: #{forward.1} parent=1 // pred_fallthru
      _
    // Predicated region
    $region86: #{forward.1} parent=1 // pred_check
      _
    $region87: #{forward.1} parent=1 // pred_check_branch
      %2756 = sbr.rel (0) target = $region89
    $region88: #{forward.1} parent=1 // pred_region
      _
    $region89: #{forward.1} parent=1 // pred_fallthru
      _
    // Predicated region
    $region90: #{forward.1} parent=1 // pred_check
      _
    $region91: #{forward.1} parent=1 // pred_check_branch
      %2758 = sbr.rel (0) target = $region93
    $region92: #{forward.1} parent=1 // pred_region
      _
    $region93: #{forward.1} parent=1 // pred_fallthru
      _
    // Predicated region
    $region94: #{forward.1} parent=1 // pred_check
      _
    $region95: #{forward.1} parent=1 // pred_check_branch
      %2760 = sbr.rel (0) target = $region97
    $region96: #{forward.1} parent=1 // pred_region
      _
    $region97: #{forward.1} parent=1 // pred_fallthru
      _
    %2761 = vsyncpa [#allocation3], 1
    %2762 = vsyncpa [#allocation5], 1

</llo_original>
